<compile_context>
chip_gen: v7x
topology: tpu7x:2x2x1
jax: 0.10.0
libtpu: 0.0.40
codegen_flags: <defaults>
</compile_context>

<pallas_src>
from functools import partial

import jax
import jax.numpy as jnp
from jax.experimental import pallas as pl
from jax.experimental.pallas import tpu as pltpu

D_IN = 784          # 28*28
D_PAD = 896         # 7 * 128
HID = 512
LPAD = 128          # padded latent width (lane multiple)


def vae_kernel(
    x_ref,        # (TB, D_PAD)      bf16  padded flattened input
    w1e_ref,      # (D_PAD, HID)     bf16  encoder linear1 (in, out)
    b1e_ref,      # (1, HID)         f32
    whead_ref,    # (HID, 2*LPAD)    bf16  fused [mu | log-sigma] heads
    bhead_ref,    # (1, 2*LPAD)      f32
    eps_ref,      # (TB, LPAD)       f32   N(0,1) noise (padded cols = 0)
    w1d_ref,      # (LPAD, HID)      bf16  decoder linear1
    b1d_ref,      # (1, HID)         f32
    w2d_ref,      # (HID, D_PAD)     bf16  decoder linear2
    b2d_ref,      # (1, D_PAD)       f32
    out_ref,      # (TB, D_PAD)      f32   reconstruction (padded)
    z_ref,        # (TB, LPAD)       f32   latent sample (padded)
    *,
    lpad,
):
    # ---------------- Encoder ----------------
    h = jnp.dot(x_ref[...], w1e_ref[...],
                preferred_element_type=jnp.float32) + b1e_ref[...]
    h = jnp.maximum(h, 0.0)                                    # relu (f32)

    # Fused mu / log-sigma heads: one MXU pass over h.
    y = jnp.dot(h.astype(jnp.bfloat16), whead_ref[...],
                preferred_element_type=jnp.float32) + bhead_ref[...]
    mu = y[:, :lpad]
    sigma = jnp.exp(y[:, lpad:])                               # exp on EUP (f32)

    z = mu + sigma * eps_ref[...]
    z_ref[...] = z
    # TODO(synk): encoder also stores self.kl and self.N_fit as side effects;
    # they are not part of forward()'s return value and are omitted here.

    # ---------------- Decoder ----------------
    d = jnp.dot(z.astype(jnp.bfloat16), w1d_ref[...],
                preferred_element_type=jnp.float32) + b1d_ref[...]
    d = jnp.maximum(d, 0.0)                                    # relu (f32)

    logits = jnp.dot(d.astype(jnp.bfloat16), w2d_ref[...],
                     preferred_element_type=jnp.float32) + b2d_ref[...]
    # sigmoid: exp -> EUP, reciprocal -> EUP (approx vrcp), frees VALU slots.
    out_ref[...] = pl.reciprocal(1.0 + jnp.exp(-logits), approx=True)


def _round_up(n, m):
    return ((n + m - 1) // m) * m


def _pad2(a, rows, cols):
    r, c = a.shape
    return jnp.pad(a, ((0, rows - r), (0, cols - c)))


@jax.jit
def vae_forward(x_nchw, params, eps):
    """x_nchw: (B, 1, 28, 28) f32, eps: (B, L) f32. Returns (recon, z)."""
    B = x_nchw.shape[0]
    L = params["w2e"].shape[1]
    x_flat = x_nchw.reshape(B, -1).astype(jnp.float32)   # == torch.flatten

    # Batch padding / tiling (sublane multiple; tile across batch for large B).
    B_PAD = _round_up(B, 8)
    if B_PAD > 256:
        B_PAD = _round_up(B_PAD, 256)
        TB = 256
    else:
        TB = B_PAD

    bf16 = lambda a: a.astype(jnp.bfloat16)

    # Zero-padded, bf16-cast operands (padding is mathematically exact:
    # padded weight/bias entries are zero and padded eps columns are zero).
    xp = bf16(_pad2(x_flat, B_PAD, D_PAD))
    w1e = bf16(_pad2(params["w1e"], D_PAD, HID))
    b1e = params["b1e"].astype(jnp.float32)

    whead = jnp.zeros((HID, 2 * LPAD), jnp.float32)
    whead = whead.at[:, :L].set(params["w2e"])
    whead = whead.at[:, LPAD:LPAD + L].set(params["w3e"])
    whead = bf16(whead)
    bhead = jnp.zeros((1, 2 * LPAD), jnp.float32)
    bhead = bhead.at[:, :L].set(params["b2e"])
    bhead = bhead.at[:, LPAD:LPAD + L].set(params["b3e"])

    epsp = _pad2(eps.astype(jnp.float32), B_PAD, LPAD)
    w1d = bf16(_pad2(params["w1d"], LPAD, HID))
    b1d = params["b1d"].astype(jnp.float32)
    w2d = bf16(_pad2(params["w2d"], HID, D_PAD))
    b2d = _pad2(params["b2d"].astype(jnp.float32), 1, D_PAD)

    grid = (B_PAD // TB,)

    batch_spec = lambda cols: pl.BlockSpec((TB, cols), lambda i: (i, 0))
    const_spec = lambda shape: pl.BlockSpec(shape, lambda i: (0,) * len(shape))

    in_specs = [
        batch_spec(D_PAD),                 # x
        const_spec((D_PAD, HID)),          # w1e
        const_spec((1, HID)),              # b1e
        const_spec((HID, 2 * LPAD)),       # whead
        const_spec((1, 2 * LPAD)),         # bhead
        batch_spec(LPAD),                  # eps
        const_spec((LPAD, HID)),           # w1d
        const_spec((1, HID)),              # b1d
        const_spec((HID, D_PAD)),          # w2d
        const_spec((1, D_PAD)),            # b2d
    ]
    out_specs = (batch_spec(D_PAD), batch_spec(LPAD))

    out_pad, z_pad = pl.pallas_call(
        partial(vae_kernel, lpad=LPAD),
        grid=grid,
        out_shape=(
            jax.ShapeDtypeStruct((B_PAD, D_PAD), jnp.float32),
            jax.ShapeDtypeStruct((B_PAD, LPAD), jnp.float32),
        ),
        in_specs=in_specs,
        out_specs=out_specs,
        compiler_params=pltpu.CompilerParams(
            dimension_semantics=("parallel",),
            vmem_limit_bytes=32 << 20,
        ),
    )(xp, w1e, b1e, whead, bhead, epsp, w1d, b1d, w2d, b2d)

    recon = out_pad[:B, :D_IN].reshape(B, 1, 28, 28)
    z = z_pad[:B, :L]
    return recon, z


def init_params(key, latent_dims):
    """PyTorch-Linear-style uniform(-1/sqrt(fan_in), +) init; W stored (in, out)."""
    def linear(k, fan_in, fan_out):
        kw, kb = jax.random.split(k)
        bound = 1.0 / jnp.sqrt(fan_in)
        w = jax.random.uniform(kw, (fan_in, fan_out), jnp.float32, -bound, bound)
        b = jax.random.uniform(kb, (1, fan_out), jnp.float32, -bound, bound)
        return w, b

    k1, k2, k3, k4, k5 = jax.random.split(key, 5)
    w1e, b1e = linear(k1, D_IN, HID)
    w2e, b2e = linear(k2, HID, latent_dims)
    w3e, b3e = linear(k3, HID, latent_dims)
    w1d, b1d = linear(k4, latent_dims, HID)
    w2d, b2d = linear(k5, HID, D_IN)
    return dict(
        w1e=w1e, b1e=b1e, w2e=w2e, b2e=b2e, w3e=w3e, b3e=b3e,
        w1d=w1d, b1d=b1d, w2d=w2d, b2d=b2d,
    )


def ref_forward_f32(x, p, eps):
    """Pure f32 JAX reference (semantics of the PyTorch module)."""
    xf = x.reshape(x.shape[0], -1)
    h = jnp.maximum(xf @ p["w1e"] + p["b1e"], 0.0)
    mu = h @ p["w2e"] + p["b2e"]
    sigma = jnp.exp(h @ p["w3e"] + p["b3e"])
    z = mu + sigma * eps
    d = jnp.maximum(z @ p["w1d"] + p["b1d"], 0.0)
    out = jax.nn.sigmoid(d @ p["w2d"] + p["b2d"])
    return out.reshape(-1, 1, 28, 28), z


def ref_forward_bf16(x, p, eps):
    """Reference that mirrors the kernel numerics (bf16 operands, f32 accum)."""
    bf = lambda a: a.astype(jnp.bfloat16)
    dot = lambda a, b: jnp.dot(a, b, preferred_element_type=jnp.float32)
    xf = bf(x.reshape(x.shape[0], -1))
    h = jnp.maximum(dot(xf, bf(p["w1e"])) + p["b1e"], 0.0)
    hb = bf(h)
    mu = dot(hb, bf(p["w2e"])) + p["b2e"]
    sigma = jnp.exp(dot(hb, bf(p["w3e"])) + p["b3e"])
    z = mu + sigma * eps
    d = jnp.maximum(dot(bf(z), bf(p["w1d"])) + p["b1d"], 0.0)
    out = jax.nn.sigmoid(dot(bf(d), bf(p["w2d"])) + p["b2d"])
    return out.reshape(-1, 1, 28, 28), z


if __name__ == "__main__":
    latent_dims = 32
    B = 2

    key = jax.random.PRNGKey(0)
    k_params, k_x, k_eps = jax.random.split(key, 3)

    params = init_params(k_params, latent_dims)
    x = jax.random.uniform(k_x, (B, 1, 28, 28), jnp.float32)       # MNIST-like
    eps = jax.random.normal(k_eps, (B, latent_dims), jnp.float32)  # N(0,1)

    recon, z = vae_forward(x, params, eps)
    recon = jax.block_until_ready(recon)
    z = jax.block_until_ready(z)

    assert recon.shape == (B, 1, 28, 28)
    assert z.shape == (B, latent_dims)

    # Tight check against a reference that mirrors the kernel's bf16 numerics.
    ref_o, ref_z = ref_forward_bf16(x, params, eps)
    assert jnp.allclose(recon, ref_o, atol=1e-2, rtol=1e-2)
    assert jnp.allclose(z, ref_z, atol=1e-2, rtol=1e-2)

    # Loose check against a pure-f32 reference (module semantics preserved).
    ref_o32, ref_z32 = ref_forward_f32(x, params, eps)
    assert jnp.allclose(recon, ref_o32, atol=5e-2, rtol=5e-2)
    assert jnp.allclose(z, ref_z32, atol=5e-2, rtol=5e-2)

    print("KERNEL_OK")
</pallas_src>

<mosaic_0001>
module attributes {stable_mosaic.version = 11 : i64} {
  func.func @vae_kernel(%arg0: i32, %arg1: memref<8x896xbf16, #tpu.memory_space<vmem>>, %arg2: memref<896x512xbf16, #tpu.memory_space<vmem>>, %arg3: memref<1x512xf32, #tpu.memory_space<vmem>>, %arg4: memref<512x256xbf16, #tpu.memory_space<vmem>>, %arg5: memref<1x256xf32, #tpu.memory_space<vmem>>, %arg6: memref<8x128xf32, #tpu.memory_space<vmem>>, %arg7: memref<128x512xbf16, #tpu.memory_space<vmem>>, %arg8: memref<1x512xf32, #tpu.memory_space<vmem>>, %arg9: memref<512x896xbf16, #tpu.memory_space<vmem>>, %arg10: memref<1x896xf32, #tpu.memory_space<vmem>>, %arg11: memref<8x896xf32, #tpu.memory_space<vmem>>, %arg12: memref<8x128xf32, #tpu.memory_space<vmem>>) attributes {dimension_semantics = [#tpu.dimension_semantics<parallel>], iteration_bounds = array<i64: 1>, scalar_prefetch = 0 : i64, scratch_operands = 0 : i64, tpu.core_type = #tpu.core_type<tc>, window_params = [{transform_indices = @transform_0, window_bounds = array<i64: 8, 896>}, {pipeline_mode = #tpu.pipeline_mode<synchronous>, transform_indices = @transform_1, window_bounds = array<i64: 896, 512>}, {pipeline_mode = #tpu.pipeline_mode<synchronous>, transform_indices = @transform_2, window_bounds = array<i64: 1, 512>}, {pipeline_mode = #tpu.pipeline_mode<synchronous>, transform_indices = @transform_3, window_bounds = array<i64: 512, 256>}, {pipeline_mode = #tpu.pipeline_mode<synchronous>, transform_indices = @transform_4, window_bounds = array<i64: 1, 256>}, {transform_indices = @transform_5, window_bounds = array<i64: 8, 128>}, {pipeline_mode = #tpu.pipeline_mode<synchronous>, transform_indices = @transform_6, window_bounds = array<i64: 128, 512>}, {pipeline_mode = #tpu.pipeline_mode<synchronous>, transform_indices = @transform_7, window_bounds = array<i64: 1, 512>}, {pipeline_mode = #tpu.pipeline_mode<synchronous>, transform_indices = @transform_8, window_bounds = array<i64: 512, 896>}, {pipeline_mode = #tpu.pipeline_mode<synchronous>, transform_indices = @transform_9, window_bounds = array<i64: 1, 896>}, {transform_indices = @transform_10, window_bounds = array<i64: 8, 896>}, {transform_indices = @transform_11, window_bounds = array<i64: 8, 128>}]} {
    %c0 = arith.constant 0 : index
    %c0_0 = arith.constant 0 : index
    %0 = vector.load %arg1[%c0, %c0_0] : memref<8x896xbf16, #tpu.memory_space<vmem>>, vector<8x896xbf16>
    %c0_1 = arith.constant 0 : index
    %c0_2 = arith.constant 0 : index
    %1 = vector.load %arg2[%c0_1, %c0_2] : memref<896x512xbf16, #tpu.memory_space<vmem>>, vector<896x512xbf16>
    %cst = arith.constant dense<0.000000e+00> : vector<8x512xf32>
    %2 = tpu.matmul %0, %1, %cst {dimension_numbers = #tpu.dot_dimension_numbers<[1], [0], [0], [1], [0, 0, 1, 1], [], []>} : vector<8x896xbf16>, vector<896x512xbf16>, vector<8x512xf32> -> vector<8x512xf32>
    %c0_3 = arith.constant 0 : index
    %c0_4 = arith.constant 0 : index
    %3 = vector.load %arg3[%c0_3, %c0_4] : memref<1x512xf32, #tpu.memory_space<vmem>>, vector<1x512xf32>
    %4 = vector.broadcast %3 : vector<1x512xf32> to vector<8x512xf32>
    %5 = arith.addf %2, %4 : vector<8x512xf32>
    %cst_5 = arith.constant 0.000000e+00 : f32
    %6 = vector.broadcast %cst_5 : f32 to vector<8x512xf32>
    %7 = arith.maximumf %5, %6 : vector<8x512xf32>
    %8 = arith.truncf %7 : vector<8x512xf32> to vector<8x512xbf16>
    %c0_6 = arith.constant 0 : index
    %c0_7 = arith.constant 0 : index
    %9 = vector.load %arg4[%c0_6, %c0_7] : memref<512x256xbf16, #tpu.memory_space<vmem>>, vector<512x256xbf16>
    %cst_8 = arith.constant dense<0.000000e+00> : vector<8x256xf32>
    %10 = tpu.matmul %8, %9, %cst_8 {dimension_numbers = #tpu.dot_dimension_numbers<[1], [0], [0], [1], [0, 0, 1, 1], [], []>} : vector<8x512xbf16>, vector<512x256xbf16>, vector<8x256xf32> -> vector<8x256xf32>
    %c0_9 = arith.constant 0 : index
    %c0_10 = arith.constant 0 : index
    %11 = vector.load %arg5[%c0_9, %c0_10] : memref<1x256xf32, #tpu.memory_space<vmem>>, vector<1x256xf32>
    %12 = vector.broadcast %11 : vector<1x256xf32> to vector<8x256xf32>
    %13 = arith.addf %10, %12 : vector<8x256xf32>
    %14 = vector.extract_strided_slice %13 {offsets = [0, 0], sizes = [8, 128], strides = [1, 1]} : vector<8x256xf32> to vector<8x128xf32>
    %15 = vector.extract_strided_slice %13 {offsets = [0, 128], sizes = [8, 128], strides = [1, 1]} : vector<8x256xf32> to vector<8x128xf32>
    %16 = math.exp %15 : vector<8x128xf32>
    %c0_11 = arith.constant 0 : index
    %c0_12 = arith.constant 0 : index
    %17 = vector.load %arg6[%c0_11, %c0_12] : memref<8x128xf32, #tpu.memory_space<vmem>>, vector<8x128xf32>
    %18 = arith.mulf %16, %17 : vector<8x128xf32>
    %19 = arith.addf %14, %18 : vector<8x128xf32>
    %c0_13 = arith.constant 0 : index
    %c0_14 = arith.constant 0 : index
    %20 = vector.load %arg12[%c0_13, %c0_14] : memref<8x128xf32, #tpu.memory_space<vmem>>, vector<8x128xf32>
    tpu.vector_store %arg12[%c0_13, %c0_14], %19 {strides = array<i32>} : memref<8x128xf32, #tpu.memory_space<vmem>>, vector<8x128xf32>,
    %21 = arith.truncf %19 : vector<8x128xf32> to vector<8x128xbf16>
    %c0_15 = arith.constant 0 : index
    %c0_16 = arith.constant 0 : index
    %22 = vector.load %arg7[%c0_15, %c0_16] : memref<128x512xbf16, #tpu.memory_space<vmem>>, vector<128x512xbf16>
    %cst_17 = arith.constant dense<0.000000e+00> : vector<8x512xf32>
    %23 = tpu.matmul %21, %22, %cst_17 {dimension_numbers = #tpu.dot_dimension_numbers<[1], [0], [0], [1], [0, 0, 1, 1], [], []>} : vector<8x128xbf16>, vector<128x512xbf16>, vector<8x512xf32> -> vector<8x512xf32>
    %c0_18 = arith.constant 0 : index
    %c0_19 = arith.constant 0 : index
    %24 = vector.load %arg8[%c0_18, %c0_19] : memref<1x512xf32, #tpu.memory_space<vmem>>, vector<1x512xf32>
    %25 = vector.broadcast %24 : vector<1x512xf32> to vector<8x512xf32>
    %26 = arith.addf %23, %25 : vector<8x512xf32>
    %cst_20 = arith.constant 0.000000e+00 : f32
    %27 = vector.broadcast %cst_20 : f32 to vector<8x512xf32>
    %28 = arith.maximumf %26, %27 : vector<8x512xf32>
    %29 = arith.truncf %28 : vector<8x512xf32> to vector<8x512xbf16>
    %c0_21 = arith.constant 0 : index
    %c0_22 = arith.constant 0 : index
    %30 = vector.load %arg9[%c0_21, %c0_22] : memref<512x896xbf16, #tpu.memory_space<vmem>>, vector<512x896xbf16>
    %cst_23 = arith.constant dense<0.000000e+00> : vector<8x896xf32>
    %31 = tpu.matmul %29, %30, %cst_23 {dimension_numbers = #tpu.dot_dimension_numbers<[1], [0], [0], [1], [0, 0, 1, 1], [], []>} : vector<8x512xbf16>, vector<512x896xbf16>, vector<8x896xf32> -> vector<8x896xf32>
    %c0_24 = arith.constant 0 : index
    %c0_25 = arith.constant 0 : index
    %32 = vector.load %arg10[%c0_24, %c0_25] : memref<1x896xf32, #tpu.memory_space<vmem>>, vector<1x896xf32>
    %33 = vector.broadcast %32 : vector<1x896xf32> to vector<8x896xf32>
    %34 = arith.addf %31, %33 : vector<8x896xf32>
    %cst_26 = arith.constant 0.000000e+00 : f32
    %35 = vector.broadcast %cst_26 : f32 to vector<8x896xf32>
    %36 = arith.subf %35, %34 : vector<8x896xf32>
    %37 = math.exp %36 : vector<8x896xf32>
    %cst_27 = arith.constant 1.000000e+00 : f32
    %38 = vector.broadcast %cst_27 : f32 to vector<8x896xf32>
    %39 = arith.addf %38, %37 : vector<8x896xf32>
    %40 = tpu.reciprocal %39 {approx = true} : vector<8x896xf32> -> vector<8x896xf32>
    %c0_28 = arith.constant 0 : index
    %c0_29 = arith.constant 0 : index
    %41 = vector.load %arg11[%c0_28, %c0_29] : memref<8x896xf32, #tpu.memory_space<vmem>>, vector<8x896xf32>
    tpu.vector_store %arg11[%c0_28, %c0_29], %40 {strides = array<i32>} : memref<8x896xf32, #tpu.memory_space<vmem>>, vector<8x896xf32>,
    return
  }
  func.func @transform_0(%arg0: i32) -> (i32, i32) {
    %c0_i32 = arith.constant 0 : i32
    %c0_i32_0 = arith.constant 0 : i32
    return %arg0, %c0_i32 : i32, i32
  }
  func.func @transform_1(%arg0: i32) -> (i32, i32) {
    %c0_i32 = arith.constant 0 : i32
    %c0_i32_0 = arith.constant 0 : i32
    %c0_i32_1 = arith.constant 0 : i32
    return %c0_i32, %c0_i32_0 : i32, i32
  }
  func.func @transform_2(%arg0: i32) -> (i32, i32) {
    %c0_i32 = arith.constant 0 : i32
    %c0_i32_0 = arith.constant 0 : i32
    %c0_i32_1 = arith.constant 0 : i32
    return %c0_i32, %c0_i32_0 : i32, i32
  }
  func.func @transform_3(%arg0: i32) -> (i32, i32) {
    %c0_i32 = arith.constant 0 : i32
    %c0_i32_0 = arith.constant 0 : i32
    %c0_i32_1 = arith.constant 0 : i32
    return %c0_i32, %c0_i32_0 : i32, i32
  }
  func.func @transform_4(%arg0: i32) -> (i32, i32) {
    %c0_i32 = arith.constant 0 : i32
    %c0_i32_0 = arith.constant 0 : i32
    %c0_i32_1 = arith.constant 0 : i32
    return %c0_i32, %c0_i32_0 : i32, i32
  }
  func.func @transform_5(%arg0: i32) -> (i32, i32) {
    %c0_i32 = arith.constant 0 : i32
    %c0_i32_0 = arith.constant 0 : i32
    return %arg0, %c0_i32 : i32, i32
  }
  func.func @transform_6(%arg0: i32) -> (i32, i32) {
    %c0_i32 = arith.constant 0 : i32
    %c0_i32_0 = arith.constant 0 : i32
    %c0_i32_1 = arith.constant 0 : i32
    return %c0_i32, %c0_i32_0 : i32, i32
  }
  func.func @transform_7(%arg0: i32) -> (i32, i32) {
    %c0_i32 = arith.constant 0 : i32
    %c0_i32_0 = arith.constant 0 : i32
    %c0_i32_1 = arith.constant 0 : i32
    return %c0_i32, %c0_i32_0 : i32, i32
  }
  func.func @transform_8(%arg0: i32) -> (i32, i32) {
    %c0_i32 = arith.constant 0 : i32
    %c0_i32_0 = arith.constant 0 : i32
    %c0_i32_1 = arith.constant 0 : i32
    return %c0_i32, %c0_i32_0 : i32, i32
  }
  func.func @transform_9(%arg0: i32) -> (i32, i32) {
    %c0_i32 = arith.constant 0 : i32
    %c0_i32_0 = arith.constant 0 : i32
    %c0_i32_1 = arith.constant 0 : i32
    return %c0_i32, %c0_i32_0 : i32, i32
  }
  func.func @transform_10(%arg0: i32) -> (i32, i32) {
    %c0_i32 = arith.constant 0 : i32
    %c0_i32_0 = arith.constant 0 : i32
    return %arg0, %c0_i32 : i32, i32
  }
  func.func @transform_11(%arg0: i32) -> (i32, i32) {
    %c0_i32 = arith.constant 0 : i32
    %c0_i32_0 = arith.constant 0 : i32
    return %arg0, %c0_i32 : i32, i32
  }
}

</mosaic_0001>

<llo_original>
// kernel: vae_forward.1
$region0: #{vae_forward.1}
  #allocation0 [shape = 'u32[]', space=smem, size = 0x4, offset = 0x4, fixed_abs, tag = 'smem constant byte address 0x4 - core index']
  #allocation1 [shape = 'u32[144,128]{1,0:T(1,128)}', space=vmem, size = 0x12000, scoped, tag = 'internal scratch']
  %s0 = inlined_call_operand.vmem [shape: bf16[8,896], index: 0, kind: input, shape index: {}]
  %s1 = inlined_call_operand.vmem [shape: bf16[896,512], index: 1, kind: input, shape index: {}]
  %s2 = inlined_call_operand.vmem [shape: f32[1,512], index: 2, kind: input, shape index: {}]
  %s3 = inlined_call_operand.vmem [shape: bf16[512,256], index: 3, kind: input, shape index: {}]
  %s4 = inlined_call_operand.vmem [shape: f32[1,256], index: 4, kind: input, shape index: {}]
  %s5 = inlined_call_operand.vmem [shape: f32[8,128], index: 5, kind: input, shape index: {}]
  %s6 = inlined_call_operand.vmem [shape: bf16[128,512], index: 6, kind: input, shape index: {}]
  %s7 = inlined_call_operand.vmem [shape: f32[1,512], index: 7, kind: input, shape index: {}]
  %s8 = inlined_call_operand.vmem [shape: bf16[512,896], index: 8, kind: input, shape index: {}]
  %s9 = inlined_call_operand.vmem [shape: f32[1,896], index: 9, kind: input, shape index: {}]
  %s10 = inlined_call_operand.vmem [shape: f32[8,896], index: 10, kind: output, shape index: {0}]
  %s11 = inlined_call_operand.vmem [shape: f32[8,128], index: 11, kind: output, shape index: {1}]
  %12 = xla_tuple %s10, %s11
  %s13 = sld [smem:[#allocation0]]
  $region58: #{vae_forward.1} parent=0
    _
  %s15 = ssub.s32 1, %s13
  %s16 = scalar_select 0, %s15, %s13
  // Predicated region
  $region2: #{vae_forward.1} parent=0 // pred_check
    _
  $region3: #{vae_forward.1} parent=0 // pred_check_branch
    %18 = sbr.rel (0) target = $region5
  $region4: #{vae_forward.1} parent=0 // pred_region
    _
  $region5: #{vae_forward.1} parent=0 // pred_fallthru
    _
  // Predicated region
  $region6: #{vae_forward.1} parent=0 // pred_check
    _
  $region7: #{vae_forward.1} parent=0 // pred_check_branch
    %20 = sbr.rel (0) target = $region9
  $region8: #{vae_forward.1} parent=0 // pred_region
    _
  $region9: #{vae_forward.1} parent=0 // pred_fallthru
    _
  // Predicated region
  $region10: #{vae_forward.1} parent=0 // pred_check
    _
  $region11: #{vae_forward.1} parent=0 // pred_check_branch
    %22 = sbr.rel (0) target = $region13
  $region12: #{vae_forward.1} parent=0 // pred_region
    _
  $region13: #{vae_forward.1} parent=0 // pred_fallthru
    _
  // Predicated region
  $region14: #{vae_forward.1} parent=0 // pred_check
    _
  $region15: #{vae_forward.1} parent=0 // pred_check_branch
    %24 = sbr.rel (0) target = $region17
  $region16: #{vae_forward.1} parent=0 // pred_region
    _
  $region17: #{vae_forward.1} parent=0 // pred_fallthru
    _
  // Predicated region
  $region18: #{vae_forward.1} parent=0 // pred_check
    _
  $region19: #{vae_forward.1} parent=0 // pred_check_branch
    %26 = sbr.rel (0) target = $region21
  $region20: #{vae_forward.1} parent=0 // pred_region
    _
  $region21: #{vae_forward.1} parent=0 // pred_fallthru
    _
  // Predicated region
  $region22: #{vae_forward.1} parent=0 // pred_check
    _
  $region23: #{vae_forward.1} parent=0 // pred_check_branch
    %28 = sbr.rel (0) target = $region25
  $region24: #{vae_forward.1} parent=0 // pred_region
    _
  $region25: #{vae_forward.1} parent=0 // pred_fallthru
    _
  // Predicated region
  $region26: #{vae_forward.1} parent=0 // pred_check
    _
  $region27: #{vae_forward.1} parent=0 // pred_check_branch
    %30 = sbr.rel (0) target = $region29
  $region28: #{vae_forward.1} parent=0 // pred_region
    _
  $region29: #{vae_forward.1} parent=0 // pred_fallthru
    _
  // Predicated region
  $region30: #{vae_forward.1} parent=0 // pred_check
    _
  $region31: #{vae_forward.1} parent=0 // pred_check_branch
    %32 = sbr.rel (0) target = $region33
  $region32: #{vae_forward.1} parent=0 // pred_region
    _
  $region33: #{vae_forward.1} parent=0 // pred_fallthru
    _
  // Predicated region
  $region34: #{vae_forward.1} parent=0 // pred_check
    _
  $region35: #{vae_forward.1} parent=0 // pred_check_branch
    %34 = sbr.rel (0) target = $region37
  $region36: #{vae_forward.1} parent=0 // pred_region
    _
  $region37: #{vae_forward.1} parent=0 // pred_fallthru
    _
  // Predicated region
  $region38: #{vae_forward.1} parent=0 // pred_check
    _
  $region39: #{vae_forward.1} parent=0 // pred_check_branch
    %36 = sbr.rel (0) target = $region41
  $region40: #{vae_forward.1} parent=0 // pred_region
    _
  $region41: #{vae_forward.1} parent=0 // pred_fallthru
    _
  %v38 = vld [vmem:[%s0] sm:$0xff]
  %v39 = vld [vmem:[%s0 + $0x8] sm:$0xff]
  %v40 = vld [vmem:[%s0 + $0x10] sm:$0xff]
  %v41 = vld [vmem:[%s0 + $0x18] sm:$0xf]
  %v42 = vld [vmem:[%s1] sm:$0xff]
  %v43 = vld [vmem:[%s1 + $0x8] sm:$0xff]
  %v44 = vld [vmem:[%s1 + $0x10] sm:$0xff]
  %v45 = vld [vmem:[%s1 + $0x18] sm:$0xff]
  %v46 = vld [vmem:[%s1 + $0x20] sm:$0xff]
  %v47 = vld [vmem:[%s1 + $0x28] sm:$0xff]
  %v48 = vld [vmem:[%s1 + $0x30] sm:$0xff]
  %v49 = vld [vmem:[%s1 + $0x38] sm:$0xff]
  %v50 = vld [vmem:[%s1 + $0x40] sm:$0xff]
  %v51 = vld [vmem:[%s1 + $0x48] sm:$0xff]
  %v52 = vld [vmem:[%s1 + $0x50] sm:$0xff]
  %v53 = vld [vmem:[%s1 + $0x58] sm:$0xff]
  %v54 = vld [vmem:[%s1 + $0x60] sm:$0xff]
  %v55 = vld [vmem:[%s1 + $0x68] sm:$0xff]
  %v56 = vld [vmem:[%s1 + $0x70] sm:$0xff]
  %v57 = vld [vmem:[%s1 + $0x78] sm:$0xff]
  %v58 = vld [vmem:[%s1 + $0x80] sm:$0xff]
  %v59 = vld [vmem:[%s1 + $0x88] sm:$0xff]
  %v60 = vld [vmem:[%s1 + $0x90] sm:$0xff]
  %v61 = vld [vmem:[%s1 + $0x98] sm:$0xff]
  %v62 = vld [vmem:[%s1 + $0xa0] sm:$0xff]
  %v63 = vld [vmem:[%s1 + $0xa8] sm:$0xff]
  %v64 = vld [vmem:[%s1 + $0xb0] sm:$0xff]
  %v65 = vld [vmem:[%s1 + $0xb8] sm:$0xff]
  %v66 = vld [vmem:[%s1 + $0xc0] sm:$0xff]
  %v67 = vld [vmem:[%s1 + $0xc8] sm:$0xff]
  %v68 = vld [vmem:[%s1 + $0xd0] sm:$0xff]
  %v69 = vld [vmem:[%s1 + $0xd8] sm:$0xff]
  %v70 = vld [vmem:[%s1 + $0xe0] sm:$0xff]
  %v71 = vld [vmem:[%s1 + $0xe8] sm:$0xff]
  %v72 = vld [vmem:[%s1 + $0xf0] sm:$0xff]
  %v73 = vld [vmem:[%s1 + $0xf8] sm:$0xff]
  %v74 = vld [vmem:[%s1 + $0x100] sm:$0xff]
  %v75 = vld [vmem:[%s1 + $0x108] sm:$0xff]
  %v76 = vld [vmem:[%s1 + $0x110] sm:$0xff]
  %v77 = vld [vmem:[%s1 + $0x118] sm:$0xff]
  %v78 = vld [vmem:[%s1 + $0x120] sm:$0xff]
  %v79 = vld [vmem:[%s1 + $0x128] sm:$0xff]
  %v80 = vld [vmem:[%s1 + $0x130] sm:$0xff]
  %v81 = vld [vmem:[%s1 + $0x138] sm:$0xff]
  %v82 = vld [vmem:[%s1 + $0x140] sm:$0xff]
  %v83 = vld [vmem:[%s1 + $0x148] sm:$0xff]
  %v84 = vld [vmem:[%s1 + $0x150] sm:$0xff]
  %v85 = vld [vmem:[%s1 + $0x158] sm:$0xff]
  %v86 = vld [vmem:[%s1 + $0x160] sm:$0xff]
  %v87 = vld [vmem:[%s1 + $0x168] sm:$0xff]
  %v88 = vld [vmem:[%s1 + $0x170] sm:$0xff]
  %v89 = vld [vmem:[%s1 + $0x178] sm:$0xff]
  %v90 = vld [vmem:[%s1 + $0x180] sm:$0xff]
  %v91 = vld [vmem:[%s1 + $0x188] sm:$0xff]
  %v92 = vld [vmem:[%s1 + $0x190] sm:$0xff]
  %v93 = vld [vmem:[%s1 + $0x198] sm:$0xff]
  %v94 = vld [vmem:[%s1 + $0x1a0] sm:$0xff]
  %v95 = vld [vmem:[%s1 + $0x1a8] sm:$0xff]
  %v96 = vld [vmem:[%s1 + $0x1b0] sm:$0xff]
  %v97 = vld [vmem:[%s1 + $0x1b8] sm:$0xff]
  %v98 = vld [vmem:[%s1 + $0x1c0] sm:$0xff]
  %v99 = vld [vmem:[%s1 + $0x1c8] sm:$0xff]
  %v100 = vld [vmem:[%s1 + $0x1d0] sm:$0xff]
  %v101 = vld [vmem:[%s1 + $0x1d8] sm:$0xff]
  %v102 = vld [vmem:[%s1 + $0x1e0] sm:$0xff]
  %v103 = vld [vmem:[%s1 + $0x1e8] sm:$0xff]
  %v104 = vld [vmem:[%s1 + $0x1f0] sm:$0xff]
  %v105 = vld [vmem:[%s1 + $0x1f8] sm:$0xff]
  %v106 = vld [vmem:[%s1 + $0x200] sm:$0xff]
  %v107 = vld [vmem:[%s1 + $0x208] sm:$0xff]
  %v108 = vld [vmem:[%s1 + $0x210] sm:$0xff]
  %v109 = vld [vmem:[%s1 + $0x218] sm:$0xff]
  %v110 = vld [vmem:[%s1 + $0x220] sm:$0xff]
  %v111 = vld [vmem:[%s1 + $0x228] sm:$0xff]
  %v112 = vld [vmem:[%s1 + $0x230] sm:$0xff]
  %v113 = vld [vmem:[%s1 + $0x238] sm:$0xff]
  %v114 = vld [vmem:[%s1 + $0x240] sm:$0xff]
  %v115 = vld [vmem:[%s1 + $0x248] sm:$0xff]
  %v116 = vld [vmem:[%s1 + $0x250] sm:$0xff]
  %v117 = vld [vmem:[%s1 + $0x258] sm:$0xff]
  %v118 = vld [vmem:[%s1 + $0x260] sm:$0xff]
  %v119 = vld [vmem:[%s1 + $0x268] sm:$0xff]
  %v120 = vld [vmem:[%s1 + $0x270] sm:$0xff]
  %v121 = vld [vmem:[%s1 + $0x278] sm:$0xff]
  %v122 = vld [vmem:[%s1 + $0x280] sm:$0xff]
  %v123 = vld [vmem:[%s1 + $0x288] sm:$0xff]
  %v124 = vld [vmem:[%s1 + $0x290] sm:$0xff]
  %v125 = vld [vmem:[%s1 + $0x298] sm:$0xff]
  %v126 = vld [vmem:[%s1 + $0x2a0] sm:$0xff]
  %v127 = vld [vmem:[%s1 + $0x2a8] sm:$0xff]
  %v128 = vld [vmem:[%s1 + $0x2b0] sm:$0xff]
  %v129 = vld [vmem:[%s1 + $0x2b8] sm:$0xff]
  %v130 = vld [vmem:[%s1 + $0x2c0] sm:$0xff]
  %v131 = vld [vmem:[%s1 + $0x2c8] sm:$0xff]
  %v132 = vld [vmem:[%s1 + $0x2d0] sm:$0xff]
  %v133 = vld [vmem:[%s1 + $0x2d8] sm:$0xff]
  %v134 = vld [vmem:[%s1 + $0x2e0] sm:$0xff]
  %v135 = vld [vmem:[%s1 + $0x2e8] sm:$0xff]
  %v136 = vld [vmem:[%s1 + $0x2f0] sm:$0xff]
  %v137 = vld [vmem:[%s1 + $0x2f8] sm:$0xff]
  %v138 = vld [vmem:[%s1 + $0x300] sm:$0xff]
  %v139 = vld [vmem:[%s1 + $0x308] sm:$0xff]
  %v140 = vld [vmem:[%s1 + $0x310] sm:$0xff]
  %v141 = vld [vmem:[%s1 + $0x318] sm:$0xff]
  %v142 = vld [vmem:[%s1 + $0x320] sm:$0xff]
  %v143 = vld [vmem:[%s1 + $0x328] sm:$0xff]
  %v144 = vld [vmem:[%s1 + $0x330] sm:$0xff]
  %v145 = vld [vmem:[%s1 + $0x338] sm:$0xff]
  %v146 = vld [vmem:[%s1 + $0x340] sm:$0xff]
  %v147 = vld [vmem:[%s1 + $0x348] sm:$0xff]
  %v148 = vld [vmem:[%s1 + $0x350] sm:$0xff]
  %v149 = vld [vmem:[%s1 + $0x358] sm:$0xff]
  %v150 = vld [vmem:[%s1 + $0x360] sm:$0xff]
  %v151 = vld [vmem:[%s1 + $0x368] sm:$0xff]
  %v152 = vld [vmem:[%s1 + $0x370] sm:$0xff]
  %v153 = vld [vmem:[%s1 + $0x378] sm:$0xff]
  %v154 = vld [vmem:[%s1 + $0x380] sm:$0xff]
  %v155 = vld [vmem:[%s1 + $0x388] sm:$0xff]
  %v156 = vld [vmem:[%s1 + $0x390] sm:$0xff]
  %v157 = vld [vmem:[%s1 + $0x398] sm:$0xff]
  %v158 = vld [vmem:[%s1 + $0x3a0] sm:$0xff]
  %v159 = vld [vmem:[%s1 + $0x3a8] sm:$0xff]
  %v160 = vld [vmem:[%s1 + $0x3b0] sm:$0xff]
  %v161 = vld [vmem:[%s1 + $0x3b8] sm:$0xff]
  %v162 = vld [vmem:[%s1 + $0x3c0] sm:$0xff]
  %v163 = vld [vmem:[%s1 + $0x3c8] sm:$0xff]
  %v164 = vld [vmem:[%s1 + $0x3d0] sm:$0xff]
  %v165 = vld [vmem:[%s1 + $0x3d8] sm:$0xff]
  %v166 = vld [vmem:[%s1 + $0x3e0] sm:$0xff]
  %v167 = vld [vmem:[%s1 + $0x3e8] sm:$0xff]
  %v168 = vld [vmem:[%s1 + $0x3f0] sm:$0xff]
  %v169 = vld [vmem:[%s1 + $0x3f8] sm:$0xff]
  %v170 = vld [vmem:[%s1 + $0x400] sm:$0xff]
  %v171 = vld [vmem:[%s1 + $0x408] sm:$0xff]
  %v172 = vld [vmem:[%s1 + $0x410] sm:$0xff]
  %v173 = vld [vmem:[%s1 + $0x418] sm:$0xff]
  %v174 = vld [vmem:[%s1 + $0x420] sm:$0xff]
  %v175 = vld [vmem:[%s1 + $0x428] sm:$0xff]
  %v176 = vld [vmem:[%s1 + $0x430] sm:$0xff]
  %v177 = vld [vmem:[%s1 + $0x438] sm:$0xff]
  %v178 = vld [vmem:[%s1 + $0x440] sm:$0xff]
  %v179 = vld [vmem:[%s1 + $0x448] sm:$0xff]
  %v180 = vld [vmem:[%s1 + $0x450] sm:$0xff]
  %v181 = vld [vmem:[%s1 + $0x458] sm:$0xff]
  %v182 = vld [vmem:[%s1 + $0x460] sm:$0xff]
  %v183 = vld [vmem:[%s1 + $0x468] sm:$0xff]
  %v184 = vld [vmem:[%s1 + $0x470] sm:$0xff]
  %v185 = vld [vmem:[%s1 + $0x478] sm:$0xff]
  %v186 = vld [vmem:[%s1 + $0x480] sm:$0xff]
  %v187 = vld [vmem:[%s1 + $0x488] sm:$0xff]
  %v188 = vld [vmem:[%s1 + $0x490] sm:$0xff]
  %v189 = vld [vmem:[%s1 + $0x498] sm:$0xff]
  %v190 = vld [vmem:[%s1 + $0x4a0] sm:$0xff]
  %v191 = vld [vmem:[%s1 + $0x4a8] sm:$0xff]
  %v192 = vld [vmem:[%s1 + $0x4b0] sm:$0xff]
  %v193 = vld [vmem:[%s1 + $0x4b8] sm:$0xff]
  %v194 = vld [vmem:[%s1 + $0x4c0] sm:$0xff]
  %v195 = vld [vmem:[%s1 + $0x4c8] sm:$0xff]
  %v196 = vld [vmem:[%s1 + $0x4d0] sm:$0xff]
  %v197 = vld [vmem:[%s1 + $0x4d8] sm:$0xff]
  %v198 = vld [vmem:[%s1 + $0x4e0] sm:$0xff]
  %v199 = vld [vmem:[%s1 + $0x4e8] sm:$0xff]
  %v200 = vld [vmem:[%s1 + $0x4f0] sm:$0xff]
  %v201 = vld [vmem:[%s1 + $0x4f8] sm:$0xff]
  %v202 = vld [vmem:[%s1 + $0x500] sm:$0xff]
  %v203 = vld [vmem:[%s1 + $0x508] sm:$0xff]
  %v204 = vld [vmem:[%s1 + $0x510] sm:$0xff]
  %v205 = vld [vmem:[%s1 + $0x518] sm:$0xff]
  %v206 = vld [vmem:[%s1 + $0x520] sm:$0xff]
  %v207 = vld [vmem:[%s1 + $0x528] sm:$0xff]
  %v208 = vld [vmem:[%s1 + $0x530] sm:$0xff]
  %v209 = vld [vmem:[%s1 + $0x538] sm:$0xff]
  %v210 = vld [vmem:[%s1 + $0x540] sm:$0xff]
  %v211 = vld [vmem:[%s1 + $0x548] sm:$0xff]
  %v212 = vld [vmem:[%s1 + $0x550] sm:$0xff]
  %v213 = vld [vmem:[%s1 + $0x558] sm:$0xff]
  %v214 = vld [vmem:[%s1 + $0x560] sm:$0xff]
  %v215 = vld [vmem:[%s1 + $0x568] sm:$0xff]
  %v216 = vld [vmem:[%s1 + $0x570] sm:$0xff]
  %v217 = vld [vmem:[%s1 + $0x578] sm:$0xff]
  %v218 = vld [vmem:[%s1 + $0x580] sm:$0xff]
  %v219 = vld [vmem:[%s1 + $0x588] sm:$0xff]
  %v220 = vld [vmem:[%s1 + $0x590] sm:$0xff]
  %v221 = vld [vmem:[%s1 + $0x598] sm:$0xff]
  %v222 = vld [vmem:[%s1 + $0x5a0] sm:$0xff]
  %v223 = vld [vmem:[%s1 + $0x5a8] sm:$0xff]
  %v224 = vld [vmem:[%s1 + $0x5b0] sm:$0xff]
  %v225 = vld [vmem:[%s1 + $0x5b8] sm:$0xff]
  %v226 = vld [vmem:[%s1 + $0x5c0] sm:$0xff]
  %v227 = vld [vmem:[%s1 + $0x5c8] sm:$0xff]
  %v228 = vld [vmem:[%s1 + $0x5d0] sm:$0xff]
  %v229 = vld [vmem:[%s1 + $0x5d8] sm:$0xff]
  %v230 = vld [vmem:[%s1 + $0x5e0] sm:$0xff]
  %v231 = vld [vmem:[%s1 + $0x5e8] sm:$0xff]
  %v232 = vld [vmem:[%s1 + $0x5f0] sm:$0xff]
  %v233 = vld [vmem:[%s1 + $0x5f8] sm:$0xff]
  %v234 = vld [vmem:[%s1 + $0x600] sm:$0xff]
  %v235 = vld [vmem:[%s1 + $0x608] sm:$0xff]
  %v236 = vld [vmem:[%s1 + $0x610] sm:$0xff]
  %v237 = vld [vmem:[%s1 + $0x618] sm:$0xff]
  %v238 = vld [vmem:[%s1 + $0x620] sm:$0xff]
  %v239 = vld [vmem:[%s1 + $0x628] sm:$0xff]
  %v240 = vld [vmem:[%s1 + $0x630] sm:$0xff]
  %v241 = vld [vmem:[%s1 + $0x638] sm:$0xff]
  %v242 = vld [vmem:[%s1 + $0x640] sm:$0xff]
  %v243 = vld [vmem:[%s1 + $0x648] sm:$0xff]
  %v244 = vld [vmem:[%s1 + $0x650] sm:$0xff]
  %v245 = vld [vmem:[%s1 + $0x658] sm:$0xff]
  %v246 = vld [vmem:[%s1 + $0x660] sm:$0xff]
  %v247 = vld [vmem:[%s1 + $0x668] sm:$0xff]
  %v248 = vld [vmem:[%s1 + $0x670] sm:$0xff]
  %v249 = vld [vmem:[%s1 + $0x678] sm:$0xff]
  %v250 = vld [vmem:[%s1 + $0x680] sm:$0xff]
  %v251 = vld [vmem:[%s1 + $0x688] sm:$0xff]
  %v252 = vld [vmem:[%s1 + $0x690] sm:$0xff]
  %v253 = vld [vmem:[%s1 + $0x698] sm:$0xff]
  %v254 = vld [vmem:[%s1 + $0x6a0] sm:$0xff]
  %v255 = vld [vmem:[%s1 + $0x6a8] sm:$0xff]
  %v256 = vld [vmem:[%s1 + $0x6b0] sm:$0xff]
  %v257 = vld [vmem:[%s1 + $0x6b8] sm:$0xff]
  %v258 = vld [vmem:[%s1 + $0x6c0] sm:$0xff]
  %v259 = vld [vmem:[%s1 + $0x6c8] sm:$0xff]
  %v260 = vld [vmem:[%s1 + $0x6d0] sm:$0xff]
  %v261 = vld [vmem:[%s1 + $0x6d8] sm:$0xff]
  %v262 = vld [vmem:[%s1 + $0x6e0] sm:$0xff]
  %v263 = vld [vmem:[%s1 + $0x6e8] sm:$0xff]
  %v264 = vld [vmem:[%s1 + $0x6f0] sm:$0xff]
  %v265 = vld [vmem:[%s1 + $0x6f8] sm:$0xff]
  %v266 = vld [vmem:[%s2] sm:$0xf]
  %v268 = vlaneseq
  %v269 = vshrl.u32 %v268, 7
  %v270 = vsub.s32 0, %v269
  %v271 = vrot.slane %v266, %v270
  %v272 = vlaneseq
  %v273 = vshrl.u32 %v272, 7
  %v274 = vsub.s32 1, %v273
  %v275 = vrot.slane %v266, %v274
  %v276 = vlaneseq
  %v277 = vshrl.u32 %v276, 7
  %v278 = vsub.s32 2, %v277
  %v279 = vrot.slane %v266, %v278
  %v280 = vlaneseq
  %v281 = vshrl.u32 %v280, 7
  %v282 = vsub.s32 3, %v281
  %v283 = vrot.slane %v266, %v282
  %v292 = vunpack.c.l.b16 %v38
  %v293 = vunpack.c.h.b16 %v38
  %v294 = vunpack.c.l.b16 %v39
  %v295 = vunpack.c.h.b16 %v39
  %v296 = vunpack.c.l.b16 %v40
  %v297 = vunpack.c.h.b16 %v40
  %v298 = vunpack.c.l.b16 %v41
  %v299 = vpack.c.b16 %v292, %v292
  %v300 = vpack.c.b16 %v293, %v293
  %v301 = vpack.c.b16 %v294, %v294
  %v302 = vpack.c.b16 %v295, %v295
  %v303 = vpack.c.b16 %v296, %v296
  %v304 = vpack.c.b16 %v297, %v297
  %v305 = vpack.c.b16 %v298, %v298
  %v537 = vunpack.c.l.b16 %v42
  %v538 = vunpack.c.h.b16 %v42
  %v539 = vunpack.c.l.b16 %v43
  %v540 = vunpack.c.h.b16 %v43
  %v541 = vunpack.c.l.b16 %v44
  %v542 = vunpack.c.h.b16 %v44
  %v543 = vunpack.c.l.b16 %v45
  %v544 = vunpack.c.h.b16 %v45
  %v545 = vunpack.c.l.b16 %v46
  %v546 = vunpack.c.h.b16 %v46
  %v547 = vunpack.c.l.b16 %v47
  %v548 = vunpack.c.h.b16 %v47
  %v549 = vunpack.c.l.b16 %v48
  %v550 = vunpack.c.h.b16 %v48
  %v551 = vunpack.c.l.b16 %v49
  %v552 = vunpack.c.h.b16 %v49
  %v553 = vunpack.c.l.b16 %v50
  %v554 = vunpack.c.h.b16 %v50
  %v555 = vunpack.c.l.b16 %v51
  %v556 = vunpack.c.h.b16 %v51
  %v557 = vunpack.c.l.b16 %v52
  %v558 = vunpack.c.h.b16 %v52
  %v559 = vunpack.c.l.b16 %v53
  %v560 = vunpack.c.h.b16 %v53
  %v561 = vunpack.c.l.b16 %v54
  %v562 = vunpack.c.h.b16 %v54
  %v563 = vunpack.c.l.b16 %v55
  %v564 = vunpack.c.h.b16 %v55
  %v565 = vunpack.c.l.b16 %v56
  %v566 = vunpack.c.h.b16 %v56
  %v567 = vunpack.c.l.b16 %v57
  %v568 = vunpack.c.h.b16 %v57
  %v569 = vunpack.c.l.b16 %v58
  %v570 = vunpack.c.h.b16 %v58
  %v571 = vunpack.c.l.b16 %v59
  %v572 = vunpack.c.h.b16 %v59
  %v573 = vunpack.c.l.b16 %v60
  %v574 = vunpack.c.h.b16 %v60
  %v575 = vunpack.c.l.b16 %v61
  %v576 = vunpack.c.h.b16 %v61
  %v577 = vunpack.c.l.b16 %v62
  %v578 = vunpack.c.h.b16 %v62
  %v579 = vunpack.c.l.b16 %v63
  %v580 = vunpack.c.h.b16 %v63
  %v581 = vunpack.c.l.b16 %v64
  %v582 = vunpack.c.h.b16 %v64
  %v583 = vunpack.c.l.b16 %v65
  %v584 = vunpack.c.h.b16 %v65
  %v585 = vunpack.c.l.b16 %v66
  %v586 = vunpack.c.h.b16 %v66
  %v587 = vunpack.c.l.b16 %v67
  %v588 = vunpack.c.h.b16 %v67
  %v589 = vunpack.c.l.b16 %v68
  %v590 = vunpack.c.h.b16 %v68
  %v591 = vunpack.c.l.b16 %v69
  %v592 = vunpack.c.h.b16 %v69
  %v593 = vunpack.c.l.b16 %v70
  %v594 = vunpack.c.h.b16 %v70
  %v595 = vunpack.c.l.b16 %v71
  %v596 = vunpack.c.h.b16 %v71
  %v597 = vunpack.c.l.b16 %v72
  %v598 = vunpack.c.h.b16 %v72
  %v599 = vunpack.c.l.b16 %v73
  %v600 = vunpack.c.h.b16 %v73
  %v601 = vunpack.c.l.b16 %v74
  %v602 = vunpack.c.h.b16 %v74
  %v603 = vunpack.c.l.b16 %v75
  %v604 = vunpack.c.h.b16 %v75
  %v605 = vunpack.c.l.b16 %v76
  %v606 = vunpack.c.h.b16 %v76
  %v607 = vunpack.c.l.b16 %v77
  %v608 = vunpack.c.h.b16 %v77
  %v609 = vunpack.c.l.b16 %v78
  %v610 = vunpack.c.h.b16 %v78
  %v611 = vunpack.c.l.b16 %v79
  %v612 = vunpack.c.h.b16 %v79
  %v613 = vunpack.c.l.b16 %v80
  %v614 = vunpack.c.h.b16 %v80
  %v615 = vunpack.c.l.b16 %v81
  %v616 = vunpack.c.h.b16 %v81
  %v617 = vunpack.c.l.b16 %v82
  %v618 = vunpack.c.h.b16 %v82
  %v619 = vunpack.c.l.b16 %v83
  %v620 = vunpack.c.h.b16 %v83
  %v621 = vunpack.c.l.b16 %v84
  %v622 = vunpack.c.h.b16 %v84
  %v623 = vunpack.c.l.b16 %v85
  %v624 = vunpack.c.h.b16 %v85
  %v625 = vunpack.c.l.b16 %v86
  %v626 = vunpack.c.h.b16 %v86
  %v627 = vunpack.c.l.b16 %v87
  %v628 = vunpack.c.h.b16 %v87
  %v629 = vunpack.c.l.b16 %v88
  %v630 = vunpack.c.h.b16 %v88
  %v631 = vunpack.c.l.b16 %v89
  %v632 = vunpack.c.h.b16 %v89
  %v633 = vunpack.c.l.b16 %v90
  %v634 = vunpack.c.h.b16 %v90
  %v635 = vunpack.c.l.b16 %v91
  %v636 = vunpack.c.h.b16 %v91
  %v637 = vunpack.c.l.b16 %v92
  %v638 = vunpack.c.h.b16 %v92
  %v639 = vunpack.c.l.b16 %v93
  %v640 = vunpack.c.h.b16 %v93
  %v641 = vunpack.c.l.b16 %v94
  %v642 = vunpack.c.h.b16 %v94
  %v643 = vunpack.c.l.b16 %v95
  %v644 = vunpack.c.h.b16 %v95
  %v645 = vunpack.c.l.b16 %v96
  %v646 = vunpack.c.h.b16 %v96
  %v647 = vunpack.c.l.b16 %v97
  %v648 = vunpack.c.h.b16 %v97
  %v649 = vunpack.c.l.b16 %v98
  %v650 = vunpack.c.h.b16 %v98
  %v651 = vunpack.c.l.b16 %v99
  %v652 = vunpack.c.h.b16 %v99
  %v653 = vunpack.c.l.b16 %v100
  %v654 = vunpack.c.h.b16 %v100
  %v655 = vunpack.c.l.b16 %v101
  %v656 = vunpack.c.h.b16 %v101
  %v657 = vunpack.c.l.b16 %v102
  %v658 = vunpack.c.h.b16 %v102
  %v659 = vunpack.c.l.b16 %v103
  %v660 = vunpack.c.h.b16 %v103
  %v661 = vunpack.c.l.b16 %v104
  %v662 = vunpack.c.h.b16 %v104
  %v663 = vunpack.c.l.b16 %v105
  %v664 = vunpack.c.h.b16 %v105
  %v665 = vunpack.c.l.b16 %v106
  %v666 = vunpack.c.h.b16 %v106
  %v667 = vunpack.c.l.b16 %v107
  %v668 = vunpack.c.h.b16 %v107
  %v669 = vunpack.c.l.b16 %v108
  %v670 = vunpack.c.h.b16 %v108
  %v671 = vunpack.c.l.b16 %v109
  %v672 = vunpack.c.h.b16 %v109
  %v673 = vunpack.c.l.b16 %v110
  %v674 = vunpack.c.h.b16 %v110
  %v675 = vunpack.c.l.b16 %v111
  %v676 = vunpack.c.h.b16 %v111
  %v677 = vunpack.c.l.b16 %v112
  %v678 = vunpack.c.h.b16 %v112
  %v679 = vunpack.c.l.b16 %v113
  %v680 = vunpack.c.h.b16 %v113
  %v681 = vunpack.c.l.b16 %v114
  %v682 = vunpack.c.h.b16 %v114
  %v683 = vunpack.c.l.b16 %v115
  %v684 = vunpack.c.h.b16 %v115
  %v685 = vunpack.c.l.b16 %v116
  %v686 = vunpack.c.h.b16 %v116
  %v687 = vunpack.c.l.b16 %v117
  %v688 = vunpack.c.h.b16 %v117
  %v689 = vunpack.c.l.b16 %v118
  %v690 = vunpack.c.h.b16 %v118
  %v691 = vunpack.c.l.b16 %v119
  %v692 = vunpack.c.h.b16 %v119
  %v693 = vunpack.c.l.b16 %v120
  %v694 = vunpack.c.h.b16 %v120
  %v695 = vunpack.c.l.b16 %v121
  %v696 = vunpack.c.h.b16 %v121
  %v697 = vunpack.c.l.b16 %v122
  %v698 = vunpack.c.h.b16 %v122
  %v699 = vunpack.c.l.b16 %v123
  %v700 = vunpack.c.h.b16 %v123
  %v701 = vunpack.c.l.b16 %v124
  %v702 = vunpack.c.h.b16 %v124
  %v703 = vunpack.c.l.b16 %v125
  %v704 = vunpack.c.h.b16 %v125
  %v705 = vunpack.c.l.b16 %v126
  %v706 = vunpack.c.h.b16 %v126
  %v707 = vunpack.c.l.b16 %v127
  %v708 = vunpack.c.h.b16 %v127
  %v709 = vunpack.c.l.b16 %v128
  %v710 = vunpack.c.h.b16 %v128
  %v711 = vunpack.c.l.b16 %v129
  %v712 = vunpack.c.h.b16 %v129
  %v713 = vunpack.c.l.b16 %v130
  %v714 = vunpack.c.h.b16 %v130
  %v715 = vunpack.c.l.b16 %v131
  %v716 = vunpack.c.h.b16 %v131
  %v717 = vunpack.c.l.b16 %v132
  %v718 = vunpack.c.h.b16 %v132
  %v719 = vunpack.c.l.b16 %v133
  %v720 = vunpack.c.h.b16 %v133
  %v721 = vunpack.c.l.b16 %v134
  %v722 = vunpack.c.h.b16 %v134
  %v723 = vunpack.c.l.b16 %v135
  %v724 = vunpack.c.h.b16 %v135
  %v725 = vunpack.c.l.b16 %v136
  %v726 = vunpack.c.h.b16 %v136
  %v727 = vunpack.c.l.b16 %v137
  %v728 = vunpack.c.h.b16 %v137
  %v729 = vunpack.c.l.b16 %v138
  %v730 = vunpack.c.h.b16 %v138
  %v731 = vunpack.c.l.b16 %v139
  %v732 = vunpack.c.h.b16 %v139
  %v733 = vunpack.c.l.b16 %v140
  %v734 = vunpack.c.h.b16 %v140
  %v735 = vunpack.c.l.b16 %v141
  %v736 = vunpack.c.h.b16 %v141
  %v737 = vunpack.c.l.b16 %v142
  %v738 = vunpack.c.h.b16 %v142
  %v739 = vunpack.c.l.b16 %v143
  %v740 = vunpack.c.h.b16 %v143
  %v741 = vunpack.c.l.b16 %v144
  %v742 = vunpack.c.h.b16 %v144
  %v743 = vunpack.c.l.b16 %v145
  %v744 = vunpack.c.h.b16 %v145
  %v745 = vunpack.c.l.b16 %v146
  %v746 = vunpack.c.h.b16 %v146
  %v747 = vunpack.c.l.b16 %v147
  %v748 = vunpack.c.h.b16 %v147
  %v749 = vunpack.c.l.b16 %v148
  %v750 = vunpack.c.h.b16 %v148
  %v751 = vunpack.c.l.b16 %v149
  %v752 = vunpack.c.h.b16 %v149
  %v753 = vunpack.c.l.b16 %v150
  %v754 = vunpack.c.h.b16 %v150
  %v755 = vunpack.c.l.b16 %v151
  %v756 = vunpack.c.h.b16 %v151
  %v757 = vunpack.c.l.b16 %v152
  %v758 = vunpack.c.h.b16 %v152
  %v759 = vunpack.c.l.b16 %v153
  %v760 = vunpack.c.h.b16 %v153
  %v761 = vunpack.c.l.b16 %v154
  %v762 = vunpack.c.h.b16 %v154
  %v763 = vunpack.c.l.b16 %v155
  %v764 = vunpack.c.h.b16 %v155
  %v765 = vunpack.c.l.b16 %v156
  %v766 = vunpack.c.h.b16 %v156
  %v767 = vunpack.c.l.b16 %v157
  %v768 = vunpack.c.h.b16 %v157
  %v769 = vunpack.c.l.b16 %v158
  %v770 = vunpack.c.h.b16 %v158
  %v771 = vunpack.c.l.b16 %v159
  %v772 = vunpack.c.h.b16 %v159
  %v773 = vunpack.c.l.b16 %v160
  %v774 = vunpack.c.h.b16 %v160
  %v775 = vunpack.c.l.b16 %v161
  %v776 = vunpack.c.h.b16 %v161
  %v777 = vunpack.c.l.b16 %v162
  %v778 = vunpack.c.h.b16 %v162
  %v779 = vunpack.c.l.b16 %v163
  %v780 = vunpack.c.h.b16 %v163
  %v781 = vunpack.c.l.b16 %v164
  %v782 = vunpack.c.h.b16 %v164
  %v783 = vunpack.c.l.b16 %v165
  %v784 = vunpack.c.h.b16 %v165
  %v785 = vunpack.c.l.b16 %v166
  %v786 = vunpack.c.h.b16 %v166
  %v787 = vunpack.c.l.b16 %v167
  %v788 = vunpack.c.h.b16 %v167
  %v789 = vunpack.c.l.b16 %v168
  %v790 = vunpack.c.h.b16 %v168
  %v791 = vunpack.c.l.b16 %v169
  %v792 = vunpack.c.h.b16 %v169
  %v793 = vunpack.c.l.b16 %v170
  %v794 = vunpack.c.h.b16 %v170
  %v795 = vunpack.c.l.b16 %v171
  %v796 = vunpack.c.h.b16 %v171
  %v797 = vunpack.c.l.b16 %v172
  %v798 = vunpack.c.h.b16 %v172
  %v799 = vunpack.c.l.b16 %v173
  %v800 = vunpack.c.h.b16 %v173
  %v801 = vunpack.c.l.b16 %v174
  %v802 = vunpack.c.h.b16 %v174
  %v803 = vunpack.c.l.b16 %v175
  %v804 = vunpack.c.h.b16 %v175
  %v805 = vunpack.c.l.b16 %v176
  %v806 = vunpack.c.h.b16 %v176
  %v807 = vunpack.c.l.b16 %v177
  %v808 = vunpack.c.h.b16 %v177
  %v809 = vunpack.c.l.b16 %v178
  %v810 = vunpack.c.h.b16 %v178
  %v811 = vunpack.c.l.b16 %v179
  %v812 = vunpack.c.h.b16 %v179
  %v813 = vunpack.c.l.b16 %v180
  %v814 = vunpack.c.h.b16 %v180
  %v815 = vunpack.c.l.b16 %v181
  %v816 = vunpack.c.h.b16 %v181
  %v817 = vunpack.c.l.b16 %v182
  %v818 = vunpack.c.h.b16 %v182
  %v819 = vunpack.c.l.b16 %v183
  %v820 = vunpack.c.h.b16 %v183
  %v821 = vunpack.c.l.b16 %v184
  %v822 = vunpack.c.h.b16 %v184
  %v823 = vunpack.c.l.b16 %v185
  %v824 = vunpack.c.h.b16 %v185
  %v825 = vunpack.c.l.b16 %v186
  %v826 = vunpack.c.h.b16 %v186
  %v827 = vunpack.c.l.b16 %v187
  %v828 = vunpack.c.h.b16 %v187
  %v829 = vunpack.c.l.b16 %v188
  %v830 = vunpack.c.h.b16 %v188
  %v831 = vunpack.c.l.b16 %v189
  %v832 = vunpack.c.h.b16 %v189
  %v833 = vunpack.c.l.b16 %v190
  %v834 = vunpack.c.h.b16 %v190
  %v835 = vunpack.c.l.b16 %v191
  %v836 = vunpack.c.h.b16 %v191
  %v837 = vunpack.c.l.b16 %v192
  %v838 = vunpack.c.h.b16 %v192
  %v839 = vunpack.c.l.b16 %v193
  %v840 = vunpack.c.h.b16 %v193
  %v841 = vunpack.c.l.b16 %v194
  %v842 = vunpack.c.h.b16 %v194
  %v843 = vunpack.c.l.b16 %v195
  %v844 = vunpack.c.h.b16 %v195
  %v845 = vunpack.c.l.b16 %v196
  %v846 = vunpack.c.h.b16 %v196
  %v847 = vunpack.c.l.b16 %v197
  %v848 = vunpack.c.h.b16 %v197
  %v849 = vunpack.c.l.b16 %v198
  %v850 = vunpack.c.h.b16 %v198
  %v851 = vunpack.c.l.b16 %v199
  %v852 = vunpack.c.h.b16 %v199
  %v853 = vunpack.c.l.b16 %v200
  %v854 = vunpack.c.h.b16 %v200
  %v855 = vunpack.c.l.b16 %v201
  %v856 = vunpack.c.h.b16 %v201
  %v857 = vunpack.c.l.b16 %v202
  %v858 = vunpack.c.h.b16 %v202
  %v859 = vunpack.c.l.b16 %v203
  %v860 = vunpack.c.h.b16 %v203
  %v861 = vunpack.c.l.b16 %v204
  %v862 = vunpack.c.h.b16 %v204
  %v863 = vunpack.c.l.b16 %v205
  %v864 = vunpack.c.h.b16 %v205
  %v865 = vunpack.c.l.b16 %v206
  %v866 = vunpack.c.h.b16 %v206
  %v867 = vunpack.c.l.b16 %v207
  %v868 = vunpack.c.h.b16 %v207
  %v869 = vunpack.c.l.b16 %v208
  %v870 = vunpack.c.h.b16 %v208
  %v871 = vunpack.c.l.b16 %v209
  %v872 = vunpack.c.h.b16 %v209
  %v873 = vunpack.c.l.b16 %v210
  %v874 = vunpack.c.h.b16 %v210
  %v875 = vunpack.c.l.b16 %v211
  %v876 = vunpack.c.h.b16 %v211
  %v877 = vunpack.c.l.b16 %v212
  %v878 = vunpack.c.h.b16 %v212
  %v879 = vunpack.c.l.b16 %v213
  %v880 = vunpack.c.h.b16 %v213
  %v881 = vunpack.c.l.b16 %v214
  %v882 = vunpack.c.h.b16 %v214
  %v883 = vunpack.c.l.b16 %v215
  %v884 = vunpack.c.h.b16 %v215
  %v885 = vunpack.c.l.b16 %v216
  %v886 = vunpack.c.h.b16 %v216
  %v887 = vunpack.c.l.b16 %v217
  %v888 = vunpack.c.h.b16 %v217
  %v889 = vunpack.c.l.b16 %v218
  %v890 = vunpack.c.h.b16 %v218
  %v891 = vunpack.c.l.b16 %v219
  %v892 = vunpack.c.h.b16 %v219
  %v893 = vunpack.c.l.b16 %v220
  %v894 = vunpack.c.h.b16 %v220
  %v895 = vunpack.c.l.b16 %v221
  %v896 = vunpack.c.h.b16 %v221
  %v897 = vunpack.c.l.b16 %v222
  %v898 = vunpack.c.h.b16 %v222
  %v899 = vunpack.c.l.b16 %v223
  %v900 = vunpack.c.h.b16 %v223
  %v901 = vunpack.c.l.b16 %v224
  %v902 = vunpack.c.h.b16 %v224
  %v903 = vunpack.c.l.b16 %v225
  %v904 = vunpack.c.h.b16 %v225
  %v905 = vunpack.c.l.b16 %v226
  %v906 = vunpack.c.h.b16 %v226
  %v907 = vunpack.c.l.b16 %v227
  %v908 = vunpack.c.h.b16 %v227
  %v909 = vunpack.c.l.b16 %v228
  %v910 = vunpack.c.h.b16 %v228
  %v911 = vunpack.c.l.b16 %v229
  %v912 = vunpack.c.h.b16 %v229
  %v913 = vunpack.c.l.b16 %v230
  %v914 = vunpack.c.h.b16 %v230
  %v915 = vunpack.c.l.b16 %v231
  %v916 = vunpack.c.h.b16 %v231
  %v917 = vunpack.c.l.b16 %v232
  %v918 = vunpack.c.h.b16 %v232
  %v919 = vunpack.c.l.b16 %v233
  %v920 = vunpack.c.h.b16 %v233
  %v921 = vunpack.c.l.b16 %v234
  %v922 = vunpack.c.h.b16 %v234
  %v923 = vunpack.c.l.b16 %v235
  %v924 = vunpack.c.h.b16 %v235
  %v925 = vunpack.c.l.b16 %v236
  %v926 = vunpack.c.h.b16 %v236
  %v927 = vunpack.c.l.b16 %v237
  %v928 = vunpack.c.h.b16 %v237
  %v929 = vunpack.c.l.b16 %v238
  %v930 = vunpack.c.h.b16 %v238
  %v931 = vunpack.c.l.b16 %v239
  %v932 = vunpack.c.h.b16 %v239
  %v933 = vunpack.c.l.b16 %v240
  %v934 = vunpack.c.h.b16 %v240
  %v935 = vunpack.c.l.b16 %v241
  %v936 = vunpack.c.h.b16 %v241
  %v937 = vunpack.c.l.b16 %v242
  %v938 = vunpack.c.h.b16 %v242
  %v939 = vunpack.c.l.b16 %v243
  %v940 = vunpack.c.h.b16 %v243
  %v941 = vunpack.c.l.b16 %v244
  %v942 = vunpack.c.h.b16 %v244
  %v943 = vunpack.c.l.b16 %v245
  %v944 = vunpack.c.h.b16 %v245
  %v945 = vunpack.c.l.b16 %v246
  %v946 = vunpack.c.h.b16 %v246
  %v947 = vunpack.c.l.b16 %v247
  %v948 = vunpack.c.h.b16 %v247
  %v949 = vunpack.c.l.b16 %v248
  %v950 = vunpack.c.h.b16 %v248
  %v951 = vunpack.c.l.b16 %v249
  %v952 = vunpack.c.h.b16 %v249
  %v953 = vunpack.c.l.b16 %v250
  %v954 = vunpack.c.h.b16 %v250
  %v955 = vunpack.c.l.b16 %v251
  %v956 = vunpack.c.h.b16 %v251
  %v957 = vunpack.c.l.b16 %v252
  %v958 = vunpack.c.h.b16 %v252
  %v959 = vunpack.c.l.b16 %v253
  %v960 = vunpack.c.h.b16 %v253
  %v961 = vunpack.c.l.b16 %v254
  %v962 = vunpack.c.h.b16 %v254
  %v963 = vunpack.c.l.b16 %v255
  %v964 = vunpack.c.h.b16 %v255
  %v965 = vunpack.c.l.b16 %v256
  %v966 = vunpack.c.h.b16 %v256
  %v967 = vunpack.c.l.b16 %v257
  %v968 = vunpack.c.h.b16 %v257
  %v969 = vunpack.c.l.b16 %v258
  %v970 = vunpack.c.h.b16 %v258
  %v971 = vunpack.c.l.b16 %v259
  %v972 = vunpack.c.h.b16 %v259
  %v973 = vunpack.c.l.b16 %v260
  %v974 = vunpack.c.h.b16 %v260
  %v975 = vunpack.c.l.b16 %v261
  %v976 = vunpack.c.h.b16 %v261
  %v977 = vunpack.c.l.b16 %v262
  %v978 = vunpack.c.h.b16 %v262
  %v979 = vunpack.c.l.b16 %v263
  %v980 = vunpack.c.h.b16 %v263
  %v981 = vunpack.c.l.b16 %v264
  %v982 = vunpack.c.h.b16 %v264
  %v983 = vunpack.c.l.b16 %v265
  %v984 = vunpack.c.h.b16 %v265
  %v985 = vpack.c.b16 %v541, %v537
  %v986 = vpack.c.b16 %v542, %v538
  %v987 = vpack.c.b16 %v543, %v539
  %v988 = vpack.c.b16 %v544, %v540
  %v989 = vpack.c.b16 %v549, %v545
  %v990 = vpack.c.b16 %v550, %v546
  %v991 = vpack.c.b16 %v551, %v547
  %v992 = vpack.c.b16 %v552, %v548
  %v993 = vpack.c.b16 %v557, %v553
  %v994 = vpack.c.b16 %v558, %v554
  %v995 = vpack.c.b16 %v559, %v555
  %v996 = vpack.c.b16 %v560, %v556
  %v997 = vpack.c.b16 %v565, %v561
  %v998 = vpack.c.b16 %v566, %v562
  %v999 = vpack.c.b16 %v567, %v563
  %v1000 = vpack.c.b16 %v568, %v564
  %v1001 = vpack.c.b16 %v573, %v569
  %v1002 = vpack.c.b16 %v574, %v570
  %v1003 = vpack.c.b16 %v575, %v571
  %v1004 = vpack.c.b16 %v576, %v572
  %v1005 = vpack.c.b16 %v581, %v577
  %v1006 = vpack.c.b16 %v582, %v578
  %v1007 = vpack.c.b16 %v583, %v579
  %v1008 = vpack.c.b16 %v584, %v580
  %v1009 = vpack.c.b16 %v589, %v585
  %v1010 = vpack.c.b16 %v590, %v586
  %v1011 = vpack.c.b16 %v591, %v587
  %v1012 = vpack.c.b16 %v592, %v588
  %v1013 = vpack.c.b16 %v597, %v593
  %v1014 = vpack.c.b16 %v598, %v594
  %v1015 = vpack.c.b16 %v599, %v595
  %v1016 = vpack.c.b16 %v600, %v596
  %v1017 = vpack.c.b16 %v605, %v601
  %v1018 = vpack.c.b16 %v606, %v602
  %v1019 = vpack.c.b16 %v607, %v603
  %v1020 = vpack.c.b16 %v608, %v604
  %v1021 = vpack.c.b16 %v613, %v609
  %v1022 = vpack.c.b16 %v614, %v610
  %v1023 = vpack.c.b16 %v615, %v611
  %v1024 = vpack.c.b16 %v616, %v612
  %v1025 = vpack.c.b16 %v621, %v617
  %v1026 = vpack.c.b16 %v622, %v618
  %v1027 = vpack.c.b16 %v623, %v619
  %v1028 = vpack.c.b16 %v624, %v620
  %v1029 = vpack.c.b16 %v629, %v625
  %v1030 = vpack.c.b16 %v630, %v626
  %v1031 = vpack.c.b16 %v631, %v627
  %v1032 = vpack.c.b16 %v632, %v628
  %v1033 = vpack.c.b16 %v637, %v633
  %v1034 = vpack.c.b16 %v638, %v634
  %v1035 = vpack.c.b16 %v639, %v635
  %v1036 = vpack.c.b16 %v640, %v636
  %v1037 = vpack.c.b16 %v645, %v641
  %v1038 = vpack.c.b16 %v646, %v642
  %v1039 = vpack.c.b16 %v647, %v643
  %v1040 = vpack.c.b16 %v648, %v644
  %v1041 = vpack.c.b16 %v653, %v649
  %v1042 = vpack.c.b16 %v654, %v650
  %v1043 = vpack.c.b16 %v655, %v651
  %v1044 = vpack.c.b16 %v656, %v652
  %v1045 = vpack.c.b16 %v661, %v657
  %v1046 = vpack.c.b16 %v662, %v658
  %v1047 = vpack.c.b16 %v663, %v659
  %v1048 = vpack.c.b16 %v664, %v660
  %v1049 = vpack.c.b16 %v669, %v665
  %v1050 = vpack.c.b16 %v670, %v666
  %v1051 = vpack.c.b16 %v671, %v667
  %v1052 = vpack.c.b16 %v672, %v668
  %v1053 = vpack.c.b16 %v677, %v673
  %v1054 = vpack.c.b16 %v678, %v674
  %v1055 = vpack.c.b16 %v679, %v675
  %v1056 = vpack.c.b16 %v680, %v676
  %v1057 = vpack.c.b16 %v685, %v681
  %v1058 = vpack.c.b16 %v686, %v682
  %v1059 = vpack.c.b16 %v687, %v683
  %v1060 = vpack.c.b16 %v688, %v684
  %v1061 = vpack.c.b16 %v693, %v689
  %v1062 = vpack.c.b16 %v694, %v690
  %v1063 = vpack.c.b16 %v695, %v691
  %v1064 = vpack.c.b16 %v696, %v692
  %v1065 = vpack.c.b16 %v701, %v697
  %v1066 = vpack.c.b16 %v702, %v698
  %v1067 = vpack.c.b16 %v703, %v699
  %v1068 = vpack.c.b16 %v704, %v700
  %v1069 = vpack.c.b16 %v709, %v705
  %v1070 = vpack.c.b16 %v710, %v706
  %v1071 = vpack.c.b16 %v711, %v707
  %v1072 = vpack.c.b16 %v712, %v708
  %v1073 = vpack.c.b16 %v717, %v713
  %v1074 = vpack.c.b16 %v718, %v714
  %v1075 = vpack.c.b16 %v719, %v715
  %v1076 = vpack.c.b16 %v720, %v716
  %v1077 = vpack.c.b16 %v725, %v721
  %v1078 = vpack.c.b16 %v726, %v722
  %v1079 = vpack.c.b16 %v727, %v723
  %v1080 = vpack.c.b16 %v728, %v724
  %v1081 = vpack.c.b16 %v733, %v729
  %v1082 = vpack.c.b16 %v734, %v730
  %v1083 = vpack.c.b16 %v735, %v731
  %v1084 = vpack.c.b16 %v736, %v732
  %v1085 = vpack.c.b16 %v741, %v737
  %v1086 = vpack.c.b16 %v742, %v738
  %v1087 = vpack.c.b16 %v743, %v739
  %v1088 = vpack.c.b16 %v744, %v740
  %v1089 = vpack.c.b16 %v749, %v745
  %v1090 = vpack.c.b16 %v750, %v746
  %v1091 = vpack.c.b16 %v751, %v747
  %v1092 = vpack.c.b16 %v752, %v748
  %v1093 = vpack.c.b16 %v757, %v753
  %v1094 = vpack.c.b16 %v758, %v754
  %v1095 = vpack.c.b16 %v759, %v755
  %v1096 = vpack.c.b16 %v760, %v756
  %v1097 = vpack.c.b16 %v765, %v761
  %v1098 = vpack.c.b16 %v766, %v762
  %v1099 = vpack.c.b16 %v767, %v763
  %v1100 = vpack.c.b16 %v768, %v764
  %v1101 = vpack.c.b16 %v773, %v769
  %v1102 = vpack.c.b16 %v774, %v770
  %v1103 = vpack.c.b16 %v775, %v771
  %v1104 = vpack.c.b16 %v776, %v772
  %v1105 = vpack.c.b16 %v781, %v777
  %v1106 = vpack.c.b16 %v782, %v778
  %v1107 = vpack.c.b16 %v783, %v779
  %v1108 = vpack.c.b16 %v784, %v780
  %v1109 = vpack.c.b16 %v789, %v785
  %v1110 = vpack.c.b16 %v790, %v786
  %v1111 = vpack.c.b16 %v791, %v787
  %v1112 = vpack.c.b16 %v792, %v788
  %v1113 = vpack.c.b16 %v797, %v793
  %v1114 = vpack.c.b16 %v798, %v794
  %v1115 = vpack.c.b16 %v799, %v795
  %v1116 = vpack.c.b16 %v800, %v796
  %v1117 = vpack.c.b16 %v805, %v801
  %v1118 = vpack.c.b16 %v806, %v802
  %v1119 = vpack.c.b16 %v807, %v803
  %v1120 = vpack.c.b16 %v808, %v804
  %v1121 = vpack.c.b16 %v813, %v809
  %v1122 = vpack.c.b16 %v814, %v810
  %v1123 = vpack.c.b16 %v815, %v811
  %v1124 = vpack.c.b16 %v816, %v812
  %v1125 = vpack.c.b16 %v821, %v817
  %v1126 = vpack.c.b16 %v822, %v818
  %v1127 = vpack.c.b16 %v823, %v819
  %v1128 = vpack.c.b16 %v824, %v820
  %v1129 = vpack.c.b16 %v829, %v825
  %v1130 = vpack.c.b16 %v830, %v826
  %v1131 = vpack.c.b16 %v831, %v827
  %v1132 = vpack.c.b16 %v832, %v828
  %v1133 = vpack.c.b16 %v837, %v833
  %v1134 = vpack.c.b16 %v838, %v834
  %v1135 = vpack.c.b16 %v839, %v835
  %v1136 = vpack.c.b16 %v840, %v836
  %v1137 = vpack.c.b16 %v845, %v841
  %v1138 = vpack.c.b16 %v846, %v842
  %v1139 = vpack.c.b16 %v847, %v843
  %v1140 = vpack.c.b16 %v848, %v844
  %v1141 = vpack.c.b16 %v853, %v849
  %v1142 = vpack.c.b16 %v854, %v850
  %v1143 = vpack.c.b16 %v855, %v851
  %v1144 = vpack.c.b16 %v856, %v852
  %v1145 = vpack.c.b16 %v861, %v857
  %v1146 = vpack.c.b16 %v862, %v858
  %v1147 = vpack.c.b16 %v863, %v859
  %v1148 = vpack.c.b16 %v864, %v860
  %v1149 = vpack.c.b16 %v869, %v865
  %v1150 = vpack.c.b16 %v870, %v866
  %v1151 = vpack.c.b16 %v871, %v867
  %v1152 = vpack.c.b16 %v872, %v868
  %v1153 = vpack.c.b16 %v877, %v873
  %v1154 = vpack.c.b16 %v878, %v874
  %v1155 = vpack.c.b16 %v879, %v875
  %v1156 = vpack.c.b16 %v880, %v876
  %v1157 = vpack.c.b16 %v885, %v881
  %v1158 = vpack.c.b16 %v886, %v882
  %v1159 = vpack.c.b16 %v887, %v883
  %v1160 = vpack.c.b16 %v888, %v884
  %v1161 = vpack.c.b16 %v893, %v889
  %v1162 = vpack.c.b16 %v894, %v890
  %v1163 = vpack.c.b16 %v895, %v891
  %v1164 = vpack.c.b16 %v896, %v892
  %v1165 = vpack.c.b16 %v901, %v897
  %v1166 = vpack.c.b16 %v902, %v898
  %v1167 = vpack.c.b16 %v903, %v899
  %v1168 = vpack.c.b16 %v904, %v900
  %v1169 = vpack.c.b16 %v909, %v905
  %v1170 = vpack.c.b16 %v910, %v906
  %v1171 = vpack.c.b16 %v911, %v907
  %v1172 = vpack.c.b16 %v912, %v908
  %v1173 = vpack.c.b16 %v917, %v913
  %v1174 = vpack.c.b16 %v918, %v914
  %v1175 = vpack.c.b16 %v919, %v915
  %v1176 = vpack.c.b16 %v920, %v916
  %v1177 = vpack.c.b16 %v925, %v921
  %v1178 = vpack.c.b16 %v926, %v922
  %v1179 = vpack.c.b16 %v927, %v923
  %v1180 = vpack.c.b16 %v928, %v924
  %v1181 = vpack.c.b16 %v933, %v929
  %v1182 = vpack.c.b16 %v934, %v930
  %v1183 = vpack.c.b16 %v935, %v931
  %v1184 = vpack.c.b16 %v936, %v932
  %v1185 = vpack.c.b16 %v941, %v937
  %v1186 = vpack.c.b16 %v942, %v938
  %v1187 = vpack.c.b16 %v943, %v939
  %v1188 = vpack.c.b16 %v944, %v940
  %v1189 = vpack.c.b16 %v949, %v945
  %v1190 = vpack.c.b16 %v950, %v946
  %v1191 = vpack.c.b16 %v951, %v947
  %v1192 = vpack.c.b16 %v952, %v948
  %v1193 = vpack.c.b16 %v957, %v953
  %v1194 = vpack.c.b16 %v958, %v954
  %v1195 = vpack.c.b16 %v959, %v955
  %v1196 = vpack.c.b16 %v960, %v956
  %v1197 = vpack.c.b16 %v965, %v961
  %v1198 = vpack.c.b16 %v966, %v962
  %v1199 = vpack.c.b16 %v967, %v963
  %v1200 = vpack.c.b16 %v968, %v964
  %v1201 = vpack.c.b16 %v973, %v969
  %v1202 = vpack.c.b16 %v974, %v970
  %v1203 = vpack.c.b16 %v975, %v971
  %v1204 = vpack.c.b16 %v976, %v972
  %v1205 = vpack.c.b16 %v981, %v977
  %v1206 = vpack.c.b16 %v982, %v978
  %v1207 = vpack.c.b16 %v983, %v979
  %v1208 = vpack.c.b16 %v984, %v980
  %1433 = vmatprep.subr.bf16.mxu0 %v986
  %1434 = vmatpush1.bf16.msra.mxu0 %v985
  %1435 = vmatprep.subr.bf16.mxu0 %v990
  %1436 = vmatpush1.bf16.msra.mxu0 %v989
  %1437 = vmatprep.subr.bf16.mxu0 %v994
  %1438 = vmatpush1.bf16.msra.mxu0 %v993
  %1439 = vmatprep.subr.bf16.mxu0 %v998
  %1440 = vmatpush1.bf16.msra.mxu0 %v997
  %1441 = vmatprep.subr.bf16.mxu0 %v1002
  %1442 = vmatpush1.bf16.msra.mxu0 %v1001
  %1443 = vmatprep.subr.bf16.mxu0 %v1006
  %1444 = vmatpush1.bf16.msra.mxu0 %v1005
  %1445 = vmatprep.subr.bf16.mxu0 %v1010
  %1446 = vmatpush1.bf16.msra.mxu0 %v1009
  %1447 = vmatprep.subr.bf16.mxu0 %v1014
  %1448 = vmatpush1.bf16.msra.mxu0 %v1013
  %1449 = vmatprep.subr.bf16.mxu0 %v1018
  %1450 = vmatpush1.bf16.msra.mxu0 %v1017
  %1451 = vmatprep.subr.bf16.mxu0 %v1022
  %1452 = vmatpush1.bf16.msra.mxu0 %v1021
  %1453 = vmatprep.subr.bf16.mxu0 %v1026
  %1454 = vmatpush1.bf16.msra.mxu0 %v1025
  %1455 = vmatprep.subr.bf16.mxu0 %v1030
  %1456 = vmatpush1.bf16.msra.mxu0 %v1029
  %1457 = vmatprep.subr.bf16.mxu0 %v1034
  %1458 = vmatpush1.bf16.msra.mxu0 %v1033
  %1459 = vmatprep.subr.bf16.mxu0 %v1038
  %1460 = vmatpush1.bf16.msra.mxu0 %v1037
  %1461 = vmatprep.subr.bf16.mxu0 %v1042
  %1462 = vmatpush1.bf16.msra.mxu0 %v1041
  %1463 = vmatprep.subr.bf16.mxu0 %v1046
  %1464 = vmatpush1.bf16.msra.mxu0 %v1045
  %1465 = vmatprep.mubr.bf16.mxu0 %v300
  %1466 = vmatmul.mubr.bf16.gmra.mrb[0].mxu0 %v299
  %v1467 = vpop.f32.mrb[0].mxu0
  %v1468 = vadd.f32 %v271, %v1467
  %v1469 = vpop.f32.mrb[0].mxu0
  %v1470 = vadd.f32 %v275, %v1469
  %v1471 = vpop.f32.mrb[0].mxu0
  %v1472 = vpop.f32.mrb[0].mxu0
  %1473 = vdwg.mxu0
  %1474 = vmatprep.subr.bf16.mxu0 %v1050
  %1475 = vmatpush1.bf16.msra.mxu0 %v1049
  %1476 = vmatprep.subr.bf16.mxu0 %v1054
  %1477 = vmatpush1.bf16.msra.mxu0 %v1053
  %1478 = vmatprep.subr.bf16.mxu0 %v1058
  %1479 = vmatpush1.bf16.msra.mxu0 %v1057
  %1480 = vmatprep.subr.bf16.mxu0 %v1062
  %1481 = vmatpush1.bf16.msra.mxu0 %v1061
  %1482 = vmatprep.subr.bf16.mxu0 %v1066
  %1483 = vmatpush1.bf16.msra.mxu0 %v1065
  %1484 = vmatprep.subr.bf16.mxu0 %v1070
  %1485 = vmatpush1.bf16.msra.mxu0 %v1069
  %1486 = vmatprep.subr.bf16.mxu0 %v1074
  %1487 = vmatpush1.bf16.msra.mxu0 %v1073
  %1488 = vmatprep.subr.bf16.mxu0 %v1078
  %1489 = vmatpush1.bf16.msra.mxu0 %v1077
  %1490 = vmatprep.subr.bf16.mxu0 %v1082
  %1491 = vmatpush1.bf16.msra.mxu0 %v1081
  %1492 = vmatprep.subr.bf16.mxu0 %v1086
  %1493 = vmatpush1.bf16.msra.mxu0 %v1085
  %1494 = vmatprep.subr.bf16.mxu0 %v1090
  %1495 = vmatpush1.bf16.msra.mxu0 %v1089
  %1496 = vmatprep.subr.bf16.mxu0 %v1094
  %1497 = vmatpush1.bf16.msra.mxu0 %v1093
  %1498 = vmatprep.subr.bf16.mxu0 %v1098
  %1499 = vmatpush1.bf16.msra.mxu0 %v1097
  %1500 = vmatprep.subr.bf16.mxu0 %v1102
  %1501 = vmatpush1.bf16.msra.mxu0 %v1101
  %1502 = vmatprep.subr.bf16.mxu0 %v1106
  %1503 = vmatpush1.bf16.msra.mxu0 %v1105
  %1504 = vmatprep.subr.bf16.mxu0 %v1110
  %1505 = vmatpush1.bf16.msra.mxu0 %v1109
  %1506 = vmatprep.mubr.bf16.mxu0 %v302
  %1507 = vmatmul.mubr.bf16.gmra.mrb[0].mxu0 %v301
  %v1508 = vpop.f32.mrb[0].mxu0
  %v1509 = vadd.f32 %v1468, %v1508
  %v1510 = vpop.f32.mrb[0].mxu0
  %v1511 = vadd.f32 %v1470, %v1510
  %v1512 = vpop.f32.mrb[0].mxu0
  %v1513 = vpop.f32.mrb[0].mxu0
  %1514 = vdwg.mxu0
  %1515 = vmatprep.subr.bf16.mxu0 %v1114
  %1516 = vmatpush1.bf16.msra.mxu0 %v1113
  %1517 = vmatprep.subr.bf16.mxu0 %v1118
  %1518 = vmatpush1.bf16.msra.mxu0 %v1117
  %1519 = vmatprep.subr.bf16.mxu0 %v1122
  %1520 = vmatpush1.bf16.msra.mxu0 %v1121
  %1521 = vmatprep.subr.bf16.mxu0 %v1126
  %1522 = vmatpush1.bf16.msra.mxu0 %v1125
  %1523 = vmatprep.subr.bf16.mxu0 %v1130
  %1524 = vmatpush1.bf16.msra.mxu0 %v1129
  %1525 = vmatprep.subr.bf16.mxu0 %v1134
  %1526 = vmatpush1.bf16.msra.mxu0 %v1133
  %1527 = vmatprep.subr.bf16.mxu0 %v1138
  %1528 = vmatpush1.bf16.msra.mxu0 %v1137
  %1529 = vmatprep.subr.bf16.mxu0 %v1142
  %1530 = vmatpush1.bf16.msra.mxu0 %v1141
  %1531 = vmatprep.subr.bf16.mxu0 %v1146
  %1532 = vmatpush1.bf16.msra.mxu0 %v1145
  %1533 = vmatprep.subr.bf16.mxu0 %v1150
  %1534 = vmatpush1.bf16.msra.mxu0 %v1149
  %1535 = vmatprep.subr.bf16.mxu0 %v1154
  %1536 = vmatpush1.bf16.msra.mxu0 %v1153
  %1537 = vmatprep.subr.bf16.mxu0 %v1158
  %1538 = vmatpush1.bf16.msra.mxu0 %v1157
  %1539 = vmatprep.subr.bf16.mxu0 %v1162
  %1540 = vmatpush1.bf16.msra.mxu0 %v1161
  %1541 = vmatprep.subr.bf16.mxu0 %v1166
  %1542 = vmatpush1.bf16.msra.mxu0 %v1165
  %1543 = vmatprep.subr.bf16.mxu0 %v1170
  %1544 = vmatpush1.bf16.msra.mxu0 %v1169
  %1545 = vmatprep.subr.bf16.mxu0 %v1174
  %1546 = vmatpush1.bf16.msra.mxu0 %v1173
  %1547 = vmatprep.mubr.bf16.mxu0 %v304
  %1548 = vmatmul.mubr.bf16.gmra.mrb[0].mxu0 %v303
  %v1549 = vpop.f32.mrb[0].mxu0
  %v1550 = vadd.f32 %v1509, %v1549
  %v1551 = vpop.f32.mrb[0].mxu0
  %v1552 = vadd.f32 %v1511, %v1551
  %v1553 = vpop.f32.mrb[0].mxu0
  %v1554 = vpop.f32.mrb[0].mxu0
  %1555 = vdwg.mxu0
  %1556 = vmatprep.subr.bf16.mxu0 %v1178
  %1557 = vmatpush1.bf16.msra.mxu0 %v1177
  %1558 = vmatprep.subr.bf16.mxu0 %v1182
  %1559 = vmatpush1.bf16.msra.mxu0 %v1181
  %1560 = vmatprep.subr.bf16.mxu0 %v1186
  %1561 = vmatpush1.bf16.msra.mxu0 %v1185
  %1562 = vmatprep.subr.bf16.mxu0 %v1190
  %1563 = vmatpush1.bf16.msra.mxu0 %v1189
  %1564 = vmatprep.subr.bf16.mxu0 %v1194
  %1565 = vmatpush1.bf16.msra.mxu0 %v1193
  %1566 = vmatprep.subr.bf16.mxu0 %v1198
  %1567 = vmatpush1.bf16.msra.mxu0 %v1197
  %1568 = vmatprep.subr.bf16.mxu0 %v1202
  %1569 = vmatpush1.bf16.msra.mxu0 %v1201
  %1570 = vmatprep.subr.bf16.mxu0 %v1206
  %1571 = vmatpush1.bf16.msra.mxu0 %v1205
  %1572 = vmatprep.subr.bf16.mxu0 0
  %1573 = vmatpush1.bf16.msra.mxu0 0
  %1574 = vmatprep.subr.bf16.mxu0 0
  %1575 = vmatpush1.bf16.msra.mxu0 0
  %1576 = vmatprep.subr.bf16.mxu0 0
  %1577 = vmatpush1.bf16.msra.mxu0 0
  %1578 = vmatprep.subr.bf16.mxu0 0
  %1579 = vmatpush1.bf16.msra.mxu0 0
  %1580 = vmatprep.subr.bf16.mxu0 0
  %1581 = vmatpush1.bf16.msra.mxu0 0
  %1582 = vmatprep.subr.bf16.mxu0 0
  %1583 = vmatpush1.bf16.msra.mxu0 0
  %1584 = vmatprep.subr.bf16.mxu0 0
  %1585 = vmatpush1.bf16.msra.mxu0 0
  %1586 = vmatprep.subr.bf16.mxu0 0
  %1587 = vmatpush1.bf16.msra.mxu0 0
  %1588 = vmatprep.mubr.bf16.mxu0 0
  %1589 = vmatmul.mubr.bf16.gmra.mrb[0].mxu0 %v305
  %v1590 = vpop.f32.mrb[0].mxu0
  %v1591 = vadd.f32 %v1550, %v1590
  %v1592 = vpop.f32.mrb[0].mxu0
  %v1593 = vadd.f32 %v1552, %v1592
  %v1594 = vpop.f32.mrb[0].mxu0
  %v1595 = vpop.f32.mrb[0].mxu0
  %1596 = vdwg.mxu0
  %1597 = vmatprep.subr.bf16.mxu0 %v988
  %1598 = vmatpush1.bf16.msra.mxu0 %v987
  %1599 = vmatprep.subr.bf16.mxu0 %v992
  %1600 = vmatpush1.bf16.msra.mxu0 %v991
  %1601 = vmatprep.subr.bf16.mxu0 %v996
  %1602 = vmatpush1.bf16.msra.mxu0 %v995
  %1603 = vmatprep.subr.bf16.mxu0 %v1000
  %1604 = vmatpush1.bf16.msra.mxu0 %v999
  %1605 = vmatprep.subr.bf16.mxu0 %v1004
  %1606 = vmatpush1.bf16.msra.mxu0 %v1003
  %1607 = vmatprep.subr.bf16.mxu0 %v1008
  %1608 = vmatpush1.bf16.msra.mxu0 %v1007
  %1609 = vmatprep.subr.bf16.mxu0 %v1012
  %1610 = vmatpush1.bf16.msra.mxu0 %v1011
  %1611 = vmatprep.subr.bf16.mxu0 %v1016
  %1612 = vmatpush1.bf16.msra.mxu0 %v1015
  %1613 = vmatprep.subr.bf16.mxu0 %v1020
  %1614 = vmatpush1.bf16.msra.mxu0 %v1019
  %1615 = vmatprep.subr.bf16.mxu0 %v1024
  %1616 = vmatpush1.bf16.msra.mxu0 %v1023
  %1617 = vmatprep.subr.bf16.mxu0 %v1028
  %1618 = vmatpush1.bf16.msra.mxu0 %v1027
  %1619 = vmatprep.subr.bf16.mxu0 %v1032
  %1620 = vmatpush1.bf16.msra.mxu0 %v1031
  %1621 = vmatprep.subr.bf16.mxu0 %v1036
  %1622 = vmatpush1.bf16.msra.mxu0 %v1035
  %1623 = vmatprep.subr.bf16.mxu0 %v1040
  %1624 = vmatpush1.bf16.msra.mxu0 %v1039
  %1625 = vmatprep.subr.bf16.mxu0 %v1044
  %1626 = vmatpush1.bf16.msra.mxu0 %v1043
  %1627 = vmatprep.subr.bf16.mxu0 %v1048
  %1628 = vmatpush1.bf16.msra.mxu0 %v1047
  %1629 = vmatprep.mubr.bf16.mxu0 %v300
  %1630 = vmatmul.mubr.bf16.gmra.mrb[0].mxu0 %v299
  %v1631 = vpop.f32.mrb[0].mxu0
  %v1632 = vadd.f32 %v279, %v1631
  %v1633 = vpop.f32.mrb[0].mxu0
  %v1634 = vadd.f32 %v283, %v1633
  %v1635 = vpop.f32.mrb[0].mxu0
  %v1636 = vpop.f32.mrb[0].mxu0
  %1637 = vdwg.mxu0
  %1638 = vmatprep.subr.bf16.mxu0 %v1052
  %1639 = vmatpush1.bf16.msra.mxu0 %v1051
  %1640 = vmatprep.subr.bf16.mxu0 %v1056
  %1641 = vmatpush1.bf16.msra.mxu0 %v1055
  %1642 = vmatprep.subr.bf16.mxu0 %v1060
  %1643 = vmatpush1.bf16.msra.mxu0 %v1059
  %1644 = vmatprep.subr.bf16.mxu0 %v1064
  %1645 = vmatpush1.bf16.msra.mxu0 %v1063
  %1646 = vmatprep.subr.bf16.mxu0 %v1068
  %1647 = vmatpush1.bf16.msra.mxu0 %v1067
  %1648 = vmatprep.subr.bf16.mxu0 %v1072
  %1649 = vmatpush1.bf16.msra.mxu0 %v1071
  %1650 = vmatprep.subr.bf16.mxu0 %v1076
  %1651 = vmatpush1.bf16.msra.mxu0 %v1075
  %1652 = vmatprep.subr.bf16.mxu0 %v1080
  %1653 = vmatpush1.bf16.msra.mxu0 %v1079
  %1654 = vmatprep.subr.bf16.mxu0 %v1084
  %1655 = vmatpush1.bf16.msra.mxu0 %v1083
  %1656 = vmatprep.subr.bf16.mxu0 %v1088
  %1657 = vmatpush1.bf16.msra.mxu0 %v1087
  %1658 = vmatprep.subr.bf16.mxu0 %v1092
  %1659 = vmatpush1.bf16.msra.mxu0 %v1091
  %1660 = vmatprep.subr.bf16.mxu0 %v1096
  %1661 = vmatpush1.bf16.msra.mxu0 %v1095
  %1662 = vmatprep.subr.bf16.mxu0 %v1100
  %1663 = vmatpush1.bf16.msra.mxu0 %v1099
  %1664 = vmatprep.subr.bf16.mxu0 %v1104
  %1665 = vmatpush1.bf16.msra.mxu0 %v1103
  %1666 = vmatprep.subr.bf16.mxu0 %v1108
  %1667 = vmatpush1.bf16.msra.mxu0 %v1107
  %1668 = vmatprep.subr.bf16.mxu0 %v1112
  %1669 = vmatpush1.bf16.msra.mxu0 %v1111
  %1670 = vmatprep.mubr.bf16.mxu0 %v302
  %1671 = vmatmul.mubr.bf16.gmra.mrb[0].mxu0 %v301
  %v1672 = vpop.f32.mrb[0].mxu0
  %v1673 = vadd.f32 %v1632, %v1672
  %v1674 = vpop.f32.mrb[0].mxu0
  %v1675 = vadd.f32 %v1634, %v1674
  %v1676 = vpop.f32.mrb[0].mxu0
  %v1677 = vpop.f32.mrb[0].mxu0
  %1678 = vdwg.mxu0
  %1679 = vmatprep.subr.bf16.mxu0 %v1116
  %1680 = vmatpush1.bf16.msra.mxu0 %v1115
  %1681 = vmatprep.subr.bf16.mxu0 %v1120
  %1682 = vmatpush1.bf16.msra.mxu0 %v1119
  %1683 = vmatprep.subr.bf16.mxu0 %v1124
  %1684 = vmatpush1.bf16.msra.mxu0 %v1123
  %1685 = vmatprep.subr.bf16.mxu0 %v1128
  %1686 = vmatpush1.bf16.msra.mxu0 %v1127
  %1687 = vmatprep.subr.bf16.mxu0 %v1132
  %1688 = vmatpush1.bf16.msra.mxu0 %v1131
  %1689 = vmatprep.subr.bf16.mxu0 %v1136
  %1690 = vmatpush1.bf16.msra.mxu0 %v1135
  %1691 = vmatprep.subr.bf16.mxu0 %v1140
  %1692 = vmatpush1.bf16.msra.mxu0 %v1139
  %1693 = vmatprep.subr.bf16.mxu0 %v1144
  %1694 = vmatpush1.bf16.msra.mxu0 %v1143
  %1695 = vmatprep.subr.bf16.mxu0 %v1148
  %1696 = vmatpush1.bf16.msra.mxu0 %v1147
  %1697 = vmatprep.subr.bf16.mxu0 %v1152
  %1698 = vmatpush1.bf16.msra.mxu0 %v1151
  %1699 = vmatprep.subr.bf16.mxu0 %v1156
  %1700 = vmatpush1.bf16.msra.mxu0 %v1155
  %1701 = vmatprep.subr.bf16.mxu0 %v1160
  %1702 = vmatpush1.bf16.msra.mxu0 %v1159
  %1703 = vmatprep.subr.bf16.mxu0 %v1164
  %1704 = vmatpush1.bf16.msra.mxu0 %v1163
  %1705 = vmatprep.subr.bf16.mxu0 %v1168
  %1706 = vmatpush1.bf16.msra.mxu0 %v1167
  %1707 = vmatprep.subr.bf16.mxu0 %v1172
  %1708 = vmatpush1.bf16.msra.mxu0 %v1171
  %1709 = vmatprep.subr.bf16.mxu0 %v1176
  %1710 = vmatpush1.bf16.msra.mxu0 %v1175
  %1711 = vmatprep.mubr.bf16.mxu0 %v304
  %1712 = vmatmul.mubr.bf16.gmra.mrb[0].mxu0 %v303
  %v1713 = vpop.f32.mrb[0].mxu0
  %v1714 = vadd.f32 %v1673, %v1713
  %v1715 = vpop.f32.mrb[0].mxu0
  %v1716 = vadd.f32 %v1675, %v1715
  %v1717 = vpop.f32.mrb[0].mxu0
  %v1718 = vpop.f32.mrb[0].mxu0
  %1719 = vdwg.mxu0
  %1720 = vmatprep.subr.bf16.mxu0 %v1180
  %1721 = vmatpush1.bf16.msra.mxu0 %v1179
  %1722 = vmatprep.subr.bf16.mxu0 %v1184
  %1723 = vmatpush1.bf16.msra.mxu0 %v1183
  %1724 = vmatprep.subr.bf16.mxu0 %v1188
  %1725 = vmatpush1.bf16.msra.mxu0 %v1187
  %1726 = vmatprep.subr.bf16.mxu0 %v1192
  %1727 = vmatpush1.bf16.msra.mxu0 %v1191
  %1728 = vmatprep.subr.bf16.mxu0 %v1196
  %1729 = vmatpush1.bf16.msra.mxu0 %v1195
  %1730 = vmatprep.subr.bf16.mxu0 %v1200
  %1731 = vmatpush1.bf16.msra.mxu0 %v1199
  %1732 = vmatprep.subr.bf16.mxu0 %v1204
  %1733 = vmatpush1.bf16.msra.mxu0 %v1203
  %1734 = vmatprep.subr.bf16.mxu0 %v1208
  %1735 = vmatpush1.bf16.msra.mxu0 %v1207
  %1736 = vmatprep.subr.bf16.mxu0 0
  %1737 = vmatpush1.bf16.msra.mxu0 0
  %1738 = vmatprep.subr.bf16.mxu0 0
  %1739 = vmatpush1.bf16.msra.mxu0 0
  %1740 = vmatprep.subr.bf16.mxu0 0
  %1741 = vmatpush1.bf16.msra.mxu0 0
  %1742 = vmatprep.subr.bf16.mxu0 0
  %1743 = vmatpush1.bf16.msra.mxu0 0
  %1744 = vmatprep.subr.bf16.mxu0 0
  %1745 = vmatpush1.bf16.msra.mxu0 0
  %1746 = vmatprep.subr.bf16.mxu0 0
  %1747 = vmatpush1.bf16.msra.mxu0 0
  %1748 = vmatprep.subr.bf16.mxu0 0
  %1749 = vmatpush1.bf16.msra.mxu0 0
  %1750 = vmatprep.subr.bf16.mxu0 0
  %1751 = vmatpush1.bf16.msra.mxu0 0
  %1752 = vmatprep.mubr.bf16.mxu0 0
  %1753 = vmatmul.mubr.bf16.gmra.mrb[0].mxu0 %v305
  %v1754 = vpop.f32.mrb[0].mxu0
  %v1755 = vadd.f32 %v1714, %v1754
  %v1756 = vpop.f32.mrb[0].mxu0
  %v1757 = vadd.f32 %v1716, %v1756
  %v1758 = vpop.f32.mrb[0].mxu0
  %v1759 = vpop.f32.mrb[0].mxu0
  %1760 = vdwg.mxu0
  %v1761 = vmax.f32 %v1591, 0.0
  %v1762 = vmax.f32 %v1593, 0.0
  %v1763 = vmax.f32 %v1755, 0.0
  %v1764 = vmax.f32 %v1757, 0.0
  %v1765 = vpack.c.bf16 %v1761, %v1761
  %v1766 = vpack.c.bf16 %v1762, %v1762
  %v1767 = vpack.c.bf16 %v1763, %v1763
  %v1768 = vpack.c.bf16 %v1764, %v1764
  %v1769 = vld [vmem:[%s3] sm:$0xff]
  %v1770 = vld [vmem:[%s3 + $0x8] sm:$0xff]
  %v1771 = vld [vmem:[%s3 + $0x10] sm:$0xff]
  %v1772 = vld [vmem:[%s3 + $0x18] sm:$0xff]
  %v1773 = vld [vmem:[%s3 + $0x20] sm:$0xff]
  %v1774 = vld [vmem:[%s3 + $0x28] sm:$0xff]
  %v1775 = vld [vmem:[%s3 + $0x30] sm:$0xff]
  %v1776 = vld [vmem:[%s3 + $0x38] sm:$0xff]
  %v1777 = vld [vmem:[%s3 + $0x40] sm:$0xff]
  %v1778 = vld [vmem:[%s3 + $0x48] sm:$0xff]
  %v1779 = vld [vmem:[%s3 + $0x50] sm:$0xff]
  %v1780 = vld [vmem:[%s3 + $0x58] sm:$0xff]
  %v1781 = vld [vmem:[%s3 + $0x60] sm:$0xff]
  %v1782 = vld [vmem:[%s3 + $0x68] sm:$0xff]
  %v1783 = vld [vmem:[%s3 + $0x70] sm:$0xff]
  %v1784 = vld [vmem:[%s3 + $0x78] sm:$0xff]
  %v1785 = vld [vmem:[%s3 + $0x80] sm:$0xff]
  %v1786 = vld [vmem:[%s3 + $0x88] sm:$0xff]
  %v1787 = vld [vmem:[%s3 + $0x90] sm:$0xff]
  %v1788 = vld [vmem:[%s3 + $0x98] sm:$0xff]
  %v1789 = vld [vmem:[%s3 + $0xa0] sm:$0xff]
  %v1790 = vld [vmem:[%s3 + $0xa8] sm:$0xff]
  %v1791 = vld [vmem:[%s3 + $0xb0] sm:$0xff]
  %v1792 = vld [vmem:[%s3 + $0xb8] sm:$0xff]
  %v1793 = vld [vmem:[%s3 + $0xc0] sm:$0xff]
  %v1794 = vld [vmem:[%s3 + $0xc8] sm:$0xff]
  %v1795 = vld [vmem:[%s3 + $0xd0] sm:$0xff]
  %v1796 = vld [vmem:[%s3 + $0xd8] sm:$0xff]
  %v1797 = vld [vmem:[%s3 + $0xe0] sm:$0xff]
  %v1798 = vld [vmem:[%s3 + $0xe8] sm:$0xff]
  %v1799 = vld [vmem:[%s3 + $0xf0] sm:$0xff]
  %v1800 = vld [vmem:[%s3 + $0xf8] sm:$0xff]
  %v1801 = vld [vmem:[%s3 + $0x100] sm:$0xff]
  %v1802 = vld [vmem:[%s3 + $0x108] sm:$0xff]
  %v1803 = vld [vmem:[%s3 + $0x110] sm:$0xff]
  %v1804 = vld [vmem:[%s3 + $0x118] sm:$0xff]
  %v1805 = vld [vmem:[%s3 + $0x120] sm:$0xff]
  %v1806 = vld [vmem:[%s3 + $0x128] sm:$0xff]
  %v1807 = vld [vmem:[%s3 + $0x130] sm:$0xff]
  %v1808 = vld [vmem:[%s3 + $0x138] sm:$0xff]
  %v1809 = vld [vmem:[%s3 + $0x140] sm:$0xff]
  %v1810 = vld [vmem:[%s3 + $0x148] sm:$0xff]
  %v1811 = vld [vmem:[%s3 + $0x150] sm:$0xff]
  %v1812 = vld [vmem:[%s3 + $0x158] sm:$0xff]
  %v1813 = vld [vmem:[%s3 + $0x160] sm:$0xff]
  %v1814 = vld [vmem:[%s3 + $0x168] sm:$0xff]
  %v1815 = vld [vmem:[%s3 + $0x170] sm:$0xff]
  %v1816 = vld [vmem:[%s3 + $0x178] sm:$0xff]
  %v1817 = vld [vmem:[%s3 + $0x180] sm:$0xff]
  %v1818 = vld [vmem:[%s3 + $0x188] sm:$0xff]
  %v1819 = vld [vmem:[%s3 + $0x190] sm:$0xff]
  %v1820 = vld [vmem:[%s3 + $0x198] sm:$0xff]
  %v1821 = vld [vmem:[%s3 + $0x1a0] sm:$0xff]
  %v1822 = vld [vmem:[%s3 + $0x1a8] sm:$0xff]
  %v1823 = vld [vmem:[%s3 + $0x1b0] sm:$0xff]
  %v1824 = vld [vmem:[%s3 + $0x1b8] sm:$0xff]
  %v1825 = vld [vmem:[%s3 + $0x1c0] sm:$0xff]
  %v1826 = vld [vmem:[%s3 + $0x1c8] sm:$0xff]
  %v1827 = vld [vmem:[%s3 + $0x1d0] sm:$0xff]
  %v1828 = vld [vmem:[%s3 + $0x1d8] sm:$0xff]
  %v1829 = vld [vmem:[%s3 + $0x1e0] sm:$0xff]
  %v1830 = vld [vmem:[%s3 + $0x1e8] sm:$0xff]
  %v1831 = vld [vmem:[%s3 + $0x1f0] sm:$0xff]
  %v1832 = vld [vmem:[%s3 + $0x1f8] sm:$0xff]
  %v1833 = vld [vmem:[%s4] sm:$0x3]
  %v1835 = vlaneseq
  %v1836 = vshrl.u32 %v1835, 7
  %v1837 = vsub.s32 0, %v1836
  %v1838 = vrot.slane %v1833, %v1837
  %v1839 = vlaneseq
  %v1840 = vshrl.u32 %v1839, 7
  %v1841 = vsub.s32 1, %v1840
  %v1842 = vrot.slane %v1833, %v1841
  %v1909 = vunpack.c.l.b16 %v1769
  %v1910 = vunpack.c.h.b16 %v1769
  %v1911 = vunpack.c.l.b16 %v1770
  %v1912 = vunpack.c.h.b16 %v1770
  %v1913 = vunpack.c.l.b16 %v1771
  %v1914 = vunpack.c.h.b16 %v1771
  %v1915 = vunpack.c.l.b16 %v1772
  %v1916 = vunpack.c.h.b16 %v1772
  %v1917 = vunpack.c.l.b16 %v1773
  %v1918 = vunpack.c.h.b16 %v1773
  %v1919 = vunpack.c.l.b16 %v1774
  %v1920 = vunpack.c.h.b16 %v1774
  %v1921 = vunpack.c.l.b16 %v1775
  %v1922 = vunpack.c.h.b16 %v1775
  %v1923 = vunpack.c.l.b16 %v1776
  %v1924 = vunpack.c.h.b16 %v1776
  %v1925 = vunpack.c.l.b16 %v1777
  %v1926 = vunpack.c.h.b16 %v1777
  %v1927 = vunpack.c.l.b16 %v1778
  %v1928 = vunpack.c.h.b16 %v1778
  %v1929 = vunpack.c.l.b16 %v1779
  %v1930 = vunpack.c.h.b16 %v1779
  %v1931 = vunpack.c.l.b16 %v1780
  %v1932 = vunpack.c.h.b16 %v1780
  %v1933 = vunpack.c.l.b16 %v1781
  %v1934 = vunpack.c.h.b16 %v1781
  %v1935 = vunpack.c.l.b16 %v1782
  %v1936 = vunpack.c.h.b16 %v1782
  %v1937 = vunpack.c.l.b16 %v1783
  %v1938 = vunpack.c.h.b16 %v1783
  %v1939 = vunpack.c.l.b16 %v1784
  %v1940 = vunpack.c.h.b16 %v1784
  %v1941 = vunpack.c.l.b16 %v1785
  %v1942 = vunpack.c.h.b16 %v1785
  %v1943 = vunpack.c.l.b16 %v1786
  %v1944 = vunpack.c.h.b16 %v1786
  %v1945 = vunpack.c.l.b16 %v1787
  %v1946 = vunpack.c.h.b16 %v1787
  %v1947 = vunpack.c.l.b16 %v1788
  %v1948 = vunpack.c.h.b16 %v1788
  %v1949 = vunpack.c.l.b16 %v1789
  %v1950 = vunpack.c.h.b16 %v1789
  %v1951 = vunpack.c.l.b16 %v1790
  %v1952 = vunpack.c.h.b16 %v1790
  %v1953 = vunpack.c.l.b16 %v1791
  %v1954 = vunpack.c.h.b16 %v1791
  %v1955 = vunpack.c.l.b16 %v1792
  %v1956 = vunpack.c.h.b16 %v1792
  %v1957 = vunpack.c.l.b16 %v1793
  %v1958 = vunpack.c.h.b16 %v1793
  %v1959 = vunpack.c.l.b16 %v1794
  %v1960 = vunpack.c.h.b16 %v1794
  %v1961 = vunpack.c.l.b16 %v1795
  %v1962 = vunpack.c.h.b16 %v1795
  %v1963 = vunpack.c.l.b16 %v1796
  %v1964 = vunpack.c.h.b16 %v1796
  %v1965 = vunpack.c.l.b16 %v1797
  %v1966 = vunpack.c.h.b16 %v1797
  %v1967 = vunpack.c.l.b16 %v1798
  %v1968 = vunpack.c.h.b16 %v1798
  %v1969 = vunpack.c.l.b16 %v1799
  %v1970 = vunpack.c.h.b16 %v1799
  %v1971 = vunpack.c.l.b16 %v1800
  %v1972 = vunpack.c.h.b16 %v1800
  %v1973 = vunpack.c.l.b16 %v1801
  %v1974 = vunpack.c.h.b16 %v1801
  %v1975 = vunpack.c.l.b16 %v1802
  %v1976 = vunpack.c.h.b16 %v1802
  %v1977 = vunpack.c.l.b16 %v1803
  %v1978 = vunpack.c.h.b16 %v1803
  %v1979 = vunpack.c.l.b16 %v1804
  %v1980 = vunpack.c.h.b16 %v1804
  %v1981 = vunpack.c.l.b16 %v1805
  %v1982 = vunpack.c.h.b16 %v1805
  %v1983 = vunpack.c.l.b16 %v1806
  %v1984 = vunpack.c.h.b16 %v1806
  %v1985 = vunpack.c.l.b16 %v1807
  %v1986 = vunpack.c.h.b16 %v1807
  %v1987 = vunpack.c.l.b16 %v1808
  %v1988 = vunpack.c.h.b16 %v1808
  %v1989 = vunpack.c.l.b16 %v1809
  %v1990 = vunpack.c.h.b16 %v1809
  %v1991 = vunpack.c.l.b16 %v1810
  %v1992 = vunpack.c.h.b16 %v1810
  %v1993 = vunpack.c.l.b16 %v1811
  %v1994 = vunpack.c.h.b16 %v1811
  %v1995 = vunpack.c.l.b16 %v1812
  %v1996 = vunpack.c.h.b16 %v1812
  %v1997 = vunpack.c.l.b16 %v1813
  %v1998 = vunpack.c.h.b16 %v1813
  %v1999 = vunpack.c.l.b16 %v1814
  %v2000 = vunpack.c.h.b16 %v1814
  %v2001 = vunpack.c.l.b16 %v1815
  %v2002 = vunpack.c.h.b16 %v1815
  %v2003 = vunpack.c.l.b16 %v1816
  %v2004 = vunpack.c.h.b16 %v1816
  %v2005 = vunpack.c.l.b16 %v1817
  %v2006 = vunpack.c.h.b16 %v1817
  %v2007 = vunpack.c.l.b16 %v1818
  %v2008 = vunpack.c.h.b16 %v1818
  %v2009 = vunpack.c.l.b16 %v1819
  %v2010 = vunpack.c.h.b16 %v1819
  %v2011 = vunpack.c.l.b16 %v1820
  %v2012 = vunpack.c.h.b16 %v1820
  %v2013 = vunpack.c.l.b16 %v1821
  %v2014 = vunpack.c.h.b16 %v1821
  %v2015 = vunpack.c.l.b16 %v1822
  %v2016 = vunpack.c.h.b16 %v1822
  %v2017 = vunpack.c.l.b16 %v1823
  %v2018 = vunpack.c.h.b16 %v1823
  %v2019 = vunpack.c.l.b16 %v1824
  %v2020 = vunpack.c.h.b16 %v1824
  %v2021 = vunpack.c.l.b16 %v1825
  %v2022 = vunpack.c.h.b16 %v1825
  %v2023 = vunpack.c.l.b16 %v1826
  %v2024 = vunpack.c.h.b16 %v1826
  %v2025 = vunpack.c.l.b16 %v1827
  %v2026 = vunpack.c.h.b16 %v1827
  %v2027 = vunpack.c.l.b16 %v1828
  %v2028 = vunpack.c.h.b16 %v1828
  %v2029 = vunpack.c.l.b16 %v1829
  %v2030 = vunpack.c.h.b16 %v1829
  %v2031 = vunpack.c.l.b16 %v1830
  %v2032 = vunpack.c.h.b16 %v1830
  %v2033 = vunpack.c.l.b16 %v1831
  %v2034 = vunpack.c.h.b16 %v1831
  %v2035 = vunpack.c.l.b16 %v1832
  %v2036 = vunpack.c.h.b16 %v1832
  %v2037 = vpack.c.b16 %v1911, %v1909
  %v2038 = vpack.c.b16 %v1912, %v1910
  %v2039 = vpack.c.b16 %v1915, %v1913
  %v2040 = vpack.c.b16 %v1916, %v1914
  %v2041 = vpack.c.b16 %v1919, %v1917
  %v2042 = vpack.c.b16 %v1920, %v1918
  %v2043 = vpack.c.b16 %v1923, %v1921
  %v2044 = vpack.c.b16 %v1924, %v1922
  %v2045 = vpack.c.b16 %v1927, %v1925
  %v2046 = vpack.c.b16 %v1928, %v1926
  %v2047 = vpack.c.b16 %v1931, %v1929
  %v2048 = vpack.c.b16 %v1932, %v1930
  %v2049 = vpack.c.b16 %v1935, %v1933
  %v2050 = vpack.c.b16 %v1936, %v1934
  %v2051 = vpack.c.b16 %v1939, %v1937
  %v2052 = vpack.c.b16 %v1940, %v1938
  %v2053 = vpack.c.b16 %v1943, %v1941
  %v2054 = vpack.c.b16 %v1944, %v1942
  %v2055 = vpack.c.b16 %v1947, %v1945
  %v2056 = vpack.c.b16 %v1948, %v1946
  %v2057 = vpack.c.b16 %v1951, %v1949
  %v2058 = vpack.c.b16 %v1952, %v1950
  %v2059 = vpack.c.b16 %v1955, %v1953
  %v2060 = vpack.c.b16 %v1956, %v1954
  %v2061 = vpack.c.b16 %v1959, %v1957
  %v2062 = vpack.c.b16 %v1960, %v1958
  %v2063 = vpack.c.b16 %v1963, %v1961
  %v2064 = vpack.c.b16 %v1964, %v1962
  %v2065 = vpack.c.b16 %v1967, %v1965
  %v2066 = vpack.c.b16 %v1968, %v1966
  %v2067 = vpack.c.b16 %v1971, %v1969
  %v2068 = vpack.c.b16 %v1972, %v1970
  %v2069 = vpack.c.b16 %v1975, %v1973
  %v2070 = vpack.c.b16 %v1976, %v1974
  %v2071 = vpack.c.b16 %v1979, %v1977
  %v2072 = vpack.c.b16 %v1980, %v1978
  %v2073 = vpack.c.b16 %v1983, %v1981
  %v2074 = vpack.c.b16 %v1984, %v1982
  %v2075 = vpack.c.b16 %v1987, %v1985
  %v2076 = vpack.c.b16 %v1988, %v1986
  %v2077 = vpack.c.b16 %v1991, %v1989
  %v2078 = vpack.c.b16 %v1992, %v1990
  %v2079 = vpack.c.b16 %v1995, %v1993
  %v2080 = vpack.c.b16 %v1996, %v1994
  %v2081 = vpack.c.b16 %v1999, %v1997
  %v2082 = vpack.c.b16 %v2000, %v1998
  %v2083 = vpack.c.b16 %v2003, %v2001
  %v2084 = vpack.c.b16 %v2004, %v2002
  %v2085 = vpack.c.b16 %v2007, %v2005
  %v2086 = vpack.c.b16 %v2008, %v2006
  %v2087 = vpack.c.b16 %v2011, %v2009
  %v2088 = vpack.c.b16 %v2012, %v2010
  %v2089 = vpack.c.b16 %v2015, %v2013
  %v2090 = vpack.c.b16 %v2016, %v2014
  %v2091 = vpack.c.b16 %v2019, %v2017
  %v2092 = vpack.c.b16 %v2020, %v2018
  %v2093 = vpack.c.b16 %v2023, %v2021
  %v2094 = vpack.c.b16 %v2024, %v2022
  %v2095 = vpack.c.b16 %v2027, %v2025
  %v2096 = vpack.c.b16 %v2028, %v2026
  %v2097 = vpack.c.b16 %v2031, %v2029
  %v2098 = vpack.c.b16 %v2032, %v2030
  %v2099 = vpack.c.b16 %v2035, %v2033
  %v2100 = vpack.c.b16 %v2036, %v2034
  %2165 = vmatprep.subr.bf16.mxu0 %v2038
  %2166 = vmatpush1.bf16.msra.mxu0 %v2037
  %2167 = vmatprep.subr.bf16.mxu0 %v2040
  %2168 = vmatpush1.bf16.msra.mxu0 %v2039
  %2169 = vmatprep.subr.bf16.mxu0 %v2042
  %2170 = vmatpush1.bf16.msra.mxu0 %v2041
  %2171 = vmatprep.subr.bf16.mxu0 %v2044
  %2172 = vmatpush1.bf16.msra.mxu0 %v2043
  %2173 = vmatprep.subr.bf16.mxu0 %v2046
  %2174 = vmatpush1.bf16.msra.mxu0 %v2045
  %2175 = vmatprep.subr.bf16.mxu0 %v2048
  %2176 = vmatpush1.bf16.msra.mxu0 %v2047
  %2177 = vmatprep.subr.bf16.mxu0 %v2050
  %2178 = vmatpush1.bf16.msra.mxu0 %v2049
  %2179 = vmatprep.subr.bf16.mxu0 %v2052
  %2180 = vmatpush1.bf16.msra.mxu0 %v2051
  %2181 = vmatprep.subr.bf16.mxu0 %v2054
  %2182 = vmatpush1.bf16.msra.mxu0 %v2053
  %2183 = vmatprep.subr.bf16.mxu0 %v2056
  %2184 = vmatpush1.bf16.msra.mxu0 %v2055
  %2185 = vmatprep.subr.bf16.mxu0 %v2058
  %2186 = vmatpush1.bf16.msra.mxu0 %v2057
  %2187 = vmatprep.subr.bf16.mxu0 %v2060
  %2188 = vmatpush1.bf16.msra.mxu0 %v2059
  %2189 = vmatprep.subr.bf16.mxu0 %v2062
  %2190 = vmatpush1.bf16.msra.mxu0 %v2061
  %2191 = vmatprep.subr.bf16.mxu0 %v2064
  %2192 = vmatpush1.bf16.msra.mxu0 %v2063
  %2193 = vmatprep.subr.bf16.mxu0 %v2066
  %2194 = vmatpush1.bf16.msra.mxu0 %v2065
  %2195 = vmatprep.subr.bf16.mxu0 %v2068
  %2196 = vmatpush1.bf16.msra.mxu0 %v2067
  %2197 = vmatprep.mubr.bf16.mxu0 %v1766
  %2198 = vmatmul.mubr.bf16.gmra.mrb[0].mxu0 %v1765
  %v2199 = vpop.f32.mrb[0].mxu0
  %v2200 = vadd.f32 %v1838, %v2199
  %v2201 = vpop.f32.mrb[0].mxu0
  %v2202 = vadd.f32 %v1842, %v2201
  %v2203 = vpop.f32.mrb[0].mxu0
  %v2204 = vpop.f32.mrb[0].mxu0
  %2205 = vdwg.mxu0
  %2206 = vmatprep.subr.bf16.mxu0 %v2070
  %2207 = vmatpush1.bf16.msra.mxu0 %v2069
  %2208 = vmatprep.subr.bf16.mxu0 %v2072
  %2209 = vmatpush1.bf16.msra.mxu0 %v2071
  %2210 = vmatprep.subr.bf16.mxu0 %v2074
  %2211 = vmatpush1.bf16.msra.mxu0 %v2073
  %2212 = vmatprep.subr.bf16.mxu0 %v2076
  %2213 = vmatpush1.bf16.msra.mxu0 %v2075
  %2214 = vmatprep.subr.bf16.mxu0 %v2078
  %2215 = vmatpush1.bf16.msra.mxu0 %v2077
  %2216 = vmatprep.subr.bf16.mxu0 %v2080
  %2217 = vmatpush1.bf16.msra.mxu0 %v2079
  %2218 = vmatprep.subr.bf16.mxu0 %v2082
  %2219 = vmatpush1.bf16.msra.mxu0 %v2081
  %2220 = vmatprep.subr.bf16.mxu0 %v2084
  %2221 = vmatpush1.bf16.msra.mxu0 %v2083
  %2222 = vmatprep.subr.bf16.mxu0 %v2086
  %2223 = vmatpush1.bf16.msra.mxu0 %v2085
  %2224 = vmatprep.subr.bf16.mxu0 %v2088
  %2225 = vmatpush1.bf16.msra.mxu0 %v2087
  %2226 = vmatprep.subr.bf16.mxu0 %v2090
  %2227 = vmatpush1.bf16.msra.mxu0 %v2089
  %2228 = vmatprep.subr.bf16.mxu0 %v2092
  %2229 = vmatpush1.bf16.msra.mxu0 %v2091
  %2230 = vmatprep.subr.bf16.mxu0 %v2094
  %2231 = vmatpush1.bf16.msra.mxu0 %v2093
  %2232 = vmatprep.subr.bf16.mxu0 %v2096
  %2233 = vmatpush1.bf16.msra.mxu0 %v2095
  %2234 = vmatprep.subr.bf16.mxu0 %v2098
  %2235 = vmatpush1.bf16.msra.mxu0 %v2097
  %2236 = vmatprep.subr.bf16.mxu0 %v2100
  %2237 = vmatpush1.bf16.msra.mxu0 %v2099
  %2238 = vmatprep.mubr.bf16.mxu0 %v1768
  %2239 = vmatmul.mubr.bf16.gmra.mrb[0].mxu0 %v1767
  %v2240 = vpop.f32.mrb[0].mxu0
  %v2241 = vadd.f32 %v2200, %v2240
  %v2242 = vpop.f32.mrb[0].mxu0
  %v2243 = vadd.f32 %v2202, %v2242
  %v2244 = vpop.f32.mrb[0].mxu0
  %v2245 = vpop.f32.mrb[0].mxu0
  %2246 = vdwg.mxu0
  %v2247 = vmul.f32 %v2243, 1.442695
  %v2248 = vpow.pop %v2247
  %v2249 = vld [vmem:[%s5] sm:$0xff]
  %v2250 = vmul.f32 %v2248, %v2249
  %v2251 = vadd.f32 %v2241, %v2250
  %2252 = vst [vmem:[%s11] sm:$0xff] %v2251
  %v2253 = vpack.c.bf16 %v2251, %v2251
  %v2254 = vld [vmem:[%s6] sm:$0xff]
  %v2255 = vld [vmem:[%s6 + $0x8] sm:$0xff]
  %v2256 = vld [vmem:[%s6 + $0x10] sm:$0xff]
  %v2257 = vld [vmem:[%s6 + $0x18] sm:$0xff]
  %v2258 = vld [vmem:[%s6 + $0x20] sm:$0xff]
  %v2259 = vld [vmem:[%s6 + $0x28] sm:$0xff]
  %v2260 = vld [vmem:[%s6 + $0x30] sm:$0xff]
  %v2261 = vld [vmem:[%s6 + $0x38] sm:$0xff]
  %v2262 = vld [vmem:[%s6 + $0x40] sm:$0xff]
  %v2263 = vld [vmem:[%s6 + $0x48] sm:$0xff]
  %v2264 = vld [vmem:[%s6 + $0x50] sm:$0xff]
  %v2265 = vld [vmem:[%s6 + $0x58] sm:$0xff]
  %v2266 = vld [vmem:[%s6 + $0x60] sm:$0xff]
  %v2267 = vld [vmem:[%s6 + $0x68] sm:$0xff]
  %v2268 = vld [vmem:[%s6 + $0x70] sm:$0xff]
  %v2269 = vld [vmem:[%s6 + $0x78] sm:$0xff]
  %v2270 = vld [vmem:[%s6 + $0x80] sm:$0xff]
  %v2271 = vld [vmem:[%s6 + $0x88] sm:$0xff]
  %v2272 = vld [vmem:[%s6 + $0x90] sm:$0xff]
  %v2273 = vld [vmem:[%s6 + $0x98] sm:$0xff]
  %v2274 = vld [vmem:[%s6 + $0xa0] sm:$0xff]
  %v2275 = vld [vmem:[%s6 + $0xa8] sm:$0xff]
  %v2276 = vld [vmem:[%s6 + $0xb0] sm:$0xff]
  %v2277 = vld [vmem:[%s6 + $0xb8] sm:$0xff]
  %v2278 = vld [vmem:[%s6 + $0xc0] sm:$0xff]
  %v2279 = vld [vmem:[%s6 + $0xc8] sm:$0xff]
  %v2280 = vld [vmem:[%s6 + $0xd0] sm:$0xff]
  %v2281 = vld [vmem:[%s6 + $0xd8] sm:$0xff]
  %v2282 = vld [vmem:[%s6 + $0xe0] sm:$0xff]
  %v2283 = vld [vmem:[%s6 + $0xe8] sm:$0xff]
  %v2284 = vld [vmem:[%s6 + $0xf0] sm:$0xff]
  %v2285 = vld [vmem:[%s6 + $0xf8] sm:$0xff]
  %v2286 = vld [vmem:[%s7] sm:$0xf]
  %v2288 = vlaneseq
  %v2289 = vshrl.u32 %v2288, 7
  %v2290 = vsub.s32 0, %v2289
  %v2291 = vrot.slane %v2286, %v2290
  %v2292 = vlaneseq
  %v2293 = vshrl.u32 %v2292, 7
  %v2294 = vsub.s32 1, %v2293
  %v2295 = vrot.slane %v2286, %v2294
  %v2296 = vlaneseq
  %v2297 = vshrl.u32 %v2296, 7
  %v2298 = vsub.s32 2, %v2297
  %v2299 = vrot.slane %v2286, %v2298
  %v2300 = vlaneseq
  %v2301 = vshrl.u32 %v2300, 7
  %v2302 = vsub.s32 3, %v2301
  %v2303 = vrot.slane %v2286, %v2302
  %v2340 = vunpack.c.l.b16 %v2254
  %v2341 = vunpack.c.h.b16 %v2254
  %v2342 = vunpack.c.l.b16 %v2255
  %v2343 = vunpack.c.h.b16 %v2255
  %v2344 = vunpack.c.l.b16 %v2256
  %v2345 = vunpack.c.h.b16 %v2256
  %v2346 = vunpack.c.l.b16 %v2257
  %v2347 = vunpack.c.h.b16 %v2257
  %v2348 = vunpack.c.l.b16 %v2258
  %v2349 = vunpack.c.h.b16 %v2258
  %v2350 = vunpack.c.l.b16 %v2259
  %v2351 = vunpack.c.h.b16 %v2259
  %v2352 = vunpack.c.l.b16 %v2260
  %v2353 = vunpack.c.h.b16 %v2260
  %v2354 = vunpack.c.l.b16 %v2261
  %v2355 = vunpack.c.h.b16 %v2261
  %v2356 = vunpack.c.l.b16 %v2262
  %v2357 = vunpack.c.h.b16 %v2262
  %v2358 = vunpack.c.l.b16 %v2263
  %v2359 = vunpack.c.h.b16 %v2263
  %v2360 = vunpack.c.l.b16 %v2264
  %v2361 = vunpack.c.h.b16 %v2264
  %v2362 = vunpack.c.l.b16 %v2265
  %v2363 = vunpack.c.h.b16 %v2265
  %v2364 = vunpack.c.l.b16 %v2266
  %v2365 = vunpack.c.h.b16 %v2266
  %v2366 = vunpack.c.l.b16 %v2267
  %v2367 = vunpack.c.h.b16 %v2267
  %v2368 = vunpack.c.l.b16 %v2268
  %v2369 = vunpack.c.h.b16 %v2268
  %v2370 = vunpack.c.l.b16 %v2269
  %v2371 = vunpack.c.h.b16 %v2269
  %v2372 = vunpack.c.l.b16 %v2270
  %v2373 = vunpack.c.h.b16 %v2270
  %v2374 = vunpack.c.l.b16 %v2271
  %v2375 = vunpack.c.h.b16 %v2271
  %v2376 = vunpack.c.l.b16 %v2272
  %v2377 = vunpack.c.h.b16 %v2272
  %v2378 = vunpack.c.l.b16 %v2273
  %v2379 = vunpack.c.h.b16 %v2273
  %v2380 = vunpack.c.l.b16 %v2274
  %v2381 = vunpack.c.h.b16 %v2274
  %v2382 = vunpack.c.l.b16 %v2275
  %v2383 = vunpack.c.h.b16 %v2275
  %v2384 = vunpack.c.l.b16 %v2276
  %v2385 = vunpack.c.h.b16 %v2276
  %v2386 = vunpack.c.l.b16 %v2277
  %v2387 = vunpack.c.h.b16 %v2277
  %v2388 = vunpack.c.l.b16 %v2278
  %v2389 = vunpack.c.h.b16 %v2278
  %v2390 = vunpack.c.l.b16 %v2279
  %v2391 = vunpack.c.h.b16 %v2279
  %v2392 = vunpack.c.l.b16 %v2280
  %v2393 = vunpack.c.h.b16 %v2280
  %v2394 = vunpack.c.l.b16 %v2281
  %v2395 = vunpack.c.h.b16 %v2281
  %v2396 = vunpack.c.l.b16 %v2282
  %v2397 = vunpack.c.h.b16 %v2282
  %v2398 = vunpack.c.l.b16 %v2283
  %v2399 = vunpack.c.h.b16 %v2283
  %v2400 = vunpack.c.l.b16 %v2284
  %v2401 = vunpack.c.h.b16 %v2284
  %v2402 = vunpack.c.l.b16 %v2285
  %v2403 = vunpack.c.h.b16 %v2285
  %v2404 = vpack.c.b16 %v2344, %v2340
  %v2405 = vpack.c.b16 %v2345, %v2341
  %v2406 = vpack.c.b16 %v2346, %v2342
  %v2407 = vpack.c.b16 %v2347, %v2343
  %v2408 = vpack.c.b16 %v2352, %v2348
  %v2409 = vpack.c.b16 %v2353, %v2349
  %v2410 = vpack.c.b16 %v2354, %v2350
  %v2411 = vpack.c.b16 %v2355, %v2351
  %v2412 = vpack.c.b16 %v2360, %v2356
  %v2413 = vpack.c.b16 %v2361, %v2357
  %v2414 = vpack.c.b16 %v2362, %v2358
  %v2415 = vpack.c.b16 %v2363, %v2359
  %v2416 = vpack.c.b16 %v2368, %v2364
  %v2417 = vpack.c.b16 %v2369, %v2365
  %v2418 = vpack.c.b16 %v2370, %v2366
  %v2419 = vpack.c.b16 %v2371, %v2367
  %v2420 = vpack.c.b16 %v2376, %v2372
  %v2421 = vpack.c.b16 %v2377, %v2373
  %v2422 = vpack.c.b16 %v2378, %v2374
  %v2423 = vpack.c.b16 %v2379, %v2375
  %v2424 = vpack.c.b16 %v2384, %v2380
  %v2425 = vpack.c.b16 %v2385, %v2381
  %v2426 = vpack.c.b16 %v2386, %v2382
  %v2427 = vpack.c.b16 %v2387, %v2383
  %v2428 = vpack.c.b16 %v2392, %v2388
  %v2429 = vpack.c.b16 %v2393, %v2389
  %v2430 = vpack.c.b16 %v2394, %v2390
  %v2431 = vpack.c.b16 %v2395, %v2391
  %v2432 = vpack.c.b16 %v2400, %v2396
  %v2433 = vpack.c.b16 %v2401, %v2397
  %v2434 = vpack.c.b16 %v2402, %v2398
  %v2435 = vpack.c.b16 %v2403, %v2399
  %2468 = vmatprep.subr.bf16.mxu0 %v2405
  %2469 = vmatpush1.bf16.msra.mxu0 %v2404
  %2470 = vmatprep.subr.bf16.mxu0 %v2409
  %2471 = vmatpush1.bf16.msra.mxu0 %v2408
  %2472 = vmatprep.subr.bf16.mxu0 %v2413
  %2473 = vmatpush1.bf16.msra.mxu0 %v2412
  %2474 = vmatprep.subr.bf16.mxu0 %v2417
  %2475 = vmatpush1.bf16.msra.mxu0 %v2416
  %2476 = vmatprep.subr.bf16.mxu0 %v2421
  %2477 = vmatpush1.bf16.msra.mxu0 %v2420
  %2478 = vmatprep.subr.bf16.mxu0 %v2425
  %2479 = vmatpush1.bf16.msra.mxu0 %v2424
  %2480 = vmatprep.subr.bf16.mxu0 %v2429
  %2481 = vmatpush1.bf16.msra.mxu0 %v2428
  %2482 = vmatprep.subr.bf16.mxu0 %v2433
  %2483 = vmatpush1.bf16.msra.mxu0 %v2432
  %2484 = vmatprep.subr.bf16.mxu0 0
  %2485 = vmatpush1.bf16.msra.mxu0 0
  %2486 = vmatprep.subr.bf16.mxu0 0
  %2487 = vmatpush1.bf16.msra.mxu0 0
  %2488 = vmatprep.subr.bf16.mxu0 0
  %2489 = vmatpush1.bf16.msra.mxu0 0
  %2490 = vmatprep.subr.bf16.mxu0 0
  %2491 = vmatpush1.bf16.msra.mxu0 0
  %2492 = vmatprep.subr.bf16.mxu0 0
  %2493 = vmatpush1.bf16.msra.mxu0 0
  %2494 = vmatprep.subr.bf16.mxu0 0
  %2495 = vmatpush1.bf16.msra.mxu0 0
  %2496 = vmatprep.subr.bf16.mxu0 0
  %2497 = vmatpush1.bf16.msra.mxu0 0
  %2498 = vmatprep.subr.bf16.mxu0 0
  %2499 = vmatpush1.bf16.msra.mxu0 0
  %2500 = vmatprep.mubr.bf16.mxu0 0
  %2501 = vmatmul.mubr.bf16.gmra.mrb[0].mxu0 %v2253
  %v2502 = vpop.f32.mrb[0].mxu0
  %v2503 = vadd.f32 %v2291, %v2502
  %v2504 = vpop.f32.mrb[0].mxu0
  %v2505 = vadd.f32 %v2295, %v2504
  %v2506 = vpop.f32.mrb[0].mxu0
  %v2507 = vpop.f32.mrb[0].mxu0
  %2508 = vdwg.mxu0
  %2509 = vmatprep.subr.bf16.mxu0 %v2407
  %2510 = vmatpush1.bf16.msra.mxu0 %v2406
  %2511 = vmatprep.subr.bf16.mxu0 %v2411
  %2512 = vmatpush1.bf16.msra.mxu0 %v2410
  %2513 = vmatprep.subr.bf16.mxu0 %v2415
  %2514 = vmatpush1.bf16.msra.mxu0 %v2414
  %2515 = vmatprep.subr.bf16.mxu0 %v2419
  %2516 = vmatpush1.bf16.msra.mxu0 %v2418
  %2517 = vmatprep.subr.bf16.mxu0 %v2423
  %2518 = vmatpush1.bf16.msra.mxu0 %v2422
  %2519 = vmatprep.subr.bf16.mxu0 %v2427
  %2520 = vmatpush1.bf16.msra.mxu0 %v2426
  %2521 = vmatprep.subr.bf16.mxu0 %v2431
  %2522 = vmatpush1.bf16.msra.mxu0 %v2430
  %2523 = vmatprep.subr.bf16.mxu0 %v2435
  %2524 = vmatpush1.bf16.msra.mxu0 %v2434
  %2525 = vmatprep.subr.bf16.mxu0 0
  %2526 = vmatpush1.bf16.msra.mxu0 0
  %2527 = vmatprep.subr.bf16.mxu0 0
  %2528 = vmatpush1.bf16.msra.mxu0 0
  %2529 = vmatprep.subr.bf16.mxu0 0
  %2530 = vmatpush1.bf16.msra.mxu0 0
  %2531 = vmatprep.subr.bf16.mxu0 0
  %2532 = vmatpush1.bf16.msra.mxu0 0
  %2533 = vmatprep.subr.bf16.mxu0 0
  %2534 = vmatpush1.bf16.msra.mxu0 0
  %2535 = vmatprep.subr.bf16.mxu0 0
  %2536 = vmatpush1.bf16.msra.mxu0 0
  %2537 = vmatprep.subr.bf16.mxu0 0
  %2538 = vmatpush1.bf16.msra.mxu0 0
  %2539 = vmatprep.subr.bf16.mxu0 0
  %2540 = vmatpush1.bf16.msra.mxu0 0
  %2541 = vmatprep.mubr.bf16.mxu0 0
  %2542 = vmatmul.mubr.bf16.gmra.mrb[0].mxu0 %v2253
  %v2543 = vpop.f32.mrb[0].mxu0
  %v2544 = vadd.f32 %v2299, %v2543
  %v2545 = vpop.f32.mrb[0].mxu0
  %v2546 = vadd.f32 %v2303, %v2545
  %v2547 = vpop.f32.mrb[0].mxu0
  %v2548 = vpop.f32.mrb[0].mxu0
  %2549 = vdwg.mxu0
  %v2550 = vmax.f32 %v2503, 0.0
  %v2551 = vmax.f32 %v2505, 0.0
  %v2552 = vmax.f32 %v2544, 0.0
  %v2553 = vmax.f32 %v2546, 0.0
  %v2554 = vpack.c.bf16 %v2550, %v2550
  %v2555 = vpack.c.bf16 %v2551, %v2551
  %v2556 = vpack.c.bf16 %v2552, %v2552
  %v2557 = vpack.c.bf16 %v2553, %v2553
  %v2558 = vld [vmem:[%s8] sm:$0xff]
  %v2559 = vld [vmem:[%s8 + $0x8] sm:$0xff]
  %v2560 = vld [vmem:[%s8 + $0x10] sm:$0xff]
  %v2561 = vld [vmem:[%s8 + $0x18] sm:$0xf]
  %v2562 = vld [vmem:[%s8 + $0x1c] sm:$0xff]
  %v2563 = vld [vmem:[%s8 + $0x24] sm:$0xff]
  %v2564 = vld [vmem:[%s8 + $0x2c] sm:$0xff]
  %v2565 = vld [vmem:[%s8 + $0x34] sm:$0xf]
  %v2566 = vld [vmem:[%s8 + $0x38] sm:$0xff]
  %v2567 = vld [vmem:[%s8 + $0x40] sm:$0xff]
  %v2568 = vld [vmem:[%s8 + $0x48] sm:$0xff]
  %v2569 = vld [vmem:[%s8 + $0x50] sm:$0xf]
  %v2570 = vld [vmem:[%s8 + $0x54] sm:$0xff]
  %v2571 = vld [vmem:[%s8 + $0x5c] sm:$0xff]
  %v2572 = vld [vmem:[%s8 + $0x64] sm:$0xff]
  %v2573 = vld [vmem:[%s8 + $0x6c] sm:$0xf]
  %v2574 = vld [vmem:[%s8 + $0x70] sm:$0xff]
  %v2575 = vld [vmem:[%s8 + $0x78] sm:$0xff]
  %v2576 = vld [vmem:[%s8 + $0x80] sm:$0xff]
  %v2577 = vld [vmem:[%s8 + $0x88] sm:$0xf]
  %v2578 = vld [vmem:[%s8 + $0x8c] sm:$0xff]
  %v2579 = vld [vmem:[%s8 + $0x94] sm:$0xff]
  %v2580 = vld [vmem:[%s8 + $0x9c] sm:$0xff]
  %v2581 = vld [vmem:[%s8 + $0xa4] sm:$0xf]
  %v2582 = vld [vmem:[%s8 + $0xa8] sm:$0xff]
  %v2583 = vld [vmem:[%s8 + $0xb0] sm:$0xff]
  %v2584 = vld [vmem:[%s8 + $0xb8] sm:$0xff]
  %v2585 = vld [vmem:[%s8 + $0xc0] sm:$0xf]
  %v2586 = vld [vmem:[%s8 + $0xc4] sm:$0xff]
  %v2587 = vld [vmem:[%s8 + $0xcc] sm:$0xff]
  %v2588 = vld [vmem:[%s8 + $0xd4] sm:$0xff]
  %v2589 = vld [vmem:[%s8 + $0xdc] sm:$0xf]
  %v2590 = vld [vmem:[%s8 + $0xe0] sm:$0xff]
  %v2591 = vld [vmem:[%s8 + $0xe8] sm:$0xff]
  %v2592 = vld [vmem:[%s8 + $0xf0] sm:$0xff]
  %v2593 = vld [vmem:[%s8 + $0xf8] sm:$0xf]
  %v2594 = vld [vmem:[%s8 + $0xfc] sm:$0xff]
  %v2595 = vld [vmem:[%s8 + $0x104] sm:$0xff]
  %v2596 = vld [vmem:[%s8 + $0x10c] sm:$0xff]
  %v2597 = vld [vmem:[%s8 + $0x114] sm:$0xf]
  %v2598 = vld [vmem:[%s8 + $0x118] sm:$0xff]
  %v2599 = vld [vmem:[%s8 + $0x120] sm:$0xff]
  %v2600 = vld [vmem:[%s8 + $0x128] sm:$0xff]
  %v2601 = vld [vmem:[%s8 + $0x130] sm:$0xf]
  %v2602 = vld [vmem:[%s8 + $0x134] sm:$0xff]
  %v2603 = vld [vmem:[%s8 + $0x13c] sm:$0xff]
  %v2604 = vld [vmem:[%s8 + $0x144] sm:$0xff]
  %v2605 = vld [vmem:[%s8 + $0x14c] sm:$0xf]
  %v2606 = vld [vmem:[%s8 + $0x150] sm:$0xff]
  %v2607 = vld [vmem:[%s8 + $0x158] sm:$0xff]
  %v2608 = vld [vmem:[%s8 + $0x160] sm:$0xff]
  %v2609 = vld [vmem:[%s8 + $0x168] sm:$0xf]
  %v2610 = vld [vmem:[%s8 + $0x16c] sm:$0xff]
  %v2611 = vld [vmem:[%s8 + $0x174] sm:$0xff]
  %v2612 = vld [vmem:[%s8 + $0x17c] sm:$0xff]
  %v2613 = vld [vmem:[%s8 + $0x184] sm:$0xf]
  %v2614 = vld [vmem:[%s8 + $0x188] sm:$0xff]
  %v2615 = vld [vmem:[%s8 + $0x190] sm:$0xff]
  %v2616 = vld [vmem:[%s8 + $0x198] sm:$0xff]
  %v2617 = vld [vmem:[%s8 + $0x1a0] sm:$0xf]
  %v2618 = vld [vmem:[%s8 + $0x1a4] sm:$0xff]
  %v2619 = vld [vmem:[%s8 + $0x1ac] sm:$0xff]
  %v2620 = vld [vmem:[%s8 + $0x1b4] sm:$0xff]
  %v2621 = vld [vmem:[%s8 + $0x1bc] sm:$0xf]
  %v2622 = vld [vmem:[%s8 + $0x1c0] sm:$0xff]
  %v2623 = vld [vmem:[%s8 + $0x1c8] sm:$0xff]
  %v2624 = vld [vmem:[%s8 + $0x1d0] sm:$0xff]
  %v2625 = vld [vmem:[%s8 + $0x1d8] sm:$0xf]
  %v2626 = vld [vmem:[%s8 + $0x1dc] sm:$0xff]
  %v2627 = vld [vmem:[%s8 + $0x1e4] sm:$0xff]
  %v2628 = vld [vmem:[%s8 + $0x1ec] sm:$0xff]
  %v2629 = vld [vmem:[%s8 + $0x1f4] sm:$0xf]
  %v2630 = vld [vmem:[%s8 + $0x1f8] sm:$0xff]
  %v2631 = vld [vmem:[%s8 + $0x200] sm:$0xff]
  %v2632 = vld [vmem:[%s8 + $0x208] sm:$0xff]
  %v2633 = vld [vmem:[%s8 + $0x210] sm:$0xf]
  %v2634 = vld [vmem:[%s8 + $0x214] sm:$0xff]
  %v2635 = vld [vmem:[%s8 + $0x21c] sm:$0xff]
  %v2636 = vld [vmem:[%s8 + $0x224] sm:$0xff]
  %v2637 = vld [vmem:[%s8 + $0x22c] sm:$0xf]
  %v2638 = vld [vmem:[%s8 + $0x230] sm:$0xff]
  %v2639 = vld [vmem:[%s8 + $0x238] sm:$0xff]
  %v2640 = vld [vmem:[%s8 + $0x240] sm:$0xff]
  %v2641 = vld [vmem:[%s8 + $0x248] sm:$0xf]
  %v2642 = vld [vmem:[%s8 + $0x24c] sm:$0xff]
  %v2643 = vld [vmem:[%s8 + $0x254] sm:$0xff]
  %v2644 = vld [vmem:[%s8 + $0x25c] sm:$0xff]
  %v2645 = vld [vmem:[%s8 + $0x264] sm:$0xf]
  %v2646 = vld [vmem:[%s8 + $0x268] sm:$0xff]
  %v2647 = vld [vmem:[%s8 + $0x270] sm:$0xff]
  %v2648 = vld [vmem:[%s8 + $0x278] sm:$0xff]
  %v2649 = vld [vmem:[%s8 + $0x280] sm:$0xf]
  %v2650 = vld [vmem:[%s8 + $0x284] sm:$0xff]
  %v2651 = vld [vmem:[%s8 + $0x28c] sm:$0xff]
  %v2652 = vld [vmem:[%s8 + $0x294] sm:$0xff]
  %v2653 = vld [vmem:[%s8 + $0x29c] sm:$0xf]
  %v2654 = vld [vmem:[%s8 + $0x2a0] sm:$0xff]
  %v2655 = vld [vmem:[%s8 + $0x2a8] sm:$0xff]
  %v2656 = vld [vmem:[%s8 + $0x2b0] sm:$0xff]
  %v2657 = vld [vmem:[%s8 + $0x2b8] sm:$0xf]
  %v2658 = vld [vmem:[%s8 + $0x2bc] sm:$0xff]
  %v2659 = vld [vmem:[%s8 + $0x2c4] sm:$0xff]
  %v2660 = vld [vmem:[%s8 + $0x2cc] sm:$0xff]
  %v2661 = vld [vmem:[%s8 + $0x2d4] sm:$0xf]
  %v2662 = vld [vmem:[%s8 + $0x2d8] sm:$0xff]
  %v2663 = vld [vmem:[%s8 + $0x2e0] sm:$0xff]
  %v2664 = vld [vmem:[%s8 + $0x2e8] sm:$0xff]
  %v2665 = vld [vmem:[%s8 + $0x2f0] sm:$0xf]
  %v2666 = vld [vmem:[%s8 + $0x2f4] sm:$0xff]
  %v2667 = vld [vmem:[%s8 + $0x2fc] sm:$0xff]
  %v2668 = vld [vmem:[%s8 + $0x304] sm:$0xff]
  %v2669 = vld [vmem:[%s8 + $0x30c] sm:$0xf]
  %v2670 = vld [vmem:[%s8 + $0x310] sm:$0xff]
  %v2671 = vld [vmem:[%s8 + $0x318] sm:$0xff]
  %v2672 = vld [vmem:[%s8 + $0x320] sm:$0xff]
  %v2673 = vld [vmem:[%s8 + $0x328] sm:$0xf]
  %v2674 = vld [vmem:[%s8 + $0x32c] sm:$0xff]
  %v2675 = vld [vmem:[%s8 + $0x334] sm:$0xff]
  %v2676 = vld [vmem:[%s8 + $0x33c] sm:$0xff]
  %v2677 = vld [vmem:[%s8 + $0x344] sm:$0xf]
  %v2678 = vld [vmem:[%s8 + $0x348] sm:$0xff]
  %v2679 = vld [vmem:[%s8 + $0x350] sm:$0xff]
  %v2680 = vld [vmem:[%s8 + $0x358] sm:$0xff]
  %v2681 = vld [vmem:[%s8 + $0x360] sm:$0xf]
  %v2682 = vld [vmem:[%s8 + $0x364] sm:$0xff]
  %v2683 = vld [vmem:[%s8 + $0x36c] sm:$0xff]
  %v2684 = vld [vmem:[%s8 + $0x374] sm:$0xff]
  %v2685 = vld [vmem:[%s8 + $0x37c] sm:$0xf]
  %v2686 = vld [vmem:[%s8 + $0x380] sm:$0xff]
  %v2687 = vld [vmem:[%s8 + $0x388] sm:$0xff]
  %v2688 = vld [vmem:[%s8 + $0x390] sm:$0xff]
  %v2689 = vld [vmem:[%s8 + $0x398] sm:$0xf]
  %v2690 = vld [vmem:[%s8 + $0x39c] sm:$0xff]
  %v2691 = vld [vmem:[%s8 + $0x3a4] sm:$0xff]
  %v2692 = vld [vmem:[%s8 + $0x3ac] sm:$0xff]
  %v2693 = vld [vmem:[%s8 + $0x3b4] sm:$0xf]
  %v2694 = vld [vmem:[%s8 + $0x3b8] sm:$0xff]
  %v2695 = vld [vmem:[%s8 + $0x3c0] sm:$0xff]
  %v2696 = vld [vmem:[%s8 + $0x3c8] sm:$0xff]
  %v2697 = vld [vmem:[%s8 + $0x3d0] sm:$0xf]
  %v2698 = vld [vmem:[%s8 + $0x3d4] sm:$0xff]
  %v2699 = vld [vmem:[%s8 + $0x3dc] sm:$0xff]
  %v2700 = vld [vmem:[%s8 + $0x3e4] sm:$0xff]
  %v2701 = vld [vmem:[%s8 + $0x3ec] sm:$0xf]
  %v2702 = vld [vmem:[%s8 + $0x3f0] sm:$0xff]
  %v2703 = vld [vmem:[%s8 + $0x3f8] sm:$0xff]
  %v2704 = vld [vmem:[%s8 + $0x400] sm:$0xff]
  %v2705 = vld [vmem:[%s8 + $0x408] sm:$0xf]
  %v2706 = vld [vmem:[%s8 + $0x40c] sm:$0xff]
  %v2707 = vld [vmem:[%s8 + $0x414] sm:$0xff]
  %v2708 = vld [vmem:[%s8 + $0x41c] sm:$0xff]
  %v2709 = vld [vmem:[%s8 + $0x424] sm:$0xf]
  %v2710 = vld [vmem:[%s8 + $0x428] sm:$0xff]
  %v2711 = vld [vmem:[%s8 + $0x430] sm:$0xff]
  %v2712 = vld [vmem:[%s8 + $0x438] sm:$0xff]
  %v2713 = vld [vmem:[%s8 + $0x440] sm:$0xf]
  %v2714 = vld [vmem:[%s8 + $0x444] sm:$0xff]
  %v2715 = vld [vmem:[%s8 + $0x44c] sm:$0xff]
  %v2716 = vld [vmem:[%s8 + $0x454] sm:$0xff]
  %v2717 = vld [vmem:[%s8 + $0x45c] sm:$0xf]
  %v2718 = vld [vmem:[%s8 + $0x460] sm:$0xff]
  %v2719 = vld [vmem:[%s8 + $0x468] sm:$0xff]
  %v2720 = vld [vmem:[%s8 + $0x470] sm:$0xff]
  %v2721 = vld [vmem:[%s8 + $0x478] sm:$0xf]
  %v2722 = vld [vmem:[%s8 + $0x47c] sm:$0xff]
  %v2723 = vld [vmem:[%s8 + $0x484] sm:$0xff]
  %v2724 = vld [vmem:[%s8 + $0x48c] sm:$0xff]
  %v2725 = vld [vmem:[%s8 + $0x494] sm:$0xf]
  %v2726 = vld [vmem:[%s8 + $0x498] sm:$0xff]
  %v2727 = vld [vmem:[%s8 + $0x4a0] sm:$0xff]
  %v2728 = vld [vmem:[%s8 + $0x4a8] sm:$0xff]
  %v2729 = vld [vmem:[%s8 + $0x4b0] sm:$0xf]
  %v2730 = vld [vmem:[%s8 + $0x4b4] sm:$0xff]
  %v2731 = vld [vmem:[%s8 + $0x4bc] sm:$0xff]
  %v2732 = vld [vmem:[%s8 + $0x4c4] sm:$0xff]
  %v2733 = vld [vmem:[%s8 + $0x4cc] sm:$0xf]
  %v2734 = vld [vmem:[%s8 + $0x4d0] sm:$0xff]
  %v2735 = vld [vmem:[%s8 + $0x4d8] sm:$0xff]
  %v2736 = vld [vmem:[%s8 + $0x4e0] sm:$0xff]
  %v2737 = vld [vmem:[%s8 + $0x4e8] sm:$0xf]
  %v2738 = vld [vmem:[%s8 + $0x4ec] sm:$0xff]
  %v2739 = vld [vmem:[%s8 + $0x4f4] sm:$0xff]
  %v2740 = vld [vmem:[%s8 + $0x4fc] sm:$0xff]
  %v2741 = vld [vmem:[%s8 + $0x504] sm:$0xf]
  %v2742 = vld [vmem:[%s8 + $0x508] sm:$0xff]
  %v2743 = vld [vmem:[%s8 + $0x510] sm:$0xff]
  %v2744 = vld [vmem:[%s8 + $0x518] sm:$0xff]
  %v2745 = vld [vmem:[%s8 + $0x520] sm:$0xf]
  %v2746 = vld [vmem:[%s8 + $0x524] sm:$0xff]
  %v2747 = vld [vmem:[%s8 + $0x52c] sm:$0xff]
  %v2748 = vld [vmem:[%s8 + $0x534] sm:$0xff]
  %v2749 = vld [vmem:[%s8 + $0x53c] sm:$0xf]
  %v2750 = vld [vmem:[%s8 + $0x540] sm:$0xff]
  %v2751 = vld [vmem:[%s8 + $0x548] sm:$0xff]
  %v2752 = vld [vmem:[%s8 + $0x550] sm:$0xff]
  %v2753 = vld [vmem:[%s8 + $0x558] sm:$0xf]
  %v2754 = vld [vmem:[%s8 + $0x55c] sm:$0xff]
  %v2755 = vld [vmem:[%s8 + $0x564] sm:$0xff]
  %v2756 = vld [vmem:[%s8 + $0x56c] sm:$0xff]
  %v2757 = vld [vmem:[%s8 + $0x574] sm:$0xf]
  %v2758 = vld [vmem:[%s8 + $0x578] sm:$0xff]
  %v2759 = vld [vmem:[%s8 + $0x580] sm:$0xff]
  %v2760 = vld [vmem:[%s8 + $0x588] sm:$0xff]
  %v2761 = vld [vmem:[%s8 + $0x590] sm:$0xf]
  %v2762 = vld [vmem:[%s8 + $0x594] sm:$0xff]
  %v2763 = vld [vmem:[%s8 + $0x59c] sm:$0xff]
  %v2764 = vld [vmem:[%s8 + $0x5a4] sm:$0xff]
  %v2765 = vld [vmem:[%s8 + $0x5ac] sm:$0xf]
  %v2766 = vld [vmem:[%s8 + $0x5b0] sm:$0xff]
  %v2767 = vld [vmem:[%s8 + $0x5b8] sm:$0xff]
  %v2768 = vld [vmem:[%s8 + $0x5c0] sm:$0xff]
  %v2769 = vld [vmem:[%s8 + $0x5c8] sm:$0xf]
  %v2770 = vld [vmem:[%s8 + $0x5cc] sm:$0xff]
  %v2771 = vld [vmem:[%s8 + $0x5d4] sm:$0xff]
  %v2772 = vld [vmem:[%s8 + $0x5dc] sm:$0xff]
  %v2773 = vld [vmem:[%s8 + $0x5e4] sm:$0xf]
  %v2774 = vld [vmem:[%s8 + $0x5e8] sm:$0xff]
  %v2775 = vld [vmem:[%s8 + $0x5f0] sm:$0xff]
  %v2776 = vld [vmem:[%s8 + $0x5f8] sm:$0xff]
  %v2777 = vld [vmem:[%s8 + $0x600] sm:$0xf]
  %v2778 = vld [vmem:[%s8 + $0x604] sm:$0xff]
  %v2779 = vld [vmem:[%s8 + $0x60c] sm:$0xff]
  %v2780 = vld [vmem:[%s8 + $0x614] sm:$0xff]
  %v2781 = vld [vmem:[%s8 + $0x61c] sm:$0xf]
  %v2782 = vld [vmem:[%s8 + $0x620] sm:$0xff]
  %v2783 = vld [vmem:[%s8 + $0x628] sm:$0xff]
  %v2784 = vld [vmem:[%s8 + $0x630] sm:$0xff]
  %v2785 = vld [vmem:[%s8 + $0x638] sm:$0xf]
  %v2786 = vld [vmem:[%s8 + $0x63c] sm:$0xff]
  %v2787 = vld [vmem:[%s8 + $0x644] sm:$0xff]
  %v2788 = vld [vmem:[%s8 + $0x64c] sm:$0xff]
  %v2789 = vld [vmem:[%s8 + $0x654] sm:$0xf]
  %v2790 = vld [vmem:[%s8 + $0x658] sm:$0xff]
  %v2791 = vld [vmem:[%s8 + $0x660] sm:$0xff]
  %v2792 = vld [vmem:[%s8 + $0x668] sm:$0xff]
  %v2793 = vld [vmem:[%s8 + $0x670] sm:$0xf]
  %v2794 = vld [vmem:[%s8 + $0x674] sm:$0xff]
  %v2795 = vld [vmem:[%s8 + $0x67c] sm:$0xff]
  %v2796 = vld [vmem:[%s8 + $0x684] sm:$0xff]
  %v2797 = vld [vmem:[%s8 + $0x68c] sm:$0xf]
  %v2798 = vld [vmem:[%s8 + $0x690] sm:$0xff]
  %v2799 = vld [vmem:[%s8 + $0x698] sm:$0xff]
  %v2800 = vld [vmem:[%s8 + $0x6a0] sm:$0xff]
  %v2801 = vld [vmem:[%s8 + $0x6a8] sm:$0xf]
  %v2802 = vld [vmem:[%s8 + $0x6ac] sm:$0xff]
  %v2803 = vld [vmem:[%s8 + $0x6b4] sm:$0xff]
  %v2804 = vld [vmem:[%s8 + $0x6bc] sm:$0xff]
  %v2805 = vld [vmem:[%s8 + $0x6c4] sm:$0xf]
  %v2806 = vld [vmem:[%s8 + $0x6c8] sm:$0xff]
  %v2807 = vld [vmem:[%s8 + $0x6d0] sm:$0xff]
  %v2808 = vld [vmem:[%s8 + $0x6d8] sm:$0xff]
  %v2809 = vld [vmem:[%s8 + $0x6e0] sm:$0xf]
  %v2810 = vld [vmem:[%s8 + $0x6e4] sm:$0xff]
  %v2811 = vld [vmem:[%s8 + $0x6ec] sm:$0xff]
  %v2812 = vld [vmem:[%s8 + $0x6f4] sm:$0xff]
  %v2813 = vld [vmem:[%s8 + $0x6fc] sm:$0xf]
  %v2814 = vld [vmem:[%s9] sm:$0xff]
  %v2816 = vlaneseq
  %v2817 = vshrl.u32 %v2816, 7
  %v2818 = vsub.s32 0, %v2817
  %v2819 = vrot.slane %v2814, %v2818
  %v2820 = vlaneseq
  %v2821 = vshrl.u32 %v2820, 7
  %v2822 = vsub.s32 1, %v2821
  %v2823 = vrot.slane %v2814, %v2822
  %v2824 = vlaneseq
  %v2825 = vshrl.u32 %v2824, 7
  %v2826 = vsub.s32 2, %v2825
  %v2827 = vrot.slane %v2814, %v2826
  %v2828 = vlaneseq
  %v2829 = vshrl.u32 %v2828, 7
  %v2830 = vsub.s32 3, %v2829
  %v2831 = vrot.slane %v2814, %v2830
  %v2832 = vlaneseq
  %v2833 = vshrl.u32 %v2832, 7
  %v2834 = vsub.s32 4, %v2833
  %v2835 = vrot.slane %v2814, %v2834
  %v2836 = vlaneseq
  %v2837 = vshrl.u32 %v2836, 7
  %v2838 = vsub.s32 5, %v2837
  %v2839 = vrot.slane %v2814, %v2838
  %v2840 = vlaneseq
  %v2841 = vshrl.u32 %v2840, 7
  %v2842 = vsub.s32 6, %v2841
  %v2843 = vrot.slane %v2814, %v2842
  %v3107 = vunpack.c.l.b16 %v2558
  %v3108 = vunpack.c.h.b16 %v2558
  %v3109 = vunpack.c.l.b16 %v2559
  %v3110 = vunpack.c.h.b16 %v2559
  %v3111 = vunpack.c.l.b16 %v2560
  %v3112 = vunpack.c.h.b16 %v2560
  %v3113 = vunpack.c.l.b16 %v2561
  %v3114 = vunpack.c.l.b16 %v2562
  %v3115 = vunpack.c.h.b16 %v2562
  %v3116 = vunpack.c.l.b16 %v2563
  %v3117 = vunpack.c.h.b16 %v2563
  %v3118 = vunpack.c.l.b16 %v2564
  %v3119 = vunpack.c.h.b16 %v2564
  %v3120 = vunpack.c.l.b16 %v2565
  %v3121 = vunpack.c.l.b16 %v2566
  %v3122 = vunpack.c.h.b16 %v2566
  %v3123 = vunpack.c.l.b16 %v2567
  %v3124 = vunpack.c.h.b16 %v2567
  %v3125 = vunpack.c.l.b16 %v2568
  %v3126 = vunpack.c.h.b16 %v2568
  %v3127 = vunpack.c.l.b16 %v2569
  %v3128 = vunpack.c.l.b16 %v2570
  %v3129 = vunpack.c.h.b16 %v2570
  %v3130 = vunpack.c.l.b16 %v2571
  %v3131 = vunpack.c.h.b16 %v2571
  %v3132 = vunpack.c.l.b16 %v2572
  %v3133 = vunpack.c.h.b16 %v2572
  %v3134 = vunpack.c.l.b16 %v2573
  %v3135 = vunpack.c.l.b16 %v2574
  %v3136 = vunpack.c.h.b16 %v2574
  %v3137 = vunpack.c.l.b16 %v2575
  %v3138 = vunpack.c.h.b16 %v2575
  %v3139 = vunpack.c.l.b16 %v2576
  %v3140 = vunpack.c.h.b16 %v2576
  %v3141 = vunpack.c.l.b16 %v2577
  %v3142 = vunpack.c.l.b16 %v2578
  %v3143 = vunpack.c.h.b16 %v2578
  %v3144 = vunpack.c.l.b16 %v2579
  %v3145 = vunpack.c.h.b16 %v2579
  %v3146 = vunpack.c.l.b16 %v2580
  %v3147 = vunpack.c.h.b16 %v2580
  %v3148 = vunpack.c.l.b16 %v2581
  %v3149 = vunpack.c.l.b16 %v2582
  %v3150 = vunpack.c.h.b16 %v2582
  %v3151 = vunpack.c.l.b16 %v2583
  %v3152 = vunpack.c.h.b16 %v2583
  %v3153 = vunpack.c.l.b16 %v2584
  %v3154 = vunpack.c.h.b16 %v2584
  %v3155 = vunpack.c.l.b16 %v2585
  %v3156 = vunpack.c.l.b16 %v2586
  %v3157 = vunpack.c.h.b16 %v2586
  %v3158 = vunpack.c.l.b16 %v2587
  %v3159 = vunpack.c.h.b16 %v2587
  %v3160 = vunpack.c.l.b16 %v2588
  %v3161 = vunpack.c.h.b16 %v2588
  %v3162 = vunpack.c.l.b16 %v2589
  %v3163 = vunpack.c.l.b16 %v2590
  %v3164 = vunpack.c.h.b16 %v2590
  %v3165 = vunpack.c.l.b16 %v2591
  %v3166 = vunpack.c.h.b16 %v2591
  %v3167 = vunpack.c.l.b16 %v2592
  %v3168 = vunpack.c.h.b16 %v2592
  %v3169 = vunpack.c.l.b16 %v2593
  %v3170 = vunpack.c.l.b16 %v2594
  %v3171 = vunpack.c.h.b16 %v2594
  %v3172 = vunpack.c.l.b16 %v2595
  %v3173 = vunpack.c.h.b16 %v2595
  %v3174 = vunpack.c.l.b16 %v2596
  %v3175 = vunpack.c.h.b16 %v2596
  %v3176 = vunpack.c.l.b16 %v2597
  %v3177 = vunpack.c.l.b16 %v2598
  %v3178 = vunpack.c.h.b16 %v2598
  %v3179 = vunpack.c.l.b16 %v2599
  %v3180 = vunpack.c.h.b16 %v2599
  %v3181 = vunpack.c.l.b16 %v2600
  %v3182 = vunpack.c.h.b16 %v2600
  %v3183 = vunpack.c.l.b16 %v2601
  %v3184 = vunpack.c.l.b16 %v2602
  %v3185 = vunpack.c.h.b16 %v2602
  %v3186 = vunpack.c.l.b16 %v2603
  %v3187 = vunpack.c.h.b16 %v2603
  %v3188 = vunpack.c.l.b16 %v2604
  %v3189 = vunpack.c.h.b16 %v2604
  %v3190 = vunpack.c.l.b16 %v2605
  %v3191 = vunpack.c.l.b16 %v2606
  %v3192 = vunpack.c.h.b16 %v2606
  %v3193 = vunpack.c.l.b16 %v2607
  %v3194 = vunpack.c.h.b16 %v2607
  %v3195 = vunpack.c.l.b16 %v2608
  %v3196 = vunpack.c.h.b16 %v2608
  %v3197 = vunpack.c.l.b16 %v2609
  %v3198 = vunpack.c.l.b16 %v2610
  %v3199 = vunpack.c.h.b16 %v2610
  %v3200 = vunpack.c.l.b16 %v2611
  %v3201 = vunpack.c.h.b16 %v2611
  %v3202 = vunpack.c.l.b16 %v2612
  %v3203 = vunpack.c.h.b16 %v2612
  %v3204 = vunpack.c.l.b16 %v2613
  %v3205 = vunpack.c.l.b16 %v2614
  %v3206 = vunpack.c.h.b16 %v2614
  %v3207 = vunpack.c.l.b16 %v2615
  %v3208 = vunpack.c.h.b16 %v2615
  %v3209 = vunpack.c.l.b16 %v2616
  %v3210 = vunpack.c.h.b16 %v2616
  %v3211 = vunpack.c.l.b16 %v2617
  %v3212 = vunpack.c.l.b16 %v2618
  %v3213 = vunpack.c.h.b16 %v2618
  %v3214 = vunpack.c.l.b16 %v2619
  %v3215 = vunpack.c.h.b16 %v2619
  %v3216 = vunpack.c.l.b16 %v2620
  %v3217 = vunpack.c.h.b16 %v2620
  %v3218 = vunpack.c.l.b16 %v2621
  %v3219 = vunpack.c.l.b16 %v2622
  %v3220 = vunpack.c.h.b16 %v2622
  %v3221 = vunpack.c.l.b16 %v2623
  %v3222 = vunpack.c.h.b16 %v2623
  %v3223 = vunpack.c.l.b16 %v2624
  %v3224 = vunpack.c.h.b16 %v2624
  %v3225 = vunpack.c.l.b16 %v2625
  %v3226 = vunpack.c.l.b16 %v2626
  %v3227 = vunpack.c.h.b16 %v2626
  %v3228 = vunpack.c.l.b16 %v2627
  %v3229 = vunpack.c.h.b16 %v2627
  %v3230 = vunpack.c.l.b16 %v2628
  %v3231 = vunpack.c.h.b16 %v2628
  %v3232 = vunpack.c.l.b16 %v2629
  %v3233 = vunpack.c.l.b16 %v2630
  %v3234 = vunpack.c.h.b16 %v2630
  %v3235 = vunpack.c.l.b16 %v2631
  %v3236 = vunpack.c.h.b16 %v2631
  %v3237 = vunpack.c.l.b16 %v2632
  %v3238 = vunpack.c.h.b16 %v2632
  %v3239 = vunpack.c.l.b16 %v2633
  %v3240 = vunpack.c.l.b16 %v2634
  %v3241 = vunpack.c.h.b16 %v2634
  %v3242 = vunpack.c.l.b16 %v2635
  %v3243 = vunpack.c.h.b16 %v2635
  %v3244 = vunpack.c.l.b16 %v2636
  %v3245 = vunpack.c.h.b16 %v2636
  %v3246 = vunpack.c.l.b16 %v2637
  %v3247 = vunpack.c.l.b16 %v2638
  %v3248 = vunpack.c.h.b16 %v2638
  %v3249 = vunpack.c.l.b16 %v2639
  %v3250 = vunpack.c.h.b16 %v2639
  %v3251 = vunpack.c.l.b16 %v2640
  %v3252 = vunpack.c.h.b16 %v2640
  %v3253 = vunpack.c.l.b16 %v2641
  %v3254 = vunpack.c.l.b16 %v2642
  %v3255 = vunpack.c.h.b16 %v2642
  %v3256 = vunpack.c.l.b16 %v2643
  %v3257 = vunpack.c.h.b16 %v2643
  %v3258 = vunpack.c.l.b16 %v2644
  %v3259 = vunpack.c.h.b16 %v2644
  %v3260 = vunpack.c.l.b16 %v2645
  %v3261 = vunpack.c.l.b16 %v2646
  %v3262 = vunpack.c.h.b16 %v2646
  %v3263 = vunpack.c.l.b16 %v2647
  %v3264 = vunpack.c.h.b16 %v2647
  %v3265 = vunpack.c.l.b16 %v2648
  %v3266 = vunpack.c.h.b16 %v2648
  %v3267 = vunpack.c.l.b16 %v2649
  %v3268 = vunpack.c.l.b16 %v2650
  %v3269 = vunpack.c.h.b16 %v2650
  %v3270 = vunpack.c.l.b16 %v2651
  %v3271 = vunpack.c.h.b16 %v2651
  %v3272 = vunpack.c.l.b16 %v2652
  %v3273 = vunpack.c.h.b16 %v2652
  %v3274 = vunpack.c.l.b16 %v2653
  %v3275 = vunpack.c.l.b16 %v2654
  %v3276 = vunpack.c.h.b16 %v2654
  %v3277 = vunpack.c.l.b16 %v2655
  %v3278 = vunpack.c.h.b16 %v2655
  %v3279 = vunpack.c.l.b16 %v2656
  %v3280 = vunpack.c.h.b16 %v2656
  %v3281 = vunpack.c.l.b16 %v2657
  %v3282 = vunpack.c.l.b16 %v2658
  %v3283 = vunpack.c.h.b16 %v2658
  %v3284 = vunpack.c.l.b16 %v2659
  %v3285 = vunpack.c.h.b16 %v2659
  %v3286 = vunpack.c.l.b16 %v2660
  %v3287 = vunpack.c.h.b16 %v2660
  %v3288 = vunpack.c.l.b16 %v2661
  %v3289 = vunpack.c.l.b16 %v2662
  %v3290 = vunpack.c.h.b16 %v2662
  %v3291 = vunpack.c.l.b16 %v2663
  %v3292 = vunpack.c.h.b16 %v2663
  %v3293 = vunpack.c.l.b16 %v2664
  %v3294 = vunpack.c.h.b16 %v2664
  %v3295 = vunpack.c.l.b16 %v2665
  %v3296 = vunpack.c.l.b16 %v2666
  %v3297 = vunpack.c.h.b16 %v2666
  %v3298 = vunpack.c.l.b16 %v2667
  %v3299 = vunpack.c.h.b16 %v2667
  %v3300 = vunpack.c.l.b16 %v2668
  %v3301 = vunpack.c.h.b16 %v2668
  %v3302 = vunpack.c.l.b16 %v2669
  %v3303 = vunpack.c.l.b16 %v2670
  %v3304 = vunpack.c.h.b16 %v2670
  %v3305 = vunpack.c.l.b16 %v2671
  %v3306 = vunpack.c.h.b16 %v2671
  %v3307 = vunpack.c.l.b16 %v2672
  %v3308 = vunpack.c.h.b16 %v2672
  %v3309 = vunpack.c.l.b16 %v2673
  %v3310 = vunpack.c.l.b16 %v2674
  %v3311 = vunpack.c.h.b16 %v2674
  %v3312 = vunpack.c.l.b16 %v2675
  %v3313 = vunpack.c.h.b16 %v2675
  %v3314 = vunpack.c.l.b16 %v2676
  %v3315 = vunpack.c.h.b16 %v2676
  %v3316 = vunpack.c.l.b16 %v2677
  %v3317 = vunpack.c.l.b16 %v2678
  %v3318 = vunpack.c.h.b16 %v2678
  %v3319 = vunpack.c.l.b16 %v2679
  %v3320 = vunpack.c.h.b16 %v2679
  %v3321 = vunpack.c.l.b16 %v2680
  %v3322 = vunpack.c.h.b16 %v2680
  %v3323 = vunpack.c.l.b16 %v2681
  %v3324 = vunpack.c.l.b16 %v2682
  %v3325 = vunpack.c.h.b16 %v2682
  %v3326 = vunpack.c.l.b16 %v2683
  %v3327 = vunpack.c.h.b16 %v2683
  %v3328 = vunpack.c.l.b16 %v2684
  %v3329 = vunpack.c.h.b16 %v2684
  %v3330 = vunpack.c.l.b16 %v2685
  %v3331 = vunpack.c.l.b16 %v2686
  %v3332 = vunpack.c.h.b16 %v2686
  %v3333 = vunpack.c.l.b16 %v2687
  %v3334 = vunpack.c.h.b16 %v2687
  %v3335 = vunpack.c.l.b16 %v2688
  %v3336 = vunpack.c.h.b16 %v2688
  %v3337 = vunpack.c.l.b16 %v2689
  %v3338 = vunpack.c.l.b16 %v2690
  %v3339 = vunpack.c.h.b16 %v2690
  %v3340 = vunpack.c.l.b16 %v2691
  %v3341 = vunpack.c.h.b16 %v2691
  %v3342 = vunpack.c.l.b16 %v2692
  %v3343 = vunpack.c.h.b16 %v2692
  %v3344 = vunpack.c.l.b16 %v2693
  %v3345 = vunpack.c.l.b16 %v2694
  %v3346 = vunpack.c.h.b16 %v2694
  %v3347 = vunpack.c.l.b16 %v2695
  %v3348 = vunpack.c.h.b16 %v2695
  %v3349 = vunpack.c.l.b16 %v2696
  %v3350 = vunpack.c.h.b16 %v2696
  %v3351 = vunpack.c.l.b16 %v2697
  %v3352 = vunpack.c.l.b16 %v2698
  %v3353 = vunpack.c.h.b16 %v2698
  %v3354 = vunpack.c.l.b16 %v2699
  %v3355 = vunpack.c.h.b16 %v2699
  %v3356 = vunpack.c.l.b16 %v2700
  %v3357 = vunpack.c.h.b16 %v2700
  %v3358 = vunpack.c.l.b16 %v2701
  %v3359 = vunpack.c.l.b16 %v2702
  %v3360 = vunpack.c.h.b16 %v2702
  %v3361 = vunpack.c.l.b16 %v2703
  %v3362 = vunpack.c.h.b16 %v2703
  %v3363 = vunpack.c.l.b16 %v2704
  %v3364 = vunpack.c.h.b16 %v2704
  %v3365 = vunpack.c.l.b16 %v2705
  %v3366 = vunpack.c.l.b16 %v2706
  %v3367 = vunpack.c.h.b16 %v2706
  %v3368 = vunpack.c.l.b16 %v2707
  %v3369 = vunpack.c.h.b16 %v2707
  %v3370 = vunpack.c.l.b16 %v2708
  %v3371 = vunpack.c.h.b16 %v2708
  %v3372 = vunpack.c.l.b16 %v2709
  %v3373 = vunpack.c.l.b16 %v2710
  %v3374 = vunpack.c.h.b16 %v2710
  %v3375 = vunpack.c.l.b16 %v2711
  %v3376 = vunpack.c.h.b16 %v2711
  %v3377 = vunpack.c.l.b16 %v2712
  %v3378 = vunpack.c.h.b16 %v2712
  %v3379 = vunpack.c.l.b16 %v2713
  %v3380 = vunpack.c.l.b16 %v2714
  %v3381 = vunpack.c.h.b16 %v2714
  %v3382 = vunpack.c.l.b16 %v2715
  %v3383 = vunpack.c.h.b16 %v2715
  %v3384 = vunpack.c.l.b16 %v2716
  %v3385 = vunpack.c.h.b16 %v2716
  %v3386 = vunpack.c.l.b16 %v2717
  %v3387 = vunpack.c.l.b16 %v2718
  %v3388 = vunpack.c.h.b16 %v2718
  %v3389 = vunpack.c.l.b16 %v2719
  %v3390 = vunpack.c.h.b16 %v2719
  %v3391 = vunpack.c.l.b16 %v2720
  %v3392 = vunpack.c.h.b16 %v2720
  %v3393 = vunpack.c.l.b16 %v2721
  %v3394 = vunpack.c.l.b16 %v2722
  %v3395 = vunpack.c.h.b16 %v2722
  %v3396 = vunpack.c.l.b16 %v2723
  %v3397 = vunpack.c.h.b16 %v2723
  %v3398 = vunpack.c.l.b16 %v2724
  %v3399 = vunpack.c.h.b16 %v2724
  %v3400 = vunpack.c.l.b16 %v2725
  %v3401 = vunpack.c.l.b16 %v2726
  %v3402 = vunpack.c.h.b16 %v2726
  %v3403 = vunpack.c.l.b16 %v2727
  %v3404 = vunpack.c.h.b16 %v2727
  %v3405 = vunpack.c.l.b16 %v2728
  %v3406 = vunpack.c.h.b16 %v2728
  %v3407 = vunpack.c.l.b16 %v2729
  %v3408 = vunpack.c.l.b16 %v2730
  %v3409 = vunpack.c.h.b16 %v2730
  %v3410 = vunpack.c.l.b16 %v2731
  %v3411 = vunpack.c.h.b16 %v2731
  %v3412 = vunpack.c.l.b16 %v2732
  %v3413 = vunpack.c.h.b16 %v2732
  %v3414 = vunpack.c.l.b16 %v2733
  %v3415 = vunpack.c.l.b16 %v2734
  %v3416 = vunpack.c.h.b16 %v2734
  %v3417 = vunpack.c.l.b16 %v2735
  %v3418 = vunpack.c.h.b16 %v2735
  %v3419 = vunpack.c.l.b16 %v2736
  %v3420 = vunpack.c.h.b16 %v2736
  %v3421 = vunpack.c.l.b16 %v2737
  %v3422 = vunpack.c.l.b16 %v2738
  %v3423 = vunpack.c.h.b16 %v2738
  %v3424 = vunpack.c.l.b16 %v2739
  %v3425 = vunpack.c.h.b16 %v2739
  %v3426 = vunpack.c.l.b16 %v2740
  %v3427 = vunpack.c.h.b16 %v2740
  %v3428 = vunpack.c.l.b16 %v2741
  %v3429 = vunpack.c.l.b16 %v2742
  %v3430 = vunpack.c.h.b16 %v2742
  %v3431 = vunpack.c.l.b16 %v2743
  %v3432 = vunpack.c.h.b16 %v2743
  %v3433 = vunpack.c.l.b16 %v2744
  %v3434 = vunpack.c.h.b16 %v2744
  %v3435 = vunpack.c.l.b16 %v2745
  %v3436 = vunpack.c.l.b16 %v2746
  %v3437 = vunpack.c.h.b16 %v2746
  %v3438 = vunpack.c.l.b16 %v2747
  %v3439 = vunpack.c.h.b16 %v2747
  %v3440 = vunpack.c.l.b16 %v2748
  %v3441 = vunpack.c.h.b16 %v2748
  %v3442 = vunpack.c.l.b16 %v2749
  %v3443 = vunpack.c.l.b16 %v2750
  %v3444 = vunpack.c.h.b16 %v2750
  %v3445 = vunpack.c.l.b16 %v2751
  %v3446 = vunpack.c.h.b16 %v2751
  %v3447 = vunpack.c.l.b16 %v2752
  %v3448 = vunpack.c.h.b16 %v2752
  %v3449 = vunpack.c.l.b16 %v2753
  %v3450 = vunpack.c.l.b16 %v2754
  %v3451 = vunpack.c.h.b16 %v2754
  %v3452 = vunpack.c.l.b16 %v2755
  %v3453 = vunpack.c.h.b16 %v2755
  %v3454 = vunpack.c.l.b16 %v2756
  %v3455 = vunpack.c.h.b16 %v2756
  %v3456 = vunpack.c.l.b16 %v2757
  %v3457 = vunpack.c.l.b16 %v2758
  %v3458 = vunpack.c.h.b16 %v2758
  %v3459 = vunpack.c.l.b16 %v2759
  %v3460 = vunpack.c.h.b16 %v2759
  %v3461 = vunpack.c.l.b16 %v2760
  %v3462 = vunpack.c.h.b16 %v2760
  %v3463 = vunpack.c.l.b16 %v2761
  %v3464 = vunpack.c.l.b16 %v2762
  %v3465 = vunpack.c.h.b16 %v2762
  %v3466 = vunpack.c.l.b16 %v2763
  %v3467 = vunpack.c.h.b16 %v2763
  %v3468 = vunpack.c.l.b16 %v2764
  %v3469 = vunpack.c.h.b16 %v2764
  %v3470 = vunpack.c.l.b16 %v2765
  %v3471 = vunpack.c.l.b16 %v2766
  %v3472 = vunpack.c.h.b16 %v2766
  %v3473 = vunpack.c.l.b16 %v2767
  %v3474 = vunpack.c.h.b16 %v2767
  %v3475 = vunpack.c.l.b16 %v2768
  %v3476 = vunpack.c.h.b16 %v2768
  %v3477 = vunpack.c.l.b16 %v2769
  %v3478 = vunpack.c.l.b16 %v2770
  %v3479 = vunpack.c.h.b16 %v2770
  %v3480 = vunpack.c.l.b16 %v2771
  %v3481 = vunpack.c.h.b16 %v2771
  %v3482 = vunpack.c.l.b16 %v2772
  %v3483 = vunpack.c.h.b16 %v2772
  %v3484 = vunpack.c.l.b16 %v2773
  %v3485 = vunpack.c.l.b16 %v2774
  %v3486 = vunpack.c.h.b16 %v2774
  %v3487 = vunpack.c.l.b16 %v2775
  %v3488 = vunpack.c.h.b16 %v2775
  %v3489 = vunpack.c.l.b16 %v2776
  %v3490 = vunpack.c.h.b16 %v2776
  %v3491 = vunpack.c.l.b16 %v2777
  %v3492 = vunpack.c.l.b16 %v2778
  %v3493 = vunpack.c.h.b16 %v2778
  %v3494 = vunpack.c.l.b16 %v2779
  %v3495 = vunpack.c.h.b16 %v2779
  %v3496 = vunpack.c.l.b16 %v2780
  %v3497 = vunpack.c.h.b16 %v2780
  %v3498 = vunpack.c.l.b16 %v2781
  %v3499 = vunpack.c.l.b16 %v2782
  %v3500 = vunpack.c.h.b16 %v2782
  %v3501 = vunpack.c.l.b16 %v2783
  %v3502 = vunpack.c.h.b16 %v2783
  %v3503 = vunpack.c.l.b16 %v2784
  %v3504 = vunpack.c.h.b16 %v2784
  %v3505 = vunpack.c.l.b16 %v2785
  %v3506 = vunpack.c.l.b16 %v2786
  %v3507 = vunpack.c.h.b16 %v2786
  %v3508 = vunpack.c.l.b16 %v2787
  %v3509 = vunpack.c.h.b16 %v2787
  %v3510 = vunpack.c.l.b16 %v2788
  %v3511 = vunpack.c.h.b16 %v2788
  %v3512 = vunpack.c.l.b16 %v2789
  %v3513 = vunpack.c.l.b16 %v2790
  %v3514 = vunpack.c.h.b16 %v2790
  %v3515 = vunpack.c.l.b16 %v2791
  %v3516 = vunpack.c.h.b16 %v2791
  %v3517 = vunpack.c.l.b16 %v2792
  %v3518 = vunpack.c.h.b16 %v2792
  %v3519 = vunpack.c.l.b16 %v2793
  %v3520 = vunpack.c.l.b16 %v2794
  %v3521 = vunpack.c.h.b16 %v2794
  %v3522 = vunpack.c.l.b16 %v2795
  %v3523 = vunpack.c.h.b16 %v2795
  %v3524 = vunpack.c.l.b16 %v2796
  %v3525 = vunpack.c.h.b16 %v2796
  %v3526 = vunpack.c.l.b16 %v2797
  %v3527 = vunpack.c.l.b16 %v2798
  %v3528 = vunpack.c.h.b16 %v2798
  %v3529 = vunpack.c.l.b16 %v2799
  %v3530 = vunpack.c.h.b16 %v2799
  %v3531 = vunpack.c.l.b16 %v2800
  %v3532 = vunpack.c.h.b16 %v2800
  %v3533 = vunpack.c.l.b16 %v2801
  %v3534 = vunpack.c.l.b16 %v2802
  %v3535 = vunpack.c.h.b16 %v2802
  %v3536 = vunpack.c.l.b16 %v2803
  %v3537 = vunpack.c.h.b16 %v2803
  %v3538 = vunpack.c.l.b16 %v2804
  %v3539 = vunpack.c.h.b16 %v2804
  %v3540 = vunpack.c.l.b16 %v2805
  %v3541 = vunpack.c.l.b16 %v2806
  %v3542 = vunpack.c.h.b16 %v2806
  %v3543 = vunpack.c.l.b16 %v2807
  %v3544 = vunpack.c.h.b16 %v2807
  %v3545 = vunpack.c.l.b16 %v2808
  %v3546 = vunpack.c.h.b16 %v2808
  %v3547 = vunpack.c.l.b16 %v2809
  %v3548 = vunpack.c.l.b16 %v2810
  %v3549 = vunpack.c.h.b16 %v2810
  %v3550 = vunpack.c.l.b16 %v2811
  %v3551 = vunpack.c.h.b16 %v2811
  %v3552 = vunpack.c.l.b16 %v2812
  %v3553 = vunpack.c.h.b16 %v2812
  %v3554 = vunpack.c.l.b16 %v2813
  %v3555 = vpack.c.b16 %v3114, %v3107
  %v3556 = vpack.c.b16 %v3115, %v3108
  %v3557 = vpack.c.b16 %v3116, %v3109
  %v3558 = vpack.c.b16 %v3117, %v3110
  %v3559 = vpack.c.b16 %v3118, %v3111
  %v3560 = vpack.c.b16 %v3119, %v3112
  %v3561 = vpack.c.b16 %v3120, %v3113
  %v3562 = vpack.c.b16 %v3128, %v3121
  %v3563 = vpack.c.b16 %v3129, %v3122
  %v3564 = vpack.c.b16 %v3130, %v3123
  %v3565 = vpack.c.b16 %v3131, %v3124
  %v3566 = vpack.c.b16 %v3132, %v3125
  %v3567 = vpack.c.b16 %v3133, %v3126
  %v3568 = vpack.c.b16 %v3134, %v3127
  %v3569 = vpack.c.b16 %v3142, %v3135
  %v3570 = vpack.c.b16 %v3143, %v3136
  %v3571 = vpack.c.b16 %v3144, %v3137
  %v3572 = vpack.c.b16 %v3145, %v3138
  %v3573 = vpack.c.b16 %v3146, %v3139
  %v3574 = vpack.c.b16 %v3147, %v3140
  %v3575 = vpack.c.b16 %v3148, %v3141
  %v3576 = vpack.c.b16 %v3156, %v3149
  %v3577 = vpack.c.b16 %v3157, %v3150
  %v3578 = vpack.c.b16 %v3158, %v3151
  %v3579 = vpack.c.b16 %v3159, %v3152
  %v3580 = vpack.c.b16 %v3160, %v3153
  %v3581 = vpack.c.b16 %v3161, %v3154
  %v3582 = vpack.c.b16 %v3162, %v3155
  %v3583 = vpack.c.b16 %v3170, %v3163
  %v3584 = vpack.c.b16 %v3171, %v3164
  %v3585 = vpack.c.b16 %v3172, %v3165
  %v3586 = vpack.c.b16 %v3173, %v3166
  %v3587 = vpack.c.b16 %v3174, %v3167
  %v3588 = vpack.c.b16 %v3175, %v3168
  %v3589 = vpack.c.b16 %v3176, %v3169
  %v3590 = vpack.c.b16 %v3184, %v3177
  %v3591 = vpack.c.b16 %v3185, %v3178
  %v3592 = vpack.c.b16 %v3186, %v3179
  %v3593 = vpack.c.b16 %v3187, %v3180
  %v3594 = vpack.c.b16 %v3188, %v3181
  %v3595 = vpack.c.b16 %v3189, %v3182
  %v3596 = vpack.c.b16 %v3190, %v3183
  %v3597 = vpack.c.b16 %v3198, %v3191
  %v3598 = vpack.c.b16 %v3199, %v3192
  %v3599 = vpack.c.b16 %v3200, %v3193
  %v3600 = vpack.c.b16 %v3201, %v3194
  %v3601 = vpack.c.b16 %v3202, %v3195
  %v3602 = vpack.c.b16 %v3203, %v3196
  %v3603 = vpack.c.b16 %v3204, %v3197
  %v3604 = vpack.c.b16 %v3212, %v3205
  %v3605 = vpack.c.b16 %v3213, %v3206
  %v3606 = vpack.c.b16 %v3214, %v3207
  %v3607 = vpack.c.b16 %v3215, %v3208
  %v3608 = vpack.c.b16 %v3216, %v3209
  %v3609 = vpack.c.b16 %v3217, %v3210
  %v3610 = vpack.c.b16 %v3218, %v3211
  %v3611 = vpack.c.b16 %v3226, %v3219
  %v3612 = vpack.c.b16 %v3227, %v3220
  %v3613 = vpack.c.b16 %v3228, %v3221
  %v3614 = vpack.c.b16 %v3229, %v3222
  %v3615 = vpack.c.b16 %v3230, %v3223
  %v3616 = vpack.c.b16 %v3231, %v3224
  %v3617 = vpack.c.b16 %v3232, %v3225
  %v3618 = vpack.c.b16 %v3240, %v3233
  %v3619 = vpack.c.b16 %v3241, %v3234
  %v3620 = vpack.c.b16 %v3242, %v3235
  %v3621 = vpack.c.b16 %v3243, %v3236
  %v3622 = vpack.c.b16 %v3244, %v3237
  %v3623 = vpack.c.b16 %v3245, %v3238
  %v3624 = vpack.c.b16 %v3246, %v3239
  %v3625 = vpack.c.b16 %v3254, %v3247
  %v3626 = vpack.c.b16 %v3255, %v3248
  %v3627 = vpack.c.b16 %v3256, %v3249
  %v3628 = vpack.c.b16 %v3257, %v3250
  %v3629 = vpack.c.b16 %v3258, %v3251
  %v3630 = vpack.c.b16 %v3259, %v3252
  %v3631 = vpack.c.b16 %v3260, %v3253
  %v3632 = vpack.c.b16 %v3268, %v3261
  %v3633 = vpack.c.b16 %v3269, %v3262
  %v3634 = vpack.c.b16 %v3270, %v3263
  %v3635 = vpack.c.b16 %v3271, %v3264
  %v3636 = vpack.c.b16 %v3272, %v3265
  %v3637 = vpack.c.b16 %v3273, %v3266
  %v3638 = vpack.c.b16 %v3274, %v3267
  %v3639 = vpack.c.b16 %v3282, %v3275
  %v3640 = vpack.c.b16 %v3283, %v3276
  %v3641 = vpack.c.b16 %v3284, %v3277
  %v3642 = vpack.c.b16 %v3285, %v3278
  %v3643 = vpack.c.b16 %v3286, %v3279
  %v3644 = vpack.c.b16 %v3287, %v3280
  %v3645 = vpack.c.b16 %v3288, %v3281
  %v3646 = vpack.c.b16 %v3296, %v3289
  %v3647 = vpack.c.b16 %v3297, %v3290
  %v3648 = vpack.c.b16 %v3298, %v3291
  %v3649 = vpack.c.b16 %v3299, %v3292
  %v3650 = vpack.c.b16 %v3300, %v3293
  %v3651 = vpack.c.b16 %v3301, %v3294
  %v3652 = vpack.c.b16 %v3302, %v3295
  %v3653 = vpack.c.b16 %v3310, %v3303
  %v3654 = vpack.c.b16 %v3311, %v3304
  %v3655 = vpack.c.b16 %v3312, %v3305
  %v3656 = vpack.c.b16 %v3313, %v3306
  %v3657 = vpack.c.b16 %v3314, %v3307
  %v3658 = vpack.c.b16 %v3315, %v3308
  %v3659 = vpack.c.b16 %v3316, %v3309
  %v3660 = vpack.c.b16 %v3324, %v3317
  %v3661 = vpack.c.b16 %v3325, %v3318
  %v3662 = vpack.c.b16 %v3326, %v3319
  %v3663 = vpack.c.b16 %v3327, %v3320
  %v3664 = vpack.c.b16 %v3328, %v3321
  %v3665 = vpack.c.b16 %v3329, %v3322
  %v3666 = vpack.c.b16 %v3330, %v3323
  %v3667 = vpack.c.b16 %v3338, %v3331
  %v3668 = vpack.c.b16 %v3339, %v3332
  %v3669 = vpack.c.b16 %v3340, %v3333
  %v3670 = vpack.c.b16 %v3341, %v3334
  %v3671 = vpack.c.b16 %v3342, %v3335
  %v3672 = vpack.c.b16 %v3343, %v3336
  %v3673 = vpack.c.b16 %v3344, %v3337
  %v3674 = vpack.c.b16 %v3352, %v3345
  %v3675 = vpack.c.b16 %v3353, %v3346
  %v3676 = vpack.c.b16 %v3354, %v3347
  %v3677 = vpack.c.b16 %v3355, %v3348
  %v3678 = vpack.c.b16 %v3356, %v3349
  %v3679 = vpack.c.b16 %v3357, %v3350
  %v3680 = vpack.c.b16 %v3358, %v3351
  %v3681 = vpack.c.b16 %v3366, %v3359
  %v3682 = vpack.c.b16 %v3367, %v3360
  %v3683 = vpack.c.b16 %v3368, %v3361
  %v3684 = vpack.c.b16 %v3369, %v3362
  %v3685 = vpack.c.b16 %v3370, %v3363
  %v3686 = vpack.c.b16 %v3371, %v3364
  %v3687 = vpack.c.b16 %v3372, %v3365
  %v3688 = vpack.c.b16 %v3380, %v3373
  %v3689 = vpack.c.b16 %v3381, %v3374
  %v3690 = vpack.c.b16 %v3382, %v3375
  %v3691 = vpack.c.b16 %v3383, %v3376
  %v3692 = vpack.c.b16 %v3384, %v3377
  %v3693 = vpack.c.b16 %v3385, %v3378
  %v3694 = vpack.c.b16 %v3386, %v3379
  %v3695 = vpack.c.b16 %v3394, %v3387
  %v3696 = vpack.c.b16 %v3395, %v3388
  %v3697 = vpack.c.b16 %v3396, %v3389
  %v3698 = vpack.c.b16 %v3397, %v3390
  %v3699 = vpack.c.b16 %v3398, %v3391
  %v3700 = vpack.c.b16 %v3399, %v3392
  %v3701 = vpack.c.b16 %v3400, %v3393
  %v3702 = vpack.c.b16 %v3408, %v3401
  %v3703 = vpack.c.b16 %v3409, %v3402
  %v3704 = vpack.c.b16 %v3410, %v3403
  %v3705 = vpack.c.b16 %v3411, %v3404
  %v3706 = vpack.c.b16 %v3412, %v3405
  %v3707 = vpack.c.b16 %v3413, %v3406
  %v3708 = vpack.c.b16 %v3414, %v3407
  %v3709 = vpack.c.b16 %v3422, %v3415
  %v3710 = vpack.c.b16 %v3423, %v3416
  %v3711 = vpack.c.b16 %v3424, %v3417
  %v3712 = vpack.c.b16 %v3425, %v3418
  %v3713 = vpack.c.b16 %v3426, %v3419
  %v3714 = vpack.c.b16 %v3427, %v3420
  %v3715 = vpack.c.b16 %v3428, %v3421
  %v3716 = vpack.c.b16 %v3436, %v3429
  %v3717 = vpack.c.b16 %v3437, %v3430
  %v3718 = vpack.c.b16 %v3438, %v3431
  %v3719 = vpack.c.b16 %v3439, %v3432
  %v3720 = vpack.c.b16 %v3440, %v3433
  %v3721 = vpack.c.b16 %v3441, %v3434
  %v3722 = vpack.c.b16 %v3442, %v3435
  %v3723 = vpack.c.b16 %v3450, %v3443
  %v3724 = vpack.c.b16 %v3451, %v3444
  %v3725 = vpack.c.b16 %v3452, %v3445
  %v3726 = vpack.c.b16 %v3453, %v3446
  %v3727 = vpack.c.b16 %v3454, %v3447
  %v3728 = vpack.c.b16 %v3455, %v3448
  %v3729 = vpack.c.b16 %v3456, %v3449
  %v3730 = vpack.c.b16 %v3464, %v3457
  %v3731 = vpack.c.b16 %v3465, %v3458
  %v3732 = vpack.c.b16 %v3466, %v3459
  %v3733 = vpack.c.b16 %v3467, %v3460
  %v3734 = vpack.c.b16 %v3468, %v3461
  %v3735 = vpack.c.b16 %v3469, %v3462
  %v3736 = vpack.c.b16 %v3470, %v3463
  %v3737 = vpack.c.b16 %v3478, %v3471
  %v3738 = vpack.c.b16 %v3479, %v3472
  %v3739 = vpack.c.b16 %v3480, %v3473
  %v3740 = vpack.c.b16 %v3481, %v3474
  %v3741 = vpack.c.b16 %v3482, %v3475
  %v3742 = vpack.c.b16 %v3483, %v3476
  %v3743 = vpack.c.b16 %v3484, %v3477
  %v3744 = vpack.c.b16 %v3492, %v3485
  %v3745 = vpack.c.b16 %v3493, %v3486
  %v3746 = vpack.c.b16 %v3494, %v3487
  %v3747 = vpack.c.b16 %v3495, %v3488
  %v3748 = vpack.c.b16 %v3496, %v3489
  %v3749 = vpack.c.b16 %v3497, %v3490
  %v3750 = vpack.c.b16 %v3498, %v3491
  %v3751 = vpack.c.b16 %v3506, %v3499
  %v3752 = vpack.c.b16 %v3507, %v3500
  %v3753 = vpack.c.b16 %v3508, %v3501
  %v3754 = vpack.c.b16 %v3509, %v3502
  %v3755 = vpack.c.b16 %v3510, %v3503
  %v3756 = vpack.c.b16 %v3511, %v3504
  %v3757 = vpack.c.b16 %v3512, %v3505
  %v3758 = vpack.c.b16 %v3520, %v3513
  %v3759 = vpack.c.b16 %v3521, %v3514
  %v3760 = vpack.c.b16 %v3522, %v3515
  %v3761 = vpack.c.b16 %v3523, %v3516
  %v3762 = vpack.c.b16 %v3524, %v3517
  %v3763 = vpack.c.b16 %v3525, %v3518
  %v3764 = vpack.c.b16 %v3526, %v3519
  %v3765 = vpack.c.b16 %v3534, %v3527
  %v3766 = vpack.c.b16 %v3535, %v3528
  %v3767 = vpack.c.b16 %v3536, %v3529
  %v3768 = vpack.c.b16 %v3537, %v3530
  %v3769 = vpack.c.b16 %v3538, %v3531
  %v3770 = vpack.c.b16 %v3539, %v3532
  %v3771 = vpack.c.b16 %v3540, %v3533
  %v3772 = vpack.c.b16 %v3548, %v3541
  %v3773 = vpack.c.b16 %v3549, %v3542
  %v3774 = vpack.c.b16 %v3550, %v3543
  %v3775 = vpack.c.b16 %v3551, %v3544
  %v3776 = vpack.c.b16 %v3552, %v3545
  %v3777 = vpack.c.b16 %v3553, %v3546
  %v3778 = vpack.c.b16 %v3554, %v3547
  %4003 = vmatprep.subr.bf16.mxu0 %v3556
  %4004 = vmatpush1.bf16.msra.mxu0 %v3555
  %4005 = vmatprep.subr.bf16.mxu0 %v3563
  %4006 = vmatpush1.bf16.msra.mxu0 %v3562
  %4007 = vmatprep.subr.bf16.mxu0 %v3570
  %4008 = vmatpush1.bf16.msra.mxu0 %v3569
  %4009 = vmatprep.subr.bf16.mxu0 %v3577
  %4010 = vmatpush1.bf16.msra.mxu0 %v3576
  %4011 = vmatprep.subr.bf16.mxu0 %v3584
  %4012 = vmatpush1.bf16.msra.mxu0 %v3583
  %4013 = vmatprep.subr.bf16.mxu0 %v3591
  %4014 = vmatpush1.bf16.msra.mxu0 %v3590
  %4015 = vmatprep.subr.bf16.mxu0 %v3598
  %4016 = vmatpush1.bf16.msra.mxu0 %v3597
  %4017 = vmatprep.subr.bf16.mxu0 %v3605
  %4018 = vmatpush1.bf16.msra.mxu0 %v3604
  %4019 = vmatprep.subr.bf16.mxu0 %v3612
  %4020 = vmatpush1.bf16.msra.mxu0 %v3611
  %4021 = vmatprep.subr.bf16.mxu0 %v3619
  %4022 = vmatpush1.bf16.msra.mxu0 %v3618
  %4023 = vmatprep.subr.bf16.mxu0 %v3626
  %4024 = vmatpush1.bf16.msra.mxu0 %v3625
  %4025 = vmatprep.subr.bf16.mxu0 %v3633
  %4026 = vmatpush1.bf16.msra.mxu0 %v3632
  %4027 = vmatprep.subr.bf16.mxu0 %v3640
  %4028 = vmatpush1.bf16.msra.mxu0 %v3639
  %4029 = vmatprep.subr.bf16.mxu0 %v3647
  %4030 = vmatpush1.bf16.msra.mxu0 %v3646
  %4031 = vmatprep.subr.bf16.mxu0 %v3654
  %4032 = vmatpush1.bf16.msra.mxu0 %v3653
  %4033 = vmatprep.subr.bf16.mxu0 %v3661
  %4034 = vmatpush1.bf16.msra.mxu0 %v3660
  %4035 = vmatprep.mubr.bf16.mxu0 %v2555
  %4036 = vmatmul.mubr.bf16.gmra.mrb[0].mxu0 %v2554
  %v4037 = vpop.f32.mrb[0].mxu0
  %v4038 = vadd.f32 %v2819, %v4037
  %v4039 = vpop.f32.mrb[0].mxu0
  %v4040 = vadd.f32 %v2823, %v4039
  %v4041 = vpop.f32.mrb[0].mxu0
  %v4042 = vpop.f32.mrb[0].mxu0
  %4043 = vdwg.mxu0
  %4044 = vmatprep.subr.bf16.mxu0 %v3668
  %4045 = vmatpush1.bf16.msra.mxu0 %v3667
  %4046 = vmatprep.subr.bf16.mxu0 %v3675
  %4047 = vmatpush1.bf16.msra.mxu0 %v3674
  %4048 = vmatprep.subr.bf16.mxu0 %v3682
  %4049 = vmatpush1.bf16.msra.mxu0 %v3681
  %4050 = vmatprep.subr.bf16.mxu0 %v3689
  %4051 = vmatpush1.bf16.msra.mxu0 %v3688
  %4052 = vmatprep.subr.bf16.mxu0 %v3696
  %4053 = vmatpush1.bf16.msra.mxu0 %v3695
  %4054 = vmatprep.subr.bf16.mxu0 %v3703
  %4055 = vmatpush1.bf16.msra.mxu0 %v3702
  %4056 = vmatprep.subr.bf16.mxu0 %v3710
  %4057 = vmatpush1.bf16.msra.mxu0 %v3709
  %4058 = vmatprep.subr.bf16.mxu0 %v3717
  %4059 = vmatpush1.bf16.msra.mxu0 %v3716
  %4060 = vmatprep.subr.bf16.mxu0 %v3724
  %4061 = vmatpush1.bf16.msra.mxu0 %v3723
  %4062 = vmatprep.subr.bf16.mxu0 %v3731
  %4063 = vmatpush1.bf16.msra.mxu0 %v3730
  %4064 = vmatprep.subr.bf16.mxu0 %v3738
  %4065 = vmatpush1.bf16.msra.mxu0 %v3737
  %4066 = vmatprep.subr.bf16.mxu0 %v3745
  %4067 = vmatpush1.bf16.msra.mxu0 %v3744
  %4068 = vmatprep.subr.bf16.mxu0 %v3752
  %4069 = vmatpush1.bf16.msra.mxu0 %v3751
  %4070 = vmatprep.subr.bf16.mxu0 %v3759
  %4071 = vmatpush1.bf16.msra.mxu0 %v3758
  %4072 = vmatprep.subr.bf16.mxu0 %v3766
  %4073 = vmatpush1.bf16.msra.mxu0 %v3765
  %4074 = vmatprep.subr.bf16.mxu0 %v3773
  %4075 = vmatpush1.bf16.msra.mxu0 %v3772
  %4076 = vmatprep.mubr.bf16.mxu0 %v2557
  %4077 = vmatmul.mubr.bf16.gmra.mrb[0].mxu0 %v2556
  %v4078 = vpop.f32.mrb[0].mxu0
  %v4079 = vadd.f32 %v4038, %v4078
  %v4080 = vpop.f32.mrb[0].mxu0
  %v4081 = vadd.f32 %v4040, %v4080
  %v4082 = vpop.f32.mrb[0].mxu0
  %v4083 = vpop.f32.mrb[0].mxu0
  %4084 = vdwg.mxu0
  %4085 = vmatprep.subr.bf16.mxu0 %v3558
  %4086 = vmatpush1.bf16.msra.mxu0 %v3557
  %4087 = vmatprep.subr.bf16.mxu0 %v3565
  %4088 = vmatpush1.bf16.msra.mxu0 %v3564
  %4089 = vmatprep.subr.bf16.mxu0 %v3572
  %4090 = vmatpush1.bf16.msra.mxu0 %v3571
  %4091 = vmatprep.subr.bf16.mxu0 %v3579
  %4092 = vmatpush1.bf16.msra.mxu0 %v3578
  %4093 = vmatprep.subr.bf16.mxu0 %v3586
  %4094 = vmatpush1.bf16.msra.mxu0 %v3585
  %4095 = vmatprep.subr.bf16.mxu0 %v3593
  %4096 = vmatpush1.bf16.msra.mxu0 %v3592
  %4097 = vmatprep.subr.bf16.mxu0 %v3600
  %4098 = vmatpush1.bf16.msra.mxu0 %v3599
  %4099 = vmatprep.subr.bf16.mxu0 %v3607
  %4100 = vmatpush1.bf16.msra.mxu0 %v3606
  %4101 = vmatprep.subr.bf16.mxu0 %v3614
  %4102 = vmatpush1.bf16.msra.mxu0 %v3613
  %4103 = vmatprep.subr.bf16.mxu0 %v3621
  %4104 = vmatpush1.bf16.msra.mxu0 %v3620
  %4105 = vmatprep.subr.bf16.mxu0 %v3628
  %4106 = vmatpush1.bf16.msra.mxu0 %v3627
  %4107 = vmatprep.subr.bf16.mxu0 %v3635
  %4108 = vmatpush1.bf16.msra.mxu0 %v3634
  %4109 = vmatprep.subr.bf16.mxu0 %v3642
  %4110 = vmatpush1.bf16.msra.mxu0 %v3641
  %4111 = vmatprep.subr.bf16.mxu0 %v3649
  %4112 = vmatpush1.bf16.msra.mxu0 %v3648
  %4113 = vmatprep.subr.bf16.mxu0 %v3656
  %4114 = vmatpush1.bf16.msra.mxu0 %v3655
  %4115 = vmatprep.subr.bf16.mxu0 %v3663
  %4116 = vmatpush1.bf16.msra.mxu0 %v3662
  %4117 = vmatprep.mubr.bf16.mxu0 %v2555
  %4118 = vmatmul.mubr.bf16.gmra.mrb[0].mxu0 %v2554
  %v4119 = vpop.f32.mrb[0].mxu0
  %v4120 = vadd.f32 %v2827, %v4119
  %v4121 = vpop.f32.mrb[0].mxu0
  %v4122 = vadd.f32 %v2831, %v4121
  %v4123 = vpop.f32.mrb[0].mxu0
  %v4124 = vpop.f32.mrb[0].mxu0
  %4125 = vdwg.mxu0
  %4126 = vmatprep.subr.bf16.mxu0 %v3670
  %4127 = vmatpush1.bf16.msra.mxu0 %v3669
  %4128 = vmatprep.subr.bf16.mxu0 %v3677
  %4129 = vmatpush1.bf16.msra.mxu0 %v3676
  %4130 = vmatprep.subr.bf16.mxu0 %v3684
  %4131 = vmatpush1.bf16.msra.mxu0 %v3683
  %4132 = vmatprep.subr.bf16.mxu0 %v3691
  %4133 = vmatpush1.bf16.msra.mxu0 %v3690
  %4134 = vmatprep.subr.bf16.mxu0 %v3698
  %4135 = vmatpush1.bf16.msra.mxu0 %v3697
  %4136 = vmatprep.subr.bf16.mxu0 %v3705
  %4137 = vmatpush1.bf16.msra.mxu0 %v3704
  %4138 = vmatprep.subr.bf16.mxu0 %v3712
  %4139 = vmatpush1.bf16.msra.mxu0 %v3711
  %4140 = vmatprep.subr.bf16.mxu0 %v3719
  %4141 = vmatpush1.bf16.msra.mxu0 %v3718
  %4142 = vmatprep.subr.bf16.mxu0 %v3726
  %4143 = vmatpush1.bf16.msra.mxu0 %v3725
  %4144 = vmatprep.subr.bf16.mxu0 %v3733
  %4145 = vmatpush1.bf16.msra.mxu0 %v3732
  %4146 = vmatprep.subr.bf16.mxu0 %v3740
  %4147 = vmatpush1.bf16.msra.mxu0 %v3739
  %4148 = vmatprep.subr.bf16.mxu0 %v3747
  %4149 = vmatpush1.bf16.msra.mxu0 %v3746
  %4150 = vmatprep.subr.bf16.mxu0 %v3754
  %4151 = vmatpush1.bf16.msra.mxu0 %v3753
  %4152 = vmatprep.subr.bf16.mxu0 %v3761
  %4153 = vmatpush1.bf16.msra.mxu0 %v3760
  %4154 = vmatprep.subr.bf16.mxu0 %v3768
  %4155 = vmatpush1.bf16.msra.mxu0 %v3767
  %4156 = vmatprep.subr.bf16.mxu0 %v3775
  %4157 = vmatpush1.bf16.msra.mxu0 %v3774
  %4158 = vmatprep.mubr.bf16.mxu0 %v2557
  %4159 = vmatmul.mubr.bf16.gmra.mrb[0].mxu0 %v2556
  %v4160 = vpop.f32.mrb[0].mxu0
  %v4161 = vadd.f32 %v4120, %v4160
  %v4162 = vpop.f32.mrb[0].mxu0
  %v4163 = vadd.f32 %v4122, %v4162
  %v4164 = vpop.f32.mrb[0].mxu0
  %v4165 = vpop.f32.mrb[0].mxu0
  %4166 = vdwg.mxu0
  %4167 = vmatprep.subr.bf16.mxu0 %v3560
  %4168 = vmatpush1.bf16.msra.mxu0 %v3559
  %4169 = vmatprep.subr.bf16.mxu0 %v3567
  %4170 = vmatpush1.bf16.msra.mxu0 %v3566
  %4171 = vmatprep.subr.bf16.mxu0 %v3574
  %4172 = vmatpush1.bf16.msra.mxu0 %v3573
  %4173 = vmatprep.subr.bf16.mxu0 %v3581
  %4174 = vmatpush1.bf16.msra.mxu0 %v3580
  %4175 = vmatprep.subr.bf16.mxu0 %v3588
  %4176 = vmatpush1.bf16.msra.mxu0 %v3587
  %4177 = vmatprep.subr.bf16.mxu0 %v3595
  %4178 = vmatpush1.bf16.msra.mxu0 %v3594
  %4179 = vmatprep.subr.bf16.mxu0 %v3602
  %4180 = vmatpush1.bf16.msra.mxu0 %v3601
  %4181 = vmatprep.subr.bf16.mxu0 %v3609
  %4182 = vmatpush1.bf16.msra.mxu0 %v3608
  %4183 = vmatprep.subr.bf16.mxu0 %v3616
  %4184 = vmatpush1.bf16.msra.mxu0 %v3615
  %4185 = vmatprep.subr.bf16.mxu0 %v3623
  %4186 = vmatpush1.bf16.msra.mxu0 %v3622
  %4187 = vmatprep.subr.bf16.mxu0 %v3630
  %4188 = vmatpush1.bf16.msra.mxu0 %v3629
  %4189 = vmatprep.subr.bf16.mxu0 %v3637
  %4190 = vmatpush1.bf16.msra.mxu0 %v3636
  %4191 = vmatprep.subr.bf16.mxu0 %v3644
  %4192 = vmatpush1.bf16.msra.mxu0 %v3643
  %4193 = vmatprep.subr.bf16.mxu0 %v3651
  %4194 = vmatpush1.bf16.msra.mxu0 %v3650
  %4195 = vmatprep.subr.bf16.mxu0 %v3658
  %4196 = vmatpush1.bf16.msra.mxu0 %v3657
  %4197 = vmatprep.subr.bf16.mxu0 %v3665
  %4198 = vmatpush1.bf16.msra.mxu0 %v3664
  %4199 = vmatprep.mubr.bf16.mxu0 %v2555
  %4200 = vmatmul.mubr.bf16.gmra.mrb[0].mxu0 %v2554
  %v4201 = vpop.f32.mrb[0].mxu0
  %v4202 = vadd.f32 %v2835, %v4201
  %v4203 = vpop.f32.mrb[0].mxu0
  %v4204 = vadd.f32 %v2839, %v4203
  %v4205 = vpop.f32.mrb[0].mxu0
  %v4206 = vpop.f32.mrb[0].mxu0
  %4207 = vdwg.mxu0
  %4208 = vmatprep.subr.bf16.mxu0 %v3672
  %4209 = vmatpush1.bf16.msra.mxu0 %v3671
  %4210 = vmatprep.subr.bf16.mxu0 %v3679
  %4211 = vmatpush1.bf16.msra.mxu0 %v3678
  %4212 = vmatprep.subr.bf16.mxu0 %v3686
  %4213 = vmatpush1.bf16.msra.mxu0 %v3685
  %4214 = vmatprep.subr.bf16.mxu0 %v3693
  %4215 = vmatpush1.bf16.msra.mxu0 %v3692
  %4216 = vmatprep.subr.bf16.mxu0 %v3700
  %4217 = vmatpush1.bf16.msra.mxu0 %v3699
  %4218 = vmatprep.subr.bf16.mxu0 %v3707
  %4219 = vmatpush1.bf16.msra.mxu0 %v3706
  %4220 = vmatprep.subr.bf16.mxu0 %v3714
  %4221 = vmatpush1.bf16.msra.mxu0 %v3713
  %4222 = vmatprep.subr.bf16.mxu0 %v3721
  %4223 = vmatpush1.bf16.msra.mxu0 %v3720
  %4224 = vmatprep.subr.bf16.mxu0 %v3728
  %4225 = vmatpush1.bf16.msra.mxu0 %v3727
  %4226 = vmatprep.subr.bf16.mxu0 %v3735
  %4227 = vmatpush1.bf16.msra.mxu0 %v3734
  %4228 = vmatprep.subr.bf16.mxu0 %v3742
  %4229 = vmatpush1.bf16.msra.mxu0 %v3741
  %4230 = vmatprep.subr.bf16.mxu0 %v3749
  %4231 = vmatpush1.bf16.msra.mxu0 %v3748
  %4232 = vmatprep.subr.bf16.mxu0 %v3756
  %4233 = vmatpush1.bf16.msra.mxu0 %v3755
  %4234 = vmatprep.subr.bf16.mxu0 %v3763
  %4235 = vmatpush1.bf16.msra.mxu0 %v3762
  %4236 = vmatprep.subr.bf16.mxu0 %v3770
  %4237 = vmatpush1.bf16.msra.mxu0 %v3769
  %4238 = vmatprep.subr.bf16.mxu0 %v3777
  %4239 = vmatpush1.bf16.msra.mxu0 %v3776
  %4240 = vmatprep.mubr.bf16.mxu0 %v2557
  %4241 = vmatmul.mubr.bf16.gmra.mrb[0].mxu0 %v2556
  %v4242 = vpop.f32.mrb[0].mxu0
  %v4243 = vadd.f32 %v4202, %v4242
  %v4244 = vpop.f32.mrb[0].mxu0
  %v4245 = vadd.f32 %v4204, %v4244
  %v4246 = vpop.f32.mrb[0].mxu0
  %v4247 = vpop.f32.mrb[0].mxu0
  %4248 = vdwg.mxu0
  %4249 = vmatprep.subr.bf16.mxu0 0
  %4250 = vmatpush1.bf16.msra.mxu0 %v3561
  %4251 = vmatprep.subr.bf16.mxu0 0
  %4252 = vmatpush1.bf16.msra.mxu0 %v3568
  %4253 = vmatprep.subr.bf16.mxu0 0
  %4254 = vmatpush1.bf16.msra.mxu0 %v3575
  %4255 = vmatprep.subr.bf16.mxu0 0
  %4256 = vmatpush1.bf16.msra.mxu0 %v3582
  %4257 = vmatprep.subr.bf16.mxu0 0
  %4258 = vmatpush1.bf16.msra.mxu0 %v3589
  %4259 = vmatprep.subr.bf16.mxu0 0
  %4260 = vmatpush1.bf16.msra.mxu0 %v3596
  %4261 = vmatprep.subr.bf16.mxu0 0
  %4262 = vmatpush1.bf16.msra.mxu0 %v3603
  %4263 = vmatprep.subr.bf16.mxu0 0
  %4264 = vmatpush1.bf16.msra.mxu0 %v3610
  %4265 = vmatprep.subr.bf16.mxu0 0
  %4266 = vmatpush1.bf16.msra.mxu0 %v3617
  %4267 = vmatprep.subr.bf16.mxu0 0
  %4268 = vmatpush1.bf16.msra.mxu0 %v3624
  %4269 = vmatprep.subr.bf16.mxu0 0
  %4270 = vmatpush1.bf16.msra.mxu0 %v3631
  %4271 = vmatprep.subr.bf16.mxu0 0
  %4272 = vmatpush1.bf16.msra.mxu0 %v3638
  %4273 = vmatprep.subr.bf16.mxu0 0
  %4274 = vmatpush1.bf16.msra.mxu0 %v3645
  %4275 = vmatprep.subr.bf16.mxu0 0
  %4276 = vmatpush1.bf16.msra.mxu0 %v3652
  %4277 = vmatprep.subr.bf16.mxu0 0
  %4278 = vmatpush1.bf16.msra.mxu0 %v3659
  %4279 = vmatprep.subr.bf16.mxu0 0
  %4280 = vmatpush1.bf16.msra.mxu0 %v3666
  %4281 = vmatprep.mubr.bf16.mxu0 %v2555
  %4282 = vmatmul.mubr.bf16.gmra.mrb[0].mxu0 %v2554
  %v4283 = vpop.f32.mrb[0].mxu0
  %v4284 = vadd.f32 %v2843, %v4283
  %v4285 = vpop.f32.mrb[0].mxu0
  %v4286 = vpop.f32.mrb[0].mxu0
  %v4287 = vpop.f32.mrb[0].mxu0
  %4288 = vdwg.mxu0
  %4289 = vmatprep.subr.bf16.mxu0 0
  %4290 = vmatpush1.bf16.msra.mxu0 %v3673
  %4291 = vmatprep.subr.bf16.mxu0 0
  %4292 = vmatpush1.bf16.msra.mxu0 %v3680
  %4293 = vmatprep.subr.bf16.mxu0 0
  %4294 = vmatpush1.bf16.msra.mxu0 %v3687
  %4295 = vmatprep.subr.bf16.mxu0 0
  %4296 = vmatpush1.bf16.msra.mxu0 %v3694
  %4297 = vmatprep.subr.bf16.mxu0 0
  %4298 = vmatpush1.bf16.msra.mxu0 %v3701
  %4299 = vmatprep.subr.bf16.mxu0 0
  %4300 = vmatpush1.bf16.msra.mxu0 %v3708
  %4301 = vmatprep.subr.bf16.mxu0 0
  %4302 = vmatpush1.bf16.msra.mxu0 %v3715
  %4303 = vmatprep.subr.bf16.mxu0 0
  %4304 = vmatpush1.bf16.msra.mxu0 %v3722
  %4305 = vmatprep.subr.bf16.mxu0 0
  %4306 = vmatpush1.bf16.msra.mxu0 %v3729
  %4307 = vmatprep.subr.bf16.mxu0 0
  %4308 = vmatpush1.bf16.msra.mxu0 %v3736
  %4309 = vmatprep.subr.bf16.mxu0 0
  %4310 = vmatpush1.bf16.msra.mxu0 %v3743
  %4311 = vmatprep.subr.bf16.mxu0 0
  %4312 = vmatpush1.bf16.msra.mxu0 %v3750
  %4313 = vmatprep.subr.bf16.mxu0 0
  %4314 = vmatpush1.bf16.msra.mxu0 %v3757
  %4315 = vmatprep.subr.bf16.mxu0 0
  %4316 = vmatpush1.bf16.msra.mxu0 %v3764
  %4317 = vmatprep.subr.bf16.mxu0 0
  %4318 = vmatpush1.bf16.msra.mxu0 %v3771
  %4319 = vmatprep.subr.bf16.mxu0 0
  %4320 = vmatpush1.bf16.msra.mxu0 %v3778
  %4321 = vmatprep.mubr.bf16.mxu0 %v2557
  %4322 = vmatmul.mubr.bf16.gmra.mrb[0].mxu0 %v2556
  %v4323 = vpop.f32.mrb[0].mxu0
  %v4324 = vadd.f32 %v4284, %v4323
  %v4325 = vpop.f32.mrb[0].mxu0
  %v4326 = vpop.f32.mrb[0].mxu0
  %v4327 = vpop.f32.mrb[0].mxu0
  %4328 = vdwg.mxu0
  %v4329 = vsub.f32 0.0, %v4079
  %v4330 = vsub.f32 0.0, %v4081
  %v4331 = vsub.f32 0.0, %v4161
  %v4332 = vsub.f32 0.0, %v4163
  %v4333 = vsub.f32 0.0, %v4243
  %v4334 = vsub.f32 0.0, %v4245
  %v4335 = vsub.f32 0.0, %v4324
  %v4336 = vmul.f32 %v4329, 1.442695
  %v4337 = vpow.pop %v4336
  %v4338 = vmul.f32 %v4330, 1.442695
  %v4339 = vpow.pop %v4338
  %v4340 = vmul.f32 %v4331, 1.442695
  %v4341 = vpow.pop %v4340
  %v4342 = vmul.f32 %v4332, 1.442695
  %v4343 = vpow.pop %v4342
  %v4344 = vmul.f32 %v4333, 1.442695
  %v4345 = vpow.pop %v4344
  %v4346 = vmul.f32 %v4334, 1.442695
  %v4347 = vpow.pop %v4346
  %v4348 = vmul.f32 %v4335, 1.442695
  %v4349 = vpow.pop %v4348
  %v4350 = vadd.f32 %v4337, 1.0
  %v4351 = vadd.f32 %v4339, 1.0
  %v4352 = vadd.f32 %v4341, 1.0
  %v4353 = vadd.f32 %v4343, 1.0
  %v4354 = vadd.f32 %v4345, 1.0
  %v4355 = vadd.f32 %v4347, 1.0
  %v4356 = vadd.f32 %v4349, 1.0
  %v4357 = vrcp.pop %v4350
  %v4358 = vrcp.pop %v4351
  %v4359 = vrcp.pop %v4352
  %v4360 = vrcp.pop %v4353
  %v4361 = vrcp.pop %v4354
  %v4362 = vrcp.pop %v4355
  %v4363 = vrcp.pop %v4356
  %4364 = vst [vmem:[%s10] sm:$0xff] %v4357
  %4365 = vst [vmem:[%s10 + $0x8] sm:$0xff] %v4358
  %4366 = vst [vmem:[%s10 + $0x10] sm:$0xff] %v4359
  %4367 = vst [vmem:[%s10 + $0x18] sm:$0xff] %v4360
  %4368 = vst [vmem:[%s10 + $0x20] sm:$0xff] %v4361
  %4369 = vst [vmem:[%s10 + $0x28] sm:$0xff] %v4362
  %4370 = vst [vmem:[%s10 + $0x30] sm:$0xff] %v4363
  // Predicated region
  $region42: #{vae_forward.1} parent=0 // pred_check
    _
  $region43: #{vae_forward.1} parent=0 // pred_check_branch
    %4372 = sbr.rel (0) target = $region45
  $region44: #{vae_forward.1} parent=0 // pred_region
    _
  $region45: #{vae_forward.1} parent=0 // pred_fallthru
    _
  // Predicated region
  $region46: #{vae_forward.1} parent=0 // pred_check
    _
  $region47: #{vae_forward.1} parent=0 // pred_check_branch
    %4374 = sbr.rel (0) target = $region49
  $region48: #{vae_forward.1} parent=0 // pred_region
    _
  $region49: #{vae_forward.1} parent=0 // pred_fallthru
    _
  // Predicated region
  $region50: #{vae_forward.1} parent=0 // pred_check
    _
  $region51: #{vae_forward.1} parent=0 // pred_check_branch
    %4376 = sbr.rel (0) target = $region53
  $region52: #{vae_forward.1} parent=0 // pred_region
    _
  $region53: #{vae_forward.1} parent=0 // pred_fallthru
    _
  // Predicated region
  $region54: #{vae_forward.1} parent=0 // pred_check
    _
  $region55: #{vae_forward.1} parent=0 // pred_check_branch
    %4378 = sbr.rel (0) target = $region57
  $region56: #{vae_forward.1} parent=0 // pred_region
    _
  $region57: #{vae_forward.1} parent=0 // pred_fallthru
    _

</llo_original>
